<compile_context>
chip_gen: v7x
topology: tpu7x:2x2x1
jax: 0.10.0
libtpu: 0.0.40
codegen_flags: <defaults>
</compile_context>

<pallas_src>
import jax
import jax.numpy as jnp
from jax.experimental import pallas as pl
from jax.experimental.pallas import tpu as pltpu

C_HID = 80
DILATIONS = (1, 2, 4, 8, 16, 32)
MM_DTYPE = jnp.bfloat16          # MXU operand dtype; accumulation stays f32


# ------------------------------ fused kernel ------------------------------- #

def _proj3(w, x):
    """(Cout, 3) @ (3, L) on the VPU - K=3 is far too small to feed the MXU."""
    acc = w[:, 0:1] * x[0:1, :]
    acc = acc + w[:, 1:2] * x[1:2, :]
    acc = acc + w[:, 2:3] * x[2:3, :]
    return acc


def _generator_kernel(x_ref, w1_ref, b1_ref, w2_ref, b2_ref, wr_ref, br_ref,
                      wc1_ref, bb1_ref, wc2_ref, bb2_ref, wf_ref, bf_ref,
                      y_ref):
    x = x_ref[0]                                               # (3, L) f32

    # ---- block 0: TemporalBlock(3, 80, k=1, pad=0), 1x1 residual conv ----
    h = jnp.maximum(_proj3(w1_ref[...], x) + b1_ref[...], 0.0)
    out = jnp.dot(w2_ref[...], h.astype(MM_DTYPE),
                  preferred_element_type=jnp.float32) + b2_ref[...]
    out = jnp.maximum(out, 0.0)
    res = _proj3(wr_ref[...], x) + br_ref[...]
    skip = out                                                 # skip-sum start
    h = jnp.maximum(out + res, 0.0)                            # (80, L)

    l = h.shape[1]
    t_idx = jax.lax.broadcasted_iota(jnp.int32, (C_HID, l), 1)  # hoisted once

    # ---- 6x TemporalBlock(80, 80, k=2, dilation=d, pad=d) + Trim1d(d) ----
    for i, d in enumerate(DILATIONS):
        mask = t_idx >= d                                      # reused for both convs

        # conv1: stacked taps -> one (160,80)@(80,L) MXU push, shift after matmul
        p = jnp.dot(wc1_ref[i], h.astype(MM_DTYPE),
                    preferred_element_type=jnp.float32)        # (160, L)
        ps = jnp.where(mask, pltpu.roll(p[:C_HID], shift=d, axis=1), 0.0)
        h1 = jnp.maximum(ps + p[C_HID:] + bb1_ref[i], 0.0)

        # conv2
        q = jnp.dot(wc2_ref[i], h1.astype(MM_DTYPE),
                    preferred_element_type=jnp.float32)        # (160, L)
        qs = jnp.where(mask, pltpu.roll(q[:C_HID], shift=d, axis=1), 0.0)
        out = jnp.maximum(qs + q[C_HID:] + bb2_ref[i], 0.0)

        skip = skip + out
        h = jnp.maximum(out + h, 0.0)                          # identity residual

    # ---- final_conv( x + sum(skip_layers) ) ----
    s = (h + skip).astype(MM_DTYPE)
    y_ref[0] = jnp.dot(wf_ref[...], s,
                       preferred_element_type=jnp.float32) + bf_ref[...]


# ---------------------------- pallas_call wrapper --------------------------- #

def _batched_spec(c, l):
    return pl.BlockSpec((1, c, l), lambda n: (n, 0, 0))


def _resident_spec(shape):
    nd = len(shape)
    return pl.BlockSpec(shape, lambda n, _nd=nd: (0,) * _nd)


def generator_forward(x, kparams):
    n, cin, l = x.shape
    assert l > max(DILATIONS), "whole-axis roll shift requires L > max dilation"
    return pl.pallas_call(
        _generator_kernel,
        out_shape=jax.ShapeDtypeStruct((n, 1, l), jnp.float32),
        grid=(n,),
        in_specs=[_batched_spec(cin, l)] + [_resident_spec(p.shape) for p in kparams],
        out_specs=_batched_spec(1, l),
        compiler_params=pltpu.CompilerParams(dimension_semantics=("parallel",)),
    )(x, *kparams)


# ------------------------------- parameters --------------------------------- #

def _weight_norm_effective(v, g):
    # PyTorch weight_norm(dim=0): w = g * v / ||v|| (norm over in_ch, kernel dims)
    norm = jnp.sqrt(jnp.sum(v * v, axis=(1, 2), keepdims=True))
    return g * v / norm


def init_params(key):
    keys = iter(jax.random.split(key, 64))

    def nrm(shape, scale):
        return scale * jax.random.normal(next(keys), shape, jnp.float32)

    def wn_conv(cin, cout, k):
        v = nrm((cout, cin, k), 0.05)
        g = 1.0 + nrm((cout, 1, 1), 0.02)
        b = nrm((cout,), 0.02)
        return _weight_norm_effective(v, g), b

    # Block 0: TemporalBlock(3, 80, k=1, pad=0) with 1x1 residual conv
    w1, b1 = wn_conv(3, C_HID, 1)
    w2, b2 = wn_conv(C_HID, C_HID, 1)
    wr = nrm((C_HID, 3, 1), 0.05)
    br = nrm((C_HID,), 0.02)
    block0_p = (w1[:, :, 0], b1.reshape(C_HID, 1),
                w2[:, :, 0], b2.reshape(C_HID, 1),
                wr[:, :, 0], br.reshape(C_HID, 1))

    # Dilated blocks: TemporalBlock(80, 80, k=2, dilation=d, pad=d)
    blocks = []
    for _ in DILATIONS:
        wa, ba = wn_conv(C_HID, C_HID, 2)
        wb, bb = wn_conv(C_HID, C_HID, 2)
        blocks.append((wa[:, :, 0], wa[:, :, 1], ba.reshape(C_HID, 1),
                       wb[:, :, 0], wb[:, :, 1], bb.reshape(C_HID, 1)))

    # final_conv: Conv1d(80, 1, k=1)
    wf = nrm((1, C_HID, 1), 0.05)
    bf = nrm((1,), 0.02)

    return {"block0": block0_p,
            "blocks": tuple(blocks),
            "final": (wf[:, :, 0], bf.reshape(1, 1))}


def pack_params(params):
    """Stack the two conv taps, stack the 6 blocks, cast MXU weights to bf16."""
    w1, b1, w2, b2, wr, br = params["block0"]
    wc1 = jnp.stack([jnp.concatenate([blk[0], blk[1]], axis=0)   # (6, 160, 80)
                     for blk in params["blocks"]])
    bb1 = jnp.stack([blk[2] for blk in params["blocks"]])        # (6, 80, 1)
    wc2 = jnp.stack([jnp.concatenate([blk[3], blk[4]], axis=0)
                     for blk in params["blocks"]])
    bb2 = jnp.stack([blk[5] for blk in params["blocks"]])
    wf, bf = params["final"]
    return (w1, b1,                                  # f32: VPU projection path
            w2.astype(MM_DTYPE), b2,
            wr, br,                                  # f32: VPU projection path
            wc1.astype(MM_DTYPE), bb1,
            wc2.astype(MM_DTYPE), bb2,
            wf.astype(MM_DTYPE), bf)


# ----------------------------- pure-JAX reference --------------------------- #

def generator_reference(x, kparams):
    """jnp replica of the fused kernel with identical mixed precision."""
    w1, b1, w2, b2, wr, br, wc1, bb1, wc2, bb2, wf, bf = kparams

    def proj3(w, v):
        return sum(w[None, :, k, None] * v[:, k, None, :] for k in range(3))

    def shift(v, d):                                   # causal shift along time
        return jnp.concatenate([jnp.zeros_like(v[..., :d]), v[..., :-d]], axis=-1)

    h = jnp.maximum(proj3(w1, x) + b1[None], 0.0)
    out = jnp.einsum("oc,ncl->nol", w2, h.astype(MM_DTYPE),
                     preferred_element_type=jnp.float32) + b2[None]
    out = jnp.maximum(out, 0.0)
    res = proj3(wr, x) + br[None]
    skip = out
    h = jnp.maximum(out + res, 0.0)

    for i, d in enumerate(DILATIONS):
        p = jnp.einsum("oc,ncl->nol", wc1[i], h.astype(MM_DTYPE),
                       preferred_element_type=jnp.float32)
        h1 = jnp.maximum(shift(p[:, :C_HID], d) + p[:, C_HID:] + bb1[i][None], 0.0)
        q = jnp.einsum("oc,ncl->nol", wc2[i], h1.astype(MM_DTYPE),
                       preferred_element_type=jnp.float32)
        out = jnp.maximum(shift(q[:, :C_HID], d) + q[:, C_HID:] + bb2[i][None], 0.0)
        skip = skip + out
        h = jnp.maximum(out + h, 0.0)

    s = (h + skip).astype(MM_DTYPE)
    return jnp.einsum("oc,ncl->nol", wf, s,
                      preferred_element_type=jnp.float32) + bf[None]


# ---------------------------------- main ------------------------------------ #

if __name__ == "__main__":
    key = jax.random.PRNGKey(0)
    kp, kx = jax.random.split(key)
    kparams = pack_params(init_params(kp))

    N, L = 2, 128                       # x: (batch=2, channels=3, time=128)
    x = jax.random.normal(kx, (N, 3, L), jnp.float32)

    y = jax.jit(generator_forward)(x, kparams)
    y = jax.block_until_ready(y)
    assert y.shape == (N, 1, L) and y.dtype == jnp.float32
    assert bool(jnp.all(jnp.isfinite(y)))

    y_ref = generator_reference(x, kparams)
    assert bool(jnp.allclose(y, y_ref, atol=1e-2, rtol=1e-2))
    print("KERNEL_OK")
</pallas_src>

<mosaic_0001>
module attributes {stable_mosaic.version = 11 : i64} {
  func.func @_generator_kernel(%arg0: i32, %arg1: memref<1x3x128xf32, #tpu.memory_space<vmem>>, %arg2: memref<80x3xf32, #tpu.memory_space<vmem>>, %arg3: memref<80x1xf32, #tpu.memory_space<vmem>>, %arg4: memref<80x80xbf16, #tpu.memory_space<vmem>>, %arg5: memref<80x1xf32, #tpu.memory_space<vmem>>, %arg6: memref<80x3xf32, #tpu.memory_space<vmem>>, %arg7: memref<80x1xf32, #tpu.memory_space<vmem>>, %arg8: memref<6x160x80xbf16, #tpu.memory_space<vmem>>, %arg9: memref<6x80x1xf32, #tpu.memory_space<vmem>>, %arg10: memref<6x160x80xbf16, #tpu.memory_space<vmem>>, %arg11: memref<6x80x1xf32, #tpu.memory_space<vmem>>, %arg12: memref<1x80xbf16, #tpu.memory_space<vmem>>, %arg13: memref<1x1xf32, #tpu.memory_space<vmem>>, %arg14: memref<1x1x128xf32, #tpu.memory_space<vmem>>) attributes {dimension_semantics = [#tpu.dimension_semantics<parallel>], iteration_bounds = array<i64: 2>, scalar_prefetch = 0 : i64, scratch_operands = 0 : i64, tpu.core_type = #tpu.core_type<tc>, window_params = [{transform_indices = @transform_0, window_bounds = array<i64: 1, 3, 128>}, {pipeline_mode = #tpu.pipeline_mode<synchronous>, transform_indices = @transform_1, window_bounds = array<i64: 80, 3>}, {pipeline_mode = #tpu.pipeline_mode<synchronous>, transform_indices = @transform_2, window_bounds = array<i64: 80, 1>}, {pipeline_mode = #tpu.pipeline_mode<synchronous>, transform_indices = @transform_3, window_bounds = array<i64: 80, 80>}, {pipeline_mode = #tpu.pipeline_mode<synchronous>, transform_indices = @transform_4, window_bounds = array<i64: 80, 1>}, {pipeline_mode = #tpu.pipeline_mode<synchronous>, transform_indices = @transform_5, window_bounds = array<i64: 80, 3>}, {pipeline_mode = #tpu.pipeline_mode<synchronous>, transform_indices = @transform_6, window_bounds = array<i64: 80, 1>}, {pipeline_mode = #tpu.pipeline_mode<synchronous>, transform_indices = @transform_7, window_bounds = array<i64: 6, 160, 80>}, {pipeline_mode = #tpu.pipeline_mode<synchronous>, transform_indices = @transform_8, window_bounds = array<i64: 6, 80, 1>}, {pipeline_mode = #tpu.pipeline_mode<synchronous>, transform_indices = @transform_9, window_bounds = array<i64: 6, 160, 80>}, {pipeline_mode = #tpu.pipeline_mode<synchronous>, transform_indices = @transform_10, window_bounds = array<i64: 6, 80, 1>}, {pipeline_mode = #tpu.pipeline_mode<synchronous>, transform_indices = @transform_11, window_bounds = array<i64: 1, 80>}, {pipeline_mode = #tpu.pipeline_mode<synchronous>, transform_indices = @transform_12, window_bounds = array<i64: 1, 1>}, {transform_indices = @transform_13, window_bounds = array<i64: 1, 1, 128>}]} {
    %c0 = arith.constant 0 : index
    %c0_0 = arith.constant 0 : index
    %c0_1 = arith.constant 0 : index
    %0 = vector.load %arg1[%c0, %c0_0, %c0_1] : memref<1x3x128xf32, #tpu.memory_space<vmem>>, vector<1x3x128xf32>
    %1 = vector.shape_cast %0 : vector<1x3x128xf32> to vector<3x128xf32>
    %c0_2 = arith.constant 0 : index
    %c0_3 = arith.constant 0 : index
    %2 = vector.load %arg2[%c0_2, %c0_3] : memref<80x3xf32, #tpu.memory_space<vmem>>, vector<80x3xf32>
    %3 = vector.extract_strided_slice %2 {offsets = [0, 0], sizes = [80, 1], strides = [1, 1]} : vector<80x3xf32> to vector<80x1xf32>
    %4 = vector.extract_strided_slice %1 {offsets = [0, 0], sizes = [1, 128], strides = [1, 1]} : vector<3x128xf32> to vector<1x128xf32>
    %5 = vector.broadcast %3 : vector<80x1xf32> to vector<80x128xf32>
    %6 = vector.broadcast %4 : vector<1x128xf32> to vector<80x128xf32>
    %7 = arith.mulf %5, %6 : vector<80x128xf32>
    %8 = vector.extract_strided_slice %2 {offsets = [0, 1], sizes = [80, 1], strides = [1, 1]} : vector<80x3xf32> to vector<80x1xf32>
    %9 = vector.extract_strided_slice %1 {offsets = [1, 0], sizes = [1, 128], strides = [1, 1]} : vector<3x128xf32> to vector<1x128xf32>
    %10 = vector.broadcast %8 : vector<80x1xf32> to vector<80x128xf32>
    %11 = vector.broadcast %9 : vector<1x128xf32> to vector<80x128xf32>
    %12 = arith.mulf %10, %11 : vector<80x128xf32>
    %13 = arith.addf %7, %12 : vector<80x128xf32>
    %14 = vector.extract_strided_slice %2 {offsets = [0, 2], sizes = [80, 1], strides = [1, 1]} : vector<80x3xf32> to vector<80x1xf32>
    %15 = vector.extract_strided_slice %1 {offsets = [2, 0], sizes = [1, 128], strides = [1, 1]} : vector<3x128xf32> to vector<1x128xf32>
    %16 = vector.broadcast %14 : vector<80x1xf32> to vector<80x128xf32>
    %17 = vector.broadcast %15 : vector<1x128xf32> to vector<80x128xf32>
    %18 = arith.mulf %16, %17 : vector<80x128xf32>
    %19 = arith.addf %13, %18 : vector<80x128xf32>
    %c0_4 = arith.constant 0 : index
    %c0_5 = arith.constant 0 : index
    %20 = vector.load %arg3[%c0_4, %c0_5] : memref<80x1xf32, #tpu.memory_space<vmem>>, vector<80x1xf32>
    %21 = vector.broadcast %20 : vector<80x1xf32> to vector<80x128xf32>
    %22 = arith.addf %19, %21 : vector<80x128xf32>
    %cst = arith.constant 0.000000e+00 : f32
    %23 = vector.broadcast %cst : f32 to vector<80x128xf32>
    %24 = arith.maximumf %22, %23 : vector<80x128xf32>
    %c0_6 = arith.constant 0 : index
    %c0_7 = arith.constant 0 : index
    %25 = vector.load %arg4[%c0_6, %c0_7] : memref<80x80xbf16, #tpu.memory_space<vmem>>, vector<80x80xbf16>
    %26 = arith.truncf %24 : vector<80x128xf32> to vector<80x128xbf16>
    %cst_8 = arith.constant dense<0.000000e+00> : vector<80x128xf32>
    %27 = tpu.matmul %25, %26, %cst_8 {dimension_numbers = #tpu.dot_dimension_numbers<[1], [0], [0], [1], [0, 0, 1, 1], [], []>} : vector<80x80xbf16>, vector<80x128xbf16>, vector<80x128xf32> -> vector<80x128xf32>
    %c0_9 = arith.constant 0 : index
    %c0_10 = arith.constant 0 : index
    %28 = vector.load %arg5[%c0_9, %c0_10] : memref<80x1xf32, #tpu.memory_space<vmem>>, vector<80x1xf32>
    %29 = vector.broadcast %28 : vector<80x1xf32> to vector<80x128xf32>
    %30 = arith.addf %27, %29 : vector<80x128xf32>
    %cst_11 = arith.constant 0.000000e+00 : f32
    %31 = vector.broadcast %cst_11 : f32 to vector<80x128xf32>
    %32 = arith.maximumf %30, %31 : vector<80x128xf32>
    %c0_12 = arith.constant 0 : index
    %c0_13 = arith.constant 0 : index
    %33 = vector.load %arg6[%c0_12, %c0_13] : memref<80x3xf32, #tpu.memory_space<vmem>>, vector<80x3xf32>
    %34 = vector.extract_strided_slice %33 {offsets = [0, 0], sizes = [80, 1], strides = [1, 1]} : vector<80x3xf32> to vector<80x1xf32>
    %35 = vector.extract_strided_slice %1 {offsets = [0, 0], sizes = [1, 128], strides = [1, 1]} : vector<3x128xf32> to vector<1x128xf32>
    %36 = vector.broadcast %34 : vector<80x1xf32> to vector<80x128xf32>
    %37 = vector.broadcast %35 : vector<1x128xf32> to vector<80x128xf32>
    %38 = arith.mulf %36, %37 : vector<80x128xf32>
    %39 = vector.extract_strided_slice %33 {offsets = [0, 1], sizes = [80, 1], strides = [1, 1]} : vector<80x3xf32> to vector<80x1xf32>
    %40 = vector.extract_strided_slice %1 {offsets = [1, 0], sizes = [1, 128], strides = [1, 1]} : vector<3x128xf32> to vector<1x128xf32>
    %41 = vector.broadcast %39 : vector<80x1xf32> to vector<80x128xf32>
    %42 = vector.broadcast %40 : vector<1x128xf32> to vector<80x128xf32>
    %43 = arith.mulf %41, %42 : vector<80x128xf32>
    %44 = arith.addf %38, %43 : vector<80x128xf32>
    %45 = vector.extract_strided_slice %33 {offsets = [0, 2], sizes = [80, 1], strides = [1, 1]} : vector<80x3xf32> to vector<80x1xf32>
    %46 = vector.extract_strided_slice %1 {offsets = [2, 0], sizes = [1, 128], strides = [1, 1]} : vector<3x128xf32> to vector<1x128xf32>
    %47 = vector.broadcast %45 : vector<80x1xf32> to vector<80x128xf32>
    %48 = vector.broadcast %46 : vector<1x128xf32> to vector<80x128xf32>
    %49 = arith.mulf %47, %48 : vector<80x128xf32>
    %50 = arith.addf %44, %49 : vector<80x128xf32>
    %c0_14 = arith.constant 0 : index
    %c0_15 = arith.constant 0 : index
    %51 = vector.load %arg7[%c0_14, %c0_15] : memref<80x1xf32, #tpu.memory_space<vmem>>, vector<80x1xf32>
    %52 = vector.broadcast %51 : vector<80x1xf32> to vector<80x128xf32>
    %53 = arith.addf %50, %52 : vector<80x128xf32>
    %54 = arith.addf %32, %53 : vector<80x128xf32>
    %cst_16 = arith.constant 0.000000e+00 : f32
    %55 = vector.broadcast %cst_16 : f32 to vector<80x128xf32>
    %56 = arith.maximumf %54, %55 : vector<80x128xf32>
    %57 = tpu.iota {dimensions = array<i32: 1>} : vector<80x128xi32>
    %c1_i32 = arith.constant 1 : i32
    %58 = vector.broadcast %c1_i32 : i32 to vector<80x128xi32>
    %59 = arith.cmpi sge, %57, %58 : vector<80x128xi32>
    %c0_17 = arith.constant 0 : index
    %c0_18 = arith.constant 0 : index
    %c0_19 = arith.constant 0 : index
    %60 = vector.load %arg8[%c0_17, %c0_18, %c0_19] : memref<6x160x80xbf16, #tpu.memory_space<vmem>>, vector<1x160x80xbf16>
    %61 = vector.shape_cast %60 : vector<1x160x80xbf16> to vector<160x80xbf16>
    %62 = arith.truncf %56 : vector<80x128xf32> to vector<80x128xbf16>
    %cst_20 = arith.constant dense<0.000000e+00> : vector<160x128xf32>
    %63 = tpu.matmul %61, %62, %cst_20 {dimension_numbers = #tpu.dot_dimension_numbers<[1], [0], [0], [1], [0, 0, 1, 1], [], []>} : vector<160x80xbf16>, vector<80x128xbf16>, vector<160x128xf32> -> vector<160x128xf32>
    %64 = vector.extract_strided_slice %63 {offsets = [0, 0], sizes = [80, 128], strides = [1, 1]} : vector<160x128xf32> to vector<80x128xf32>
    %c1_i32_21 = arith.constant 1 : i32
    %65 = tpu.dynamic_rotate %64 by %c1_i32_21 dim 1 : vector<80x128xf32>, i32 -> vector<80x128xf32>
    %cst_22 = arith.constant 0.000000e+00 : f32
    %66 = vector.broadcast %cst_22 : f32 to vector<80x128xf32>
    %67 = arith.select %59, %65, %66 : vector<80x128xi1>, vector<80x128xf32>
    %68 = vector.extract_strided_slice %63 {offsets = [80, 0], sizes = [80, 128], strides = [1, 1]} : vector<160x128xf32> to vector<80x128xf32>
    %69 = arith.addf %67, %68 : vector<80x128xf32>
    %c0_23 = arith.constant 0 : index
    %c0_24 = arith.constant 0 : index
    %c0_25 = arith.constant 0 : index
    %70 = vector.load %arg9[%c0_23, %c0_24, %c0_25] : memref<6x80x1xf32, #tpu.memory_space<vmem>>, vector<1x80x1xf32>
    %71 = vector.shape_cast %70 : vector<1x80x1xf32> to vector<80x1xf32>
    %72 = vector.broadcast %71 : vector<80x1xf32> to vector<80x128xf32>
    %73 = arith.addf %69, %72 : vector<80x128xf32>
    %cst_26 = arith.constant 0.000000e+00 : f32
    %74 = vector.broadcast %cst_26 : f32 to vector<80x128xf32>
    %75 = arith.maximumf %73, %74 : vector<80x128xf32>
    %c0_27 = arith.constant 0 : index
    %c0_28 = arith.constant 0 : index
    %c0_29 = arith.constant 0 : index
    %76 = vector.load %arg10[%c0_27, %c0_28, %c0_29] : memref<6x160x80xbf16, #tpu.memory_space<vmem>>, vector<1x160x80xbf16>
    %77 = vector.shape_cast %76 : vector<1x160x80xbf16> to vector<160x80xbf16>
    %78 = arith.truncf %75 : vector<80x128xf32> to vector<80x128xbf16>
    %cst_30 = arith.constant dense<0.000000e+00> : vector<160x128xf32>
    %79 = tpu.matmul %77, %78, %cst_30 {dimension_numbers = #tpu.dot_dimension_numbers<[1], [0], [0], [1], [0, 0, 1, 1], [], []>} : vector<160x80xbf16>, vector<80x128xbf16>, vector<160x128xf32> -> vector<160x128xf32>
    %80 = vector.extract_strided_slice %79 {offsets = [0, 0], sizes = [80, 128], strides = [1, 1]} : vector<160x128xf32> to vector<80x128xf32>
    %c1_i32_31 = arith.constant 1 : i32
    %81 = tpu.dynamic_rotate %80 by %c1_i32_31 dim 1 : vector<80x128xf32>, i32 -> vector<80x128xf32>
    %cst_32 = arith.constant 0.000000e+00 : f32
    %82 = vector.broadcast %cst_32 : f32 to vector<80x128xf32>
    %83 = arith.select %59, %81, %82 : vector<80x128xi1>, vector<80x128xf32>
    %84 = vector.extract_strided_slice %79 {offsets = [80, 0], sizes = [80, 128], strides = [1, 1]} : vector<160x128xf32> to vector<80x128xf32>
    %85 = arith.addf %83, %84 : vector<80x128xf32>
    %c0_33 = arith.constant 0 : index
    %c0_34 = arith.constant 0 : index
    %c0_35 = arith.constant 0 : index
    %86 = vector.load %arg11[%c0_33, %c0_34, %c0_35] : memref<6x80x1xf32, #tpu.memory_space<vmem>>, vector<1x80x1xf32>
    %87 = vector.shape_cast %86 : vector<1x80x1xf32> to vector<80x1xf32>
    %88 = vector.broadcast %87 : vector<80x1xf32> to vector<80x128xf32>
    %89 = arith.addf %85, %88 : vector<80x128xf32>
    %cst_36 = arith.constant 0.000000e+00 : f32
    %90 = vector.broadcast %cst_36 : f32 to vector<80x128xf32>
    %91 = arith.maximumf %89, %90 : vector<80x128xf32>
    %92 = arith.addf %32, %91 : vector<80x128xf32>
    %93 = arith.addf %91, %56 : vector<80x128xf32>
    %cst_37 = arith.constant 0.000000e+00 : f32
    %94 = vector.broadcast %cst_37 : f32 to vector<80x128xf32>
    %95 = arith.maximumf %93, %94 : vector<80x128xf32>
    %c2_i32 = arith.constant 2 : i32
    %96 = vector.broadcast %c2_i32 : i32 to vector<80x128xi32>
    %97 = arith.cmpi sge, %57, %96 : vector<80x128xi32>
    %c1 = arith.constant 1 : index
    %c0_38 = arith.constant 0 : index
    %c0_39 = arith.constant 0 : index
    %98 = vector.load %arg8[%c1, %c0_38, %c0_39] : memref<6x160x80xbf16, #tpu.memory_space<vmem>>, vector<1x160x80xbf16>
    %99 = vector.shape_cast %98 : vector<1x160x80xbf16> to vector<160x80xbf16>
    %100 = arith.truncf %95 : vector<80x128xf32> to vector<80x128xbf16>
    %cst_40 = arith.constant dense<0.000000e+00> : vector<160x128xf32>
    %101 = tpu.matmul %99, %100, %cst_40 {dimension_numbers = #tpu.dot_dimension_numbers<[1], [0], [0], [1], [0, 0, 1, 1], [], []>} : vector<160x80xbf16>, vector<80x128xbf16>, vector<160x128xf32> -> vector<160x128xf32>
    %102 = vector.extract_strided_slice %101 {offsets = [0, 0], sizes = [80, 128], strides = [1, 1]} : vector<160x128xf32> to vector<80x128xf32>
    %c2_i32_41 = arith.constant 2 : i32
    %103 = tpu.dynamic_rotate %102 by %c2_i32_41 dim 1 : vector<80x128xf32>, i32 -> vector<80x128xf32>
    %cst_42 = arith.constant 0.000000e+00 : f32
    %104 = vector.broadcast %cst_42 : f32 to vector<80x128xf32>
    %105 = arith.select %97, %103, %104 : vector<80x128xi1>, vector<80x128xf32>
    %106 = vector.extract_strided_slice %101 {offsets = [80, 0], sizes = [80, 128], strides = [1, 1]} : vector<160x128xf32> to vector<80x128xf32>
    %107 = arith.addf %105, %106 : vector<80x128xf32>
    %c1_43 = arith.constant 1 : index
    %c0_44 = arith.constant 0 : index
    %c0_45 = arith.constant 0 : index
    %108 = vector.load %arg9[%c1_43, %c0_44, %c0_45] : memref<6x80x1xf32, #tpu.memory_space<vmem>>, vector<1x80x1xf32>
    %109 = vector.shape_cast %108 : vector<1x80x1xf32> to vector<80x1xf32>
    %110 = vector.broadcast %109 : vector<80x1xf32> to vector<80x128xf32>
    %111 = arith.addf %107, %110 : vector<80x128xf32>
    %cst_46 = arith.constant 0.000000e+00 : f32
    %112 = vector.broadcast %cst_46 : f32 to vector<80x128xf32>
    %113 = arith.maximumf %111, %112 : vector<80x128xf32>
    %c1_47 = arith.constant 1 : index
    %c0_48 = arith.constant 0 : index
    %c0_49 = arith.constant 0 : index
    %114 = vector.load %arg10[%c1_47, %c0_48, %c0_49] : memref<6x160x80xbf16, #tpu.memory_space<vmem>>, vector<1x160x80xbf16>
    %115 = vector.shape_cast %114 : vector<1x160x80xbf16> to vector<160x80xbf16>
    %116 = arith.truncf %113 : vector<80x128xf32> to vector<80x128xbf16>
    %cst_50 = arith.constant dense<0.000000e+00> : vector<160x128xf32>
    %117 = tpu.matmul %115, %116, %cst_50 {dimension_numbers = #tpu.dot_dimension_numbers<[1], [0], [0], [1], [0, 0, 1, 1], [], []>} : vector<160x80xbf16>, vector<80x128xbf16>, vector<160x128xf32> -> vector<160x128xf32>
    %118 = vector.extract_strided_slice %117 {offsets = [0, 0], sizes = [80, 128], strides = [1, 1]} : vector<160x128xf32> to vector<80x128xf32>
    %c2_i32_51 = arith.constant 2 : i32
    %119 = tpu.dynamic_rotate %118 by %c2_i32_51 dim 1 : vector<80x128xf32>, i32 -> vector<80x128xf32>
    %cst_52 = arith.constant 0.000000e+00 : f32
    %120 = vector.broadcast %cst_52 : f32 to vector<80x128xf32>
    %121 = arith.select %97, %119, %120 : vector<80x128xi1>, vector<80x128xf32>
    %122 = vector.extract_strided_slice %117 {offsets = [80, 0], sizes = [80, 128], strides = [1, 1]} : vector<160x128xf32> to vector<80x128xf32>
    %123 = arith.addf %121, %122 : vector<80x128xf32>
    %c1_53 = arith.constant 1 : index
    %c0_54 = arith.constant 0 : index
    %c0_55 = arith.constant 0 : index
    %124 = vector.load %arg11[%c1_53, %c0_54, %c0_55] : memref<6x80x1xf32, #tpu.memory_space<vmem>>, vector<1x80x1xf32>
    %125 = vector.shape_cast %124 : vector<1x80x1xf32> to vector<80x1xf32>
    %126 = vector.broadcast %125 : vector<80x1xf32> to vector<80x128xf32>
    %127 = arith.addf %123, %126 : vector<80x128xf32>
    %cst_56 = arith.constant 0.000000e+00 : f32
    %128 = vector.broadcast %cst_56 : f32 to vector<80x128xf32>
    %129 = arith.maximumf %127, %128 : vector<80x128xf32>
    %130 = arith.addf %92, %129 : vector<80x128xf32>
    %131 = arith.addf %129, %95 : vector<80x128xf32>
    %cst_57 = arith.constant 0.000000e+00 : f32
    %132 = vector.broadcast %cst_57 : f32 to vector<80x128xf32>
    %133 = arith.maximumf %131, %132 : vector<80x128xf32>
    %c4_i32 = arith.constant 4 : i32
    %134 = vector.broadcast %c4_i32 : i32 to vector<80x128xi32>
    %135 = arith.cmpi sge, %57, %134 : vector<80x128xi32>
    %c2 = arith.constant 2 : index
    %c0_58 = arith.constant 0 : index
    %c0_59 = arith.constant 0 : index
    %136 = vector.load %arg8[%c2, %c0_58, %c0_59] : memref<6x160x80xbf16, #tpu.memory_space<vmem>>, vector<1x160x80xbf16>
    %137 = vector.shape_cast %136 : vector<1x160x80xbf16> to vector<160x80xbf16>
    %138 = arith.truncf %133 : vector<80x128xf32> to vector<80x128xbf16>
    %cst_60 = arith.constant dense<0.000000e+00> : vector<160x128xf32>
    %139 = tpu.matmul %137, %138, %cst_60 {dimension_numbers = #tpu.dot_dimension_numbers<[1], [0], [0], [1], [0, 0, 1, 1], [], []>} : vector<160x80xbf16>, vector<80x128xbf16>, vector<160x128xf32> -> vector<160x128xf32>
    %140 = vector.extract_strided_slice %139 {offsets = [0, 0], sizes = [80, 128], strides = [1, 1]} : vector<160x128xf32> to vector<80x128xf32>
    %c4_i32_61 = arith.constant 4 : i32
    %141 = tpu.dynamic_rotate %140 by %c4_i32_61 dim 1 : vector<80x128xf32>, i32 -> vector<80x128xf32>
    %cst_62 = arith.constant 0.000000e+00 : f32
    %142 = vector.broadcast %cst_62 : f32 to vector<80x128xf32>
    %143 = arith.select %135, %141, %142 : vector<80x128xi1>, vector<80x128xf32>
    %144 = vector.extract_strided_slice %139 {offsets = [80, 0], sizes = [80, 128], strides = [1, 1]} : vector<160x128xf32> to vector<80x128xf32>
    %145 = arith.addf %143, %144 : vector<80x128xf32>
    %c2_63 = arith.constant 2 : index
    %c0_64 = arith.constant 0 : index
    %c0_65 = arith.constant 0 : index
    %146 = vector.load %arg9[%c2_63, %c0_64, %c0_65] : memref<6x80x1xf32, #tpu.memory_space<vmem>>, vector<1x80x1xf32>
    %147 = vector.shape_cast %146 : vector<1x80x1xf32> to vector<80x1xf32>
    %148 = vector.broadcast %147 : vector<80x1xf32> to vector<80x128xf32>
    %149 = arith.addf %145, %148 : vector<80x128xf32>
    %cst_66 = arith.constant 0.000000e+00 : f32
    %150 = vector.broadcast %cst_66 : f32 to vector<80x128xf32>
    %151 = arith.maximumf %149, %150 : vector<80x128xf32>
    %c2_67 = arith.constant 2 : index
    %c0_68 = arith.constant 0 : index
    %c0_69 = arith.constant 0 : index
    %152 = vector.load %arg10[%c2_67, %c0_68, %c0_69] : memref<6x160x80xbf16, #tpu.memory_space<vmem>>, vector<1x160x80xbf16>
    %153 = vector.shape_cast %152 : vector<1x160x80xbf16> to vector<160x80xbf16>
    %154 = arith.truncf %151 : vector<80x128xf32> to vector<80x128xbf16>
    %cst_70 = arith.constant dense<0.000000e+00> : vector<160x128xf32>
    %155 = tpu.matmul %153, %154, %cst_70 {dimension_numbers = #tpu.dot_dimension_numbers<[1], [0], [0], [1], [0, 0, 1, 1], [], []>} : vector<160x80xbf16>, vector<80x128xbf16>, vector<160x128xf32> -> vector<160x128xf32>
    %156 = vector.extract_strided_slice %155 {offsets = [0, 0], sizes = [80, 128], strides = [1, 1]} : vector<160x128xf32> to vector<80x128xf32>
    %c4_i32_71 = arith.constant 4 : i32
    %157 = tpu.dynamic_rotate %156 by %c4_i32_71 dim 1 : vector<80x128xf32>, i32 -> vector<80x128xf32>
    %cst_72 = arith.constant 0.000000e+00 : f32
    %158 = vector.broadcast %cst_72 : f32 to vector<80x128xf32>
    %159 = arith.select %135, %157, %158 : vector<80x128xi1>, vector<80x128xf32>
    %160 = vector.extract_strided_slice %155 {offsets = [80, 0], sizes = [80, 128], strides = [1, 1]} : vector<160x128xf32> to vector<80x128xf32>
    %161 = arith.addf %159, %160 : vector<80x128xf32>
    %c2_73 = arith.constant 2 : index
    %c0_74 = arith.constant 0 : index
    %c0_75 = arith.constant 0 : index
    %162 = vector.load %arg11[%c2_73, %c0_74, %c0_75] : memref<6x80x1xf32, #tpu.memory_space<vmem>>, vector<1x80x1xf32>
    %163 = vector.shape_cast %162 : vector<1x80x1xf32> to vector<80x1xf32>
    %164 = vector.broadcast %163 : vector<80x1xf32> to vector<80x128xf32>
    %165 = arith.addf %161, %164 : vector<80x128xf32>
    %cst_76 = arith.constant 0.000000e+00 : f32
    %166 = vector.broadcast %cst_76 : f32 to vector<80x128xf32>
    %167 = arith.maximumf %165, %166 : vector<80x128xf32>
    %168 = arith.addf %130, %167 : vector<80x128xf32>
    %169 = arith.addf %167, %133 : vector<80x128xf32>
    %cst_77 = arith.constant 0.000000e+00 : f32
    %170 = vector.broadcast %cst_77 : f32 to vector<80x128xf32>
    %171 = arith.maximumf %169, %170 : vector<80x128xf32>
    %c8_i32 = arith.constant 8 : i32
    %172 = vector.broadcast %c8_i32 : i32 to vector<80x128xi32>
    %173 = arith.cmpi sge, %57, %172 : vector<80x128xi32>
    %c3 = arith.constant 3 : index
    %c0_78 = arith.constant 0 : index
    %c0_79 = arith.constant 0 : index
    %174 = vector.load %arg8[%c3, %c0_78, %c0_79] : memref<6x160x80xbf16, #tpu.memory_space<vmem>>, vector<1x160x80xbf16>
    %175 = vector.shape_cast %174 : vector<1x160x80xbf16> to vector<160x80xbf16>
    %176 = arith.truncf %171 : vector<80x128xf32> to vector<80x128xbf16>
    %cst_80 = arith.constant dense<0.000000e+00> : vector<160x128xf32>
    %177 = tpu.matmul %175, %176, %cst_80 {dimension_numbers = #tpu.dot_dimension_numbers<[1], [0], [0], [1], [0, 0, 1, 1], [], []>} : vector<160x80xbf16>, vector<80x128xbf16>, vector<160x128xf32> -> vector<160x128xf32>
    %178 = vector.extract_strided_slice %177 {offsets = [0, 0], sizes = [80, 128], strides = [1, 1]} : vector<160x128xf32> to vector<80x128xf32>
    %c8_i32_81 = arith.constant 8 : i32
    %179 = tpu.dynamic_rotate %178 by %c8_i32_81 dim 1 : vector<80x128xf32>, i32 -> vector<80x128xf32>
    %cst_82 = arith.constant 0.000000e+00 : f32
    %180 = vector.broadcast %cst_82 : f32 to vector<80x128xf32>
    %181 = arith.select %173, %179, %180 : vector<80x128xi1>, vector<80x128xf32>
    %182 = vector.extract_strided_slice %177 {offsets = [80, 0], sizes = [80, 128], strides = [1, 1]} : vector<160x128xf32> to vector<80x128xf32>
    %183 = arith.addf %181, %182 : vector<80x128xf32>
    %c3_83 = arith.constant 3 : index
    %c0_84 = arith.constant 0 : index
    %c0_85 = arith.constant 0 : index
    %184 = vector.load %arg9[%c3_83, %c0_84, %c0_85] : memref<6x80x1xf32, #tpu.memory_space<vmem>>, vector<1x80x1xf32>
    %185 = vector.shape_cast %184 : vector<1x80x1xf32> to vector<80x1xf32>
    %186 = vector.broadcast %185 : vector<80x1xf32> to vector<80x128xf32>
    %187 = arith.addf %183, %186 : vector<80x128xf32>
    %cst_86 = arith.constant 0.000000e+00 : f32
    %188 = vector.broadcast %cst_86 : f32 to vector<80x128xf32>
    %189 = arith.maximumf %187, %188 : vector<80x128xf32>
    %c3_87 = arith.constant 3 : index
    %c0_88 = arith.constant 0 : index
    %c0_89 = arith.constant 0 : index
    %190 = vector.load %arg10[%c3_87, %c0_88, %c0_89] : memref<6x160x80xbf16, #tpu.memory_space<vmem>>, vector<1x160x80xbf16>
    %191 = vector.shape_cast %190 : vector<1x160x80xbf16> to vector<160x80xbf16>
    %192 = arith.truncf %189 : vector<80x128xf32> to vector<80x128xbf16>
    %cst_90 = arith.constant dense<0.000000e+00> : vector<160x128xf32>
    %193 = tpu.matmul %191, %192, %cst_90 {dimension_numbers = #tpu.dot_dimension_numbers<[1], [0], [0], [1], [0, 0, 1, 1], [], []>} : vector<160x80xbf16>, vector<80x128xbf16>, vector<160x128xf32> -> vector<160x128xf32>
    %194 = vector.extract_strided_slice %193 {offsets = [0, 0], sizes = [80, 128], strides = [1, 1]} : vector<160x128xf32> to vector<80x128xf32>
    %c8_i32_91 = arith.constant 8 : i32
    %195 = tpu.dynamic_rotate %194 by %c8_i32_91 dim 1 : vector<80x128xf32>, i32 -> vector<80x128xf32>
    %cst_92 = arith.constant 0.000000e+00 : f32
    %196 = vector.broadcast %cst_92 : f32 to vector<80x128xf32>
    %197 = arith.select %173, %195, %196 : vector<80x128xi1>, vector<80x128xf32>
    %198 = vector.extract_strided_slice %193 {offsets = [80, 0], sizes = [80, 128], strides = [1, 1]} : vector<160x128xf32> to vector<80x128xf32>
    %199 = arith.addf %197, %198 : vector<80x128xf32>
    %c3_93 = arith.constant 3 : index
    %c0_94 = arith.constant 0 : index
    %c0_95 = arith.constant 0 : index
    %200 = vector.load %arg11[%c3_93, %c0_94, %c0_95] : memref<6x80x1xf32, #tpu.memory_space<vmem>>, vector<1x80x1xf32>
    %201 = vector.shape_cast %200 : vector<1x80x1xf32> to vector<80x1xf32>
    %202 = vector.broadcast %201 : vector<80x1xf32> to vector<80x128xf32>
    %203 = arith.addf %199, %202 : vector<80x128xf32>
    %cst_96 = arith.constant 0.000000e+00 : f32
    %204 = vector.broadcast %cst_96 : f32 to vector<80x128xf32>
    %205 = arith.maximumf %203, %204 : vector<80x128xf32>
    %206 = arith.addf %168, %205 : vector<80x128xf32>
    %207 = arith.addf %205, %171 : vector<80x128xf32>
    %cst_97 = arith.constant 0.000000e+00 : f32
    %208 = vector.broadcast %cst_97 : f32 to vector<80x128xf32>
    %209 = arith.maximumf %207, %208 : vector<80x128xf32>
    %c16_i32 = arith.constant 16 : i32
    %210 = vector.broadcast %c16_i32 : i32 to vector<80x128xi32>
    %211 = arith.cmpi sge, %57, %210 : vector<80x128xi32>
    %c4 = arith.constant 4 : index
    %c0_98 = arith.constant 0 : index
    %c0_99 = arith.constant 0 : index
    %212 = vector.load %arg8[%c4, %c0_98, %c0_99] : memref<6x160x80xbf16, #tpu.memory_space<vmem>>, vector<1x160x80xbf16>
    %213 = vector.shape_cast %212 : vector<1x160x80xbf16> to vector<160x80xbf16>
    %214 = arith.truncf %209 : vector<80x128xf32> to vector<80x128xbf16>
    %cst_100 = arith.constant dense<0.000000e+00> : vector<160x128xf32>
    %215 = tpu.matmul %213, %214, %cst_100 {dimension_numbers = #tpu.dot_dimension_numbers<[1], [0], [0], [1], [0, 0, 1, 1], [], []>} : vector<160x80xbf16>, vector<80x128xbf16>, vector<160x128xf32> -> vector<160x128xf32>
    %216 = vector.extract_strided_slice %215 {offsets = [0, 0], sizes = [80, 128], strides = [1, 1]} : vector<160x128xf32> to vector<80x128xf32>
    %c16_i32_101 = arith.constant 16 : i32
    %217 = tpu.dynamic_rotate %216 by %c16_i32_101 dim 1 : vector<80x128xf32>, i32 -> vector<80x128xf32>
    %cst_102 = arith.constant 0.000000e+00 : f32
    %218 = vector.broadcast %cst_102 : f32 to vector<80x128xf32>
    %219 = arith.select %211, %217, %218 : vector<80x128xi1>, vector<80x128xf32>
    %220 = vector.extract_strided_slice %215 {offsets = [80, 0], sizes = [80, 128], strides = [1, 1]} : vector<160x128xf32> to vector<80x128xf32>
    %221 = arith.addf %219, %220 : vector<80x128xf32>
    %c4_103 = arith.constant 4 : index
    %c0_104 = arith.constant 0 : index
    %c0_105 = arith.constant 0 : index
    %222 = vector.load %arg9[%c4_103, %c0_104, %c0_105] : memref<6x80x1xf32, #tpu.memory_space<vmem>>, vector<1x80x1xf32>
    %223 = vector.shape_cast %222 : vector<1x80x1xf32> to vector<80x1xf32>
    %224 = vector.broadcast %223 : vector<80x1xf32> to vector<80x128xf32>
    %225 = arith.addf %221, %224 : vector<80x128xf32>
    %cst_106 = arith.constant 0.000000e+00 : f32
    %226 = vector.broadcast %cst_106 : f32 to vector<80x128xf32>
    %227 = arith.maximumf %225, %226 : vector<80x128xf32>
    %c4_107 = arith.constant 4 : index
    %c0_108 = arith.constant 0 : index
    %c0_109 = arith.constant 0 : index
    %228 = vector.load %arg10[%c4_107, %c0_108, %c0_109] : memref<6x160x80xbf16, #tpu.memory_space<vmem>>, vector<1x160x80xbf16>
    %229 = vector.shape_cast %228 : vector<1x160x80xbf16> to vector<160x80xbf16>
    %230 = arith.truncf %227 : vector<80x128xf32> to vector<80x128xbf16>
    %cst_110 = arith.constant dense<0.000000e+00> : vector<160x128xf32>
    %231 = tpu.matmul %229, %230, %cst_110 {dimension_numbers = #tpu.dot_dimension_numbers<[1], [0], [0], [1], [0, 0, 1, 1], [], []>} : vector<160x80xbf16>, vector<80x128xbf16>, vector<160x128xf32> -> vector<160x128xf32>
    %232 = vector.extract_strided_slice %231 {offsets = [0, 0], sizes = [80, 128], strides = [1, 1]} : vector<160x128xf32> to vector<80x128xf32>
    %c16_i32_111 = arith.constant 16 : i32
    %233 = tpu.dynamic_rotate %232 by %c16_i32_111 dim 1 : vector<80x128xf32>, i32 -> vector<80x128xf32>
    %cst_112 = arith.constant 0.000000e+00 : f32
    %234 = vector.broadcast %cst_112 : f32 to vector<80x128xf32>
    %235 = arith.select %211, %233, %234 : vector<80x128xi1>, vector<80x128xf32>
    %236 = vector.extract_strided_slice %231 {offsets = [80, 0], sizes = [80, 128], strides = [1, 1]} : vector<160x128xf32> to vector<80x128xf32>
    %237 = arith.addf %235, %236 : vector<80x128xf32>
    %c4_113 = arith.constant 4 : index
    %c0_114 = arith.constant 0 : index
    %c0_115 = arith.constant 0 : index
    %238 = vector.load %arg11[%c4_113, %c0_114, %c0_115] : memref<6x80x1xf32, #tpu.memory_space<vmem>>, vector<1x80x1xf32>
    %239 = vector.shape_cast %238 : vector<1x80x1xf32> to vector<80x1xf32>
    %240 = vector.broadcast %239 : vector<80x1xf32> to vector<80x128xf32>
    %241 = arith.addf %237, %240 : vector<80x128xf32>
    %cst_116 = arith.constant 0.000000e+00 : f32
    %242 = vector.broadcast %cst_116 : f32 to vector<80x128xf32>
    %243 = arith.maximumf %241, %242 : vector<80x128xf32>
    %244 = arith.addf %206, %243 : vector<80x128xf32>
    %245 = arith.addf %243, %209 : vector<80x128xf32>
    %cst_117 = arith.constant 0.000000e+00 : f32
    %246 = vector.broadcast %cst_117 : f32 to vector<80x128xf32>
    %247 = arith.maximumf %245, %246 : vector<80x128xf32>
    %c32_i32 = arith.constant 32 : i32
    %248 = vector.broadcast %c32_i32 : i32 to vector<80x128xi32>
    %249 = arith.cmpi sge, %57, %248 : vector<80x128xi32>
    %c5 = arith.constant 5 : index
    %c0_118 = arith.constant 0 : index
    %c0_119 = arith.constant 0 : index
    %250 = vector.load %arg8[%c5, %c0_118, %c0_119] : memref<6x160x80xbf16, #tpu.memory_space<vmem>>, vector<1x160x80xbf16>
    %251 = vector.shape_cast %250 : vector<1x160x80xbf16> to vector<160x80xbf16>
    %252 = arith.truncf %247 : vector<80x128xf32> to vector<80x128xbf16>
    %cst_120 = arith.constant dense<0.000000e+00> : vector<160x128xf32>
    %253 = tpu.matmul %251, %252, %cst_120 {dimension_numbers = #tpu.dot_dimension_numbers<[1], [0], [0], [1], [0, 0, 1, 1], [], []>} : vector<160x80xbf16>, vector<80x128xbf16>, vector<160x128xf32> -> vector<160x128xf32>
    %254 = vector.extract_strided_slice %253 {offsets = [0, 0], sizes = [80, 128], strides = [1, 1]} : vector<160x128xf32> to vector<80x128xf32>
    %c32_i32_121 = arith.constant 32 : i32
    %255 = tpu.dynamic_rotate %254 by %c32_i32_121 dim 1 : vector<80x128xf32>, i32 -> vector<80x128xf32>
    %cst_122 = arith.constant 0.000000e+00 : f32
    %256 = vector.broadcast %cst_122 : f32 to vector<80x128xf32>
    %257 = arith.select %249, %255, %256 : vector<80x128xi1>, vector<80x128xf32>
    %258 = vector.extract_strided_slice %253 {offsets = [80, 0], sizes = [80, 128], strides = [1, 1]} : vector<160x128xf32> to vector<80x128xf32>
    %259 = arith.addf %257, %258 : vector<80x128xf32>
    %c5_123 = arith.constant 5 : index
    %c0_124 = arith.constant 0 : index
    %c0_125 = arith.constant 0 : index
    %260 = vector.load %arg9[%c5_123, %c0_124, %c0_125] : memref<6x80x1xf32, #tpu.memory_space<vmem>>, vector<1x80x1xf32>
    %261 = vector.shape_cast %260 : vector<1x80x1xf32> to vector<80x1xf32>
    %262 = vector.broadcast %261 : vector<80x1xf32> to vector<80x128xf32>
    %263 = arith.addf %259, %262 : vector<80x128xf32>
    %cst_126 = arith.constant 0.000000e+00 : f32
    %264 = vector.broadcast %cst_126 : f32 to vector<80x128xf32>
    %265 = arith.maximumf %263, %264 : vector<80x128xf32>
    %c5_127 = arith.constant 5 : index
    %c0_128 = arith.constant 0 : index
    %c0_129 = arith.constant 0 : index
    %266 = vector.load %arg10[%c5_127, %c0_128, %c0_129] : memref<6x160x80xbf16, #tpu.memory_space<vmem>>, vector<1x160x80xbf16>
    %267 = vector.shape_cast %266 : vector<1x160x80xbf16> to vector<160x80xbf16>
    %268 = arith.truncf %265 : vector<80x128xf32> to vector<80x128xbf16>
    %cst_130 = arith.constant dense<0.000000e+00> : vector<160x128xf32>
    %269 = tpu.matmul %267, %268, %cst_130 {dimension_numbers = #tpu.dot_dimension_numbers<[1], [0], [0], [1], [0, 0, 1, 1], [], []>} : vector<160x80xbf16>, vector<80x128xbf16>, vector<160x128xf32> -> vector<160x128xf32>
    %270 = vector.extract_strided_slice %269 {offsets = [0, 0], sizes = [80, 128], strides = [1, 1]} : vector<160x128xf32> to vector<80x128xf32>
    %c32_i32_131 = arith.constant 32 : i32
    %271 = tpu.dynamic_rotate %270 by %c32_i32_131 dim 1 : vector<80x128xf32>, i32 -> vector<80x128xf32>
    %cst_132 = arith.constant 0.000000e+00 : f32
    %272 = vector.broadcast %cst_132 : f32 to vector<80x128xf32>
    %273 = arith.select %249, %271, %272 : vector<80x128xi1>, vector<80x128xf32>
    %274 = vector.extract_strided_slice %269 {offsets = [80, 0], sizes = [80, 128], strides = [1, 1]} : vector<160x128xf32> to vector<80x128xf32>
    %275 = arith.addf %273, %274 : vector<80x128xf32>
    %c5_133 = arith.constant 5 : index
    %c0_134 = arith.constant 0 : index
    %c0_135 = arith.constant 0 : index
    %276 = vector.load %arg11[%c5_133, %c0_134, %c0_135] : memref<6x80x1xf32, #tpu.memory_space<vmem>>, vector<1x80x1xf32>
    %277 = vector.shape_cast %276 : vector<1x80x1xf32> to vector<80x1xf32>
    %278 = vector.broadcast %277 : vector<80x1xf32> to vector<80x128xf32>
    %279 = arith.addf %275, %278 : vector<80x128xf32>
    %cst_136 = arith.constant 0.000000e+00 : f32
    %280 = vector.broadcast %cst_136 : f32 to vector<80x128xf32>
    %281 = arith.maximumf %279, %280 : vector<80x128xf32>
    %282 = arith.addf %244, %281 : vector<80x128xf32>
    %283 = arith.addf %281, %247 : vector<80x128xf32>
    %cst_137 = arith.constant 0.000000e+00 : f32
    %284 = vector.broadcast %cst_137 : f32 to vector<80x128xf32>
    %285 = arith.maximumf %283, %284 : vector<80x128xf32>
    %286 = arith.addf %285, %282 : vector<80x128xf32>
    %287 = arith.truncf %286 : vector<80x128xf32> to vector<80x128xbf16>
    %c0_138 = arith.constant 0 : index
    %c0_139 = arith.constant 0 : index
    %288 = vector.load %arg12[%c0_138, %c0_139] : memref<1x80xbf16, #tpu.memory_space<vmem>>, vector<1x80xbf16>
    %cst_140 = arith.constant dense<0.000000e+00> : vector<1x128xf32>
    %289 = tpu.matmul %288, %287, %cst_140 {dimension_numbers = #tpu.dot_dimension_numbers<[1], [0], [0], [1], [0, 0, 1, 1], [], []>} : vector<1x80xbf16>, vector<80x128xbf16>, vector<1x128xf32> -> vector<1x128xf32>
    %c0_141 = arith.constant 0 : index
    %c0_142 = arith.constant 0 : index
    %290 = vector.load %arg13[%c0_141, %c0_142] : memref<1x1xf32, #tpu.memory_space<vmem>>, vector<1x1xf32>
    %291 = vector.broadcast %290 : vector<1x1xf32> to vector<1x128xf32>
    %292 = arith.addf %289, %291 : vector<1x128xf32>
    %c0_143 = arith.constant 0 : index
    %c0_144 = arith.constant 0 : index
    %c0_145 = arith.constant 0 : index
    %293 = vector.load %arg14[%c0_143, %c0_144, %c0_145] : memref<1x1x128xf32, #tpu.memory_space<vmem>>, vector<1x1x128xf32>
    %294 = vector.shape_cast %293 : vector<1x1x128xf32> to vector<1x128xf32>
    %295 = vector.shape_cast %292 : vector<1x128xf32> to vector<1x1x128xf32>
    tpu.vector_store %arg14[%c0_143, %c0_144, %c0_145], %295 {strides = array<i32>} : memref<1x1x128xf32, #tpu.memory_space<vmem>>, vector<1x1x128xf32>,
    return
  }
  func.func @transform_0(%arg0: i32) -> (i32, i32, i32) {
    %c0_i32 = arith.constant 0 : i32
    %c0_i32_0 = arith.constant 0 : i32
    %c0_i32_1 = arith.constant 0 : i32
    return %arg0, %c0_i32, %c0_i32_0 : i32, i32, i32
  }
  func.func @transform_1(%arg0: i32) -> (i32, i32) {
    %c0_i32 = arith.constant 0 : i32
    %c0_i32_0 = arith.constant 0 : i32
    %c0_i32_1 = arith.constant 0 : i32
    return %c0_i32, %c0_i32_0 : i32, i32
  }
  func.func @transform_2(%arg0: i32) -> (i32, i32) {
    %c0_i32 = arith.constant 0 : i32
    %c0_i32_0 = arith.constant 0 : i32
    %c0_i32_1 = arith.constant 0 : i32
    return %c0_i32, %c0_i32_0 : i32, i32
  }
  func.func @transform_3(%arg0: i32) -> (i32, i32) {
    %c0_i32 = arith.constant 0 : i32
    %c0_i32_0 = arith.constant 0 : i32
    %c0_i32_1 = arith.constant 0 : i32
    return %c0_i32, %c0_i32_0 : i32, i32
  }
  func.func @transform_4(%arg0: i32) -> (i32, i32) {
    %c0_i32 = arith.constant 0 : i32
    %c0_i32_0 = arith.constant 0 : i32
    %c0_i32_1 = arith.constant 0 : i32
    return %c0_i32, %c0_i32_0 : i32, i32
  }
  func.func @transform_5(%arg0: i32) -> (i32, i32) {
    %c0_i32 = arith.constant 0 : i32
    %c0_i32_0 = arith.constant 0 : i32
    %c0_i32_1 = arith.constant 0 : i32
    return %c0_i32, %c0_i32_0 : i32, i32
  }
  func.func @transform_6(%arg0: i32) -> (i32, i32) {
    %c0_i32 = arith.constant 0 : i32
    %c0_i32_0 = arith.constant 0 : i32
    %c0_i32_1 = arith.constant 0 : i32
    return %c0_i32, %c0_i32_0 : i32, i32
  }
  func.func @transform_7(%arg0: i32) -> (i32, i32, i32) {
    %c0_i32 = arith.constant 0 : i32
    %c0_i32_0 = arith.constant 0 : i32
    %c0_i32_1 = arith.constant 0 : i32
    %c0_i32_2 = arith.constant 0 : i32
    return %c0_i32, %c0_i32_0, %c0_i32_1 : i32, i32, i32
  }
  func.func @transform_8(%arg0: i32) -> (i32, i32, i32) {
    %c0_i32 = arith.constant 0 : i32
    %c0_i32_0 = arith.constant 0 : i32
    %c0_i32_1 = arith.constant 0 : i32
    %c0_i32_2 = arith.constant 0 : i32
    return %c0_i32, %c0_i32_0, %c0_i32_1 : i32, i32, i32
  }
  func.func @transform_9(%arg0: i32) -> (i32, i32, i32) {
    %c0_i32 = arith.constant 0 : i32
    %c0_i32_0 = arith.constant 0 : i32
    %c0_i32_1 = arith.constant 0 : i32
    %c0_i32_2 = arith.constant 0 : i32
    return %c0_i32, %c0_i32_0, %c0_i32_1 : i32, i32, i32
  }
  func.func @transform_10(%arg0: i32) -> (i32, i32, i32) {
    %c0_i32 = arith.constant 0 : i32
    %c0_i32_0 = arith.constant 0 : i32
    %c0_i32_1 = arith.constant 0 : i32
    %c0_i32_2 = arith.constant 0 : i32
    return %c0_i32, %c0_i32_0, %c0_i32_1 : i32, i32, i32
  }
  func.func @transform_11(%arg0: i32) -> (i32, i32) {
    %c0_i32 = arith.constant 0 : i32
    %c0_i32_0 = arith.constant 0 : i32
    %c0_i32_1 = arith.constant 0 : i32
    return %c0_i32, %c0_i32_0 : i32, i32
  }
  func.func @transform_12(%arg0: i32) -> (i32, i32) {
    %c0_i32 = arith.constant 0 : i32
    %c0_i32_0 = arith.constant 0 : i32
    %c0_i32_1 = arith.constant 0 : i32
    return %c0_i32, %c0_i32_0 : i32, i32
  }
  func.func @transform_13(%arg0: i32) -> (i32, i32, i32) {
    %c0_i32 = arith.constant 0 : i32
    %c0_i32_0 = arith.constant 0 : i32
    %c0_i32_1 = arith.constant 0 : i32
    return %arg0, %c0_i32, %c0_i32_0 : i32, i32, i32
  }
}

</mosaic_0001>

<llo_original>
// kernel: generator_forward.1
$region0: #{generator_forward.1}
  #allocation0 [shape = 'u32[]', space=smem, size = 0x4, offset = 0x4, fixed_abs, tag = 'smem constant byte address 0x4 - core index']
  #allocation1 [shape = 'u32[144,128]{1,0:T(1,128)}', space=vmem, size = 0x12000, scoped, tag = 'internal scratch']
  #allocation2 [shape = 'f32[1,1]{1,0:T(1,128)S(1)}', space=vmem, size = 0x200, scoped, tag = 'scoped memory for generator_forward.1']
  %s0 = inlined_call_operand.vmem [shape: f32[2,3,128], index: 0, kind: input, shape index: {}]
  %s1 = inlined_call_operand.vmem [shape: f32[80,3], index: 1, kind: input, shape index: {}]
  %s2 = inlined_call_operand.vmem [shape: f32[80,1], index: 2, kind: input, shape index: {}]
  %s3 = inlined_call_operand.vmem [shape: bf16[80,80], index: 3, kind: input, shape index: {}]
  %s4 = inlined_call_operand.vmem [shape: f32[80,1], index: 4, kind: input, shape index: {}]
  %s5 = inlined_call_operand.vmem [shape: f32[80,3], index: 5, kind: input, shape index: {}]
  %s6 = inlined_call_operand.vmem [shape: f32[80,1], index: 6, kind: input, shape index: {}]
  %s7 = inlined_call_operand.vmem [shape: bf16[6,160,80], index: 7, kind: input, shape index: {}]
  %s8 = inlined_call_operand.vmem [shape: f32[6,80,1], index: 8, kind: input, shape index: {}]
  %s9 = inlined_call_operand.vmem [shape: bf16[6,160,80], index: 9, kind: input, shape index: {}]
  %s10 = inlined_call_operand.vmem [shape: f32[6,80,1], index: 10, kind: input, shape index: {}]
  %s11 = inlined_call_operand.vmem [shape: bf16[1,80], index: 11, kind: input, shape index: {}]
  %s12 = inlined_call_operand.<no memory space> [shape: f32[1,1], index: 12, kind: input, shape index: {}]
  %s13 = inlined_call_operand.hbm [shape: f32[2,1,128], index: 13, kind: output, shape index: {}]
  %s14 = sld [smem:[#allocation0]]
  $region85: #{generator_forward.1} parent=0
    _
  %s16 = ssub.s32 1, %s14
  %s17 = scalar_select 0, %s16, %s14
  %v18 = vstv %s12
  %19 = vst [vmem:[#allocation2] sm:$0x1] %v18
  $region1: #{generator_forward.1} parent=0
    #allocation3 [shape = 'u8[1024]{0}', space=vmem, size = 0x400, scoped, tag = 'output window, operand 0']
    #allocation4 [shape = 's32[2]{0}', space=sflag, size = 0x8, scoped, tag = 'scoped memory for generator_forward.1']
    %20 = vsyncpa [#allocation4], 0
    %s21 = scalar_lea.sflag [#allocation4], 1
    %22 = vsyncpa %s21, 0
    loop: start=0, step=1, limit=4
    $region2: #{generator_forward.1} parent=1 // loop_pre_header
      _
    $region3: #{generator_forward.1} parent=1 // loop_header
      %s24 = sphi 0, %s28
      %p25 = scmp.ge.s32.totalorder %s24, 4
      %s34 = sphi 0, %s36
      %s37 = sphi 0, %s34
      %s38 = sphi 0, %s37
      %s54 = sphi 0, %s38
      %s58 = sphi 0, %s58
      %s60 = sphi 0, %s58
      %s61 = sphi 0, %s60
      %s75 = sphi 0, %s61
      %s79 = sphi 0, %s79
      %s81 = sphi 0, %s79
      %s82 = sphi 0, %s81
      %s96 = sphi 0, %s82
      %s100 = sphi 0, %s100
      %s102 = sphi 0, %s100
      %s103 = sphi 0, %s102
      %s117 = sphi 0, %s103
      %s121 = sphi 0, %s121
      %s123 = sphi 0, %s121
      %s124 = sphi 0, %s123
      %s138 = sphi 0, %s124
      %s142 = sphi 0, %s142
      %s144 = sphi 0, %s142
      %s145 = sphi 0, %s144
      %s159 = sphi 0, %s145
      %s163 = sphi 0, %s163
      %s165 = sphi 0, %s163
      %s166 = sphi 0, %s165
      %s180 = sphi 0, %s166
      %s184 = sphi 0, %s184
      %s186 = sphi 0, %s184
      %s187 = sphi 0, %s186
      %s201 = sphi 0, %s187
      %s205 = sphi 0, %s205
      %s207 = sphi 0, %s205
      %s208 = sphi 0, %s207
      %s222 = sphi 0, %s208
      %s226 = sphi 0, %s226
      %s228 = sphi 0, %s226
      %s229 = sphi 0, %s228
      %s243 = sphi 0, %s229
      %s247 = sphi 0, %s247
      %s249 = sphi 0, %s247
      %s250 = sphi 0, %s249
      %s264 = sphi 0, %s250
      %s268 = sphi 0, %s268
      %s270 = sphi 0, %s268
      %s271 = sphi 0, %s270
      %s285 = sphi 0, %s271
      %s289 = sphi 0, %s289
      %s291 = sphi 0, %s289
      %s292 = sphi 0, %s291
      %s306 = sphi 0, %s292
      %s312 = sphi 0, %s314
      %s315 = sphi 0, %s312
      %s316 = sphi 0, %s315
      %s332 = sphi 0, %s316
    $region4: #{generator_forward.1} parent=1 // loop_header_branch
      %27 = sbr.rel (%p25) target = $region8
    $region5: #{generator_forward.1} parent=1 // loop_body
      %s29 = ssub.s32 %s24, 1
      %s30 = ssub.s32 %s24, 2
      %s31 = sadd.s32 %s24, 1
      %s32 = ssub.s32 %s24, %s31
      %p33 = scmp.eq.s32.totalorder %s32, 0
      %s35 = sadd.s32 %s34, 1
      %s36 = scalar_select %p33, %s34, %s35
      %p39 = pneg %p33
      %p40 = scmp.eq.s32.totalorder %s24, 1
      %p41 = por %p39, %p40
      %p42 = scmp.ne.s32.totalorder %s34, %s37
      %p43 = scmp.eq.s32.totalorder %s24, 0
      %p44 = por %p42, %p43
      %p45 = scmp.ne.s32.totalorder %s34, %s37
      %p46 = scmp.eq.s32.totalorder %s29, 1
      %p47 = por %p45, %p46
      %p48 = scmp.ne.s32.totalorder %s37, %s38
      %p49 = scmp.eq.s32.totalorder %s29, 0
      %p50 = por %p48, %p49
      %p51 = scmp.ne.s32.totalorder %s37, %s38
      %p52 = scmp.eq.s32.totalorder %s30, 1
      %p53 = por %p51, %p52
      %p55 = scmp.ne.s32.totalorder %s38, %s54
      %p56 = scmp.eq.s32.totalorder %s30, 0
      %p57 = por %p55, %p56
      %s59 = sadd.s32 %s58, 1
      %p62 = scmp.eq.s32.totalorder %s24, 1
      %p63 = scmp.ne.s32.totalorder %s58, %s60
      %p64 = scmp.eq.s32.totalorder %s24, 0
      %p65 = por %p63, %p64
      %p66 = scmp.ne.s32.totalorder %s58, %s60
      %p67 = scmp.eq.s32.totalorder %s29, 1
      %p68 = por %p66, %p67
      %p69 = scmp.ne.s32.totalorder %s60, %s61
      %p70 = scmp.eq.s32.totalorder %s29, 0
      %p71 = por %p69, %p70
      %p72 = scmp.ne.s32.totalorder %s60, %s61
      %p73 = scmp.eq.s32.totalorder %s30, 1
      %p74 = por %p72, %p73
      %p76 = scmp.ne.s32.totalorder %s61, %s75
      %p77 = scmp.eq.s32.totalorder %s30, 0
      %p78 = por %p76, %p77
      %s80 = sadd.s32 %s79, 1
      %p83 = scmp.eq.s32.totalorder %s24, 1
      %p84 = scmp.ne.s32.totalorder %s79, %s81
      %p85 = scmp.eq.s32.totalorder %s24, 0
      %p86 = por %p84, %p85
      %p87 = scmp.ne.s32.totalorder %s79, %s81
      %p88 = scmp.eq.s32.totalorder %s29, 1
      %p89 = por %p87, %p88
      %p90 = scmp.ne.s32.totalorder %s81, %s82
      %p91 = scmp.eq.s32.totalorder %s29, 0
      %p92 = por %p90, %p91
      %p93 = scmp.ne.s32.totalorder %s81, %s82
      %p94 = scmp.eq.s32.totalorder %s30, 1
      %p95 = por %p93, %p94
      %p97 = scmp.ne.s32.totalorder %s82, %s96
      %p98 = scmp.eq.s32.totalorder %s30, 0
      %p99 = por %p97, %p98
      %s101 = sadd.s32 %s100, 1
      %p104 = scmp.eq.s32.totalorder %s24, 1
      %p105 = scmp.ne.s32.totalorder %s100, %s102
      %p106 = scmp.eq.s32.totalorder %s24, 0
      %p107 = por %p105, %p106
      %p108 = scmp.ne.s32.totalorder %s100, %s102
      %p109 = scmp.eq.s32.totalorder %s29, 1
      %p110 = por %p108, %p109
      %p111 = scmp.ne.s32.totalorder %s102, %s103
      %p112 = scmp.eq.s32.totalorder %s29, 0
      %p113 = por %p111, %p112
      %p114 = scmp.ne.s32.totalorder %s102, %s103
      %p115 = scmp.eq.s32.totalorder %s30, 1
      %p116 = por %p114, %p115
      %p118 = scmp.ne.s32.totalorder %s103, %s117
      %p119 = scmp.eq.s32.totalorder %s30, 0
      %p120 = por %p118, %p119
      %s122 = sadd.s32 %s121, 1
      %p125 = scmp.eq.s32.totalorder %s24, 1
      %p126 = scmp.ne.s32.totalorder %s121, %s123
      %p127 = scmp.eq.s32.totalorder %s24, 0
      %p128 = por %p126, %p127
      %p129 = scmp.ne.s32.totalorder %s121, %s123
      %p130 = scmp.eq.s32.totalorder %s29, 1
      %p131 = por %p129, %p130
      %p132 = scmp.ne.s32.totalorder %s123, %s124
      %p133 = scmp.eq.s32.totalorder %s29, 0
      %p134 = por %p132, %p133
      %p135 = scmp.ne.s32.totalorder %s123, %s124
      %p136 = scmp.eq.s32.totalorder %s30, 1
      %p137 = por %p135, %p136
      %p139 = scmp.ne.s32.totalorder %s124, %s138
      %p140 = scmp.eq.s32.totalorder %s30, 0
      %p141 = por %p139, %p140
      %s143 = sadd.s32 %s142, 1
      %p146 = scmp.eq.s32.totalorder %s24, 1
      %p147 = scmp.ne.s32.totalorder %s142, %s144
      %p148 = scmp.eq.s32.totalorder %s24, 0
      %p149 = por %p147, %p148
      %p150 = scmp.ne.s32.totalorder %s142, %s144
      %p151 = scmp.eq.s32.totalorder %s29, 1
      %p152 = por %p150, %p151
      %p153 = scmp.ne.s32.totalorder %s144, %s145
      %p154 = scmp.eq.s32.totalorder %s29, 0
      %p155 = por %p153, %p154
      %p156 = scmp.ne.s32.totalorder %s144, %s145
      %p157 = scmp.eq.s32.totalorder %s30, 1
      %p158 = por %p156, %p157
      %p160 = scmp.ne.s32.totalorder %s145, %s159
      %p161 = scmp.eq.s32.totalorder %s30, 0
      %p162 = por %p160, %p161
      %s164 = sadd.s32 %s163, 1
      %p167 = scmp.eq.s32.totalorder %s24, 1
      %p168 = scmp.ne.s32.totalorder %s163, %s165
      %p169 = scmp.eq.s32.totalorder %s24, 0
      %p170 = por %p168, %p169
      %p171 = scmp.ne.s32.totalorder %s163, %s165
      %p172 = scmp.eq.s32.totalorder %s29, 1
      %p173 = por %p171, %p172
      %p174 = scmp.ne.s32.totalorder %s165, %s166
      %p175 = scmp.eq.s32.totalorder %s29, 0
      %p176 = por %p174, %p175
      %p177 = scmp.ne.s32.totalorder %s165, %s166
      %p178 = scmp.eq.s32.totalorder %s30, 1
      %p179 = por %p177, %p178
      %p181 = scmp.ne.s32.totalorder %s166, %s180
      %p182 = scmp.eq.s32.totalorder %s30, 0
      %p183 = por %p181, %p182
      %s185 = sadd.s32 %s184, 1
      %p188 = scmp.eq.s32.totalorder %s24, 1
      %p189 = scmp.ne.s32.totalorder %s184, %s186
      %p190 = scmp.eq.s32.totalorder %s24, 0
      %p191 = por %p189, %p190
      %p192 = scmp.ne.s32.totalorder %s184, %s186
      %p193 = scmp.eq.s32.totalorder %s29, 1
      %p194 = por %p192, %p193
      %p195 = scmp.ne.s32.totalorder %s186, %s187
      %p196 = scmp.eq.s32.totalorder %s29, 0
      %p197 = por %p195, %p196
      %p198 = scmp.ne.s32.totalorder %s186, %s187
      %p199 = scmp.eq.s32.totalorder %s30, 1
      %p200 = por %p198, %p199
      %p202 = scmp.ne.s32.totalorder %s187, %s201
      %p203 = scmp.eq.s32.totalorder %s30, 0
      %p204 = por %p202, %p203
      %s206 = sadd.s32 %s205, 1
      %p209 = scmp.eq.s32.totalorder %s24, 1
      %p210 = scmp.ne.s32.totalorder %s205, %s207
      %p211 = scmp.eq.s32.totalorder %s24, 0
      %p212 = por %p210, %p211
      %p213 = scmp.ne.s32.totalorder %s205, %s207
      %p214 = scmp.eq.s32.totalorder %s29, 1
      %p215 = por %p213, %p214
      %p216 = scmp.ne.s32.totalorder %s207, %s208
      %p217 = scmp.eq.s32.totalorder %s29, 0
      %p218 = por %p216, %p217
      %p219 = scmp.ne.s32.totalorder %s207, %s208
      %p220 = scmp.eq.s32.totalorder %s30, 1
      %p221 = por %p219, %p220
      %p223 = scmp.ne.s32.totalorder %s208, %s222
      %p224 = scmp.eq.s32.totalorder %s30, 0
      %p225 = por %p223, %p224
      %s227 = sadd.s32 %s226, 1
      %p230 = scmp.eq.s32.totalorder %s24, 1
      %p231 = scmp.ne.s32.totalorder %s226, %s228
      %p232 = scmp.eq.s32.totalorder %s24, 0
      %p233 = por %p231, %p232
      %p234 = scmp.ne.s32.totalorder %s226, %s228
      %p235 = scmp.eq.s32.totalorder %s29, 1
      %p236 = por %p234, %p235
      %p237 = scmp.ne.s32.totalorder %s228, %s229
      %p238 = scmp.eq.s32.totalorder %s29, 0
      %p239 = por %p237, %p238
      %p240 = scmp.ne.s32.totalorder %s228, %s229
      %p241 = scmp.eq.s32.totalorder %s30, 1
      %p242 = por %p240, %p241
      %p244 = scmp.ne.s32.totalorder %s229, %s243
      %p245 = scmp.eq.s32.totalorder %s30, 0
      %p246 = por %p244, %p245
      %s248 = sadd.s32 %s247, 1
      %p251 = scmp.eq.s32.totalorder %s24, 1
      %p252 = scmp.ne.s32.totalorder %s247, %s249
      %p253 = scmp.eq.s32.totalorder %s24, 0
      %p254 = por %p252, %p253
      %p255 = scmp.ne.s32.totalorder %s247, %s249
      %p256 = scmp.eq.s32.totalorder %s29, 1
      %p257 = por %p255, %p256
      %p258 = scmp.ne.s32.totalorder %s249, %s250
      %p259 = scmp.eq.s32.totalorder %s29, 0
      %p260 = por %p258, %p259
      %p261 = scmp.ne.s32.totalorder %s249, %s250
      %p262 = scmp.eq.s32.totalorder %s30, 1
      %p263 = por %p261, %p262
      %p265 = scmp.ne.s32.totalorder %s250, %s264
      %p266 = scmp.eq.s32.totalorder %s30, 0
      %p267 = por %p265, %p266
      %s269 = sadd.s32 %s268, 1
      %p272 = scmp.eq.s32.totalorder %s24, 1
      %p273 = scmp.ne.s32.totalorder %s268, %s270
      %p274 = scmp.eq.s32.totalorder %s24, 0
      %p275 = por %p273, %p274
      %p276 = scmp.ne.s32.totalorder %s268, %s270
      %p277 = scmp.eq.s32.totalorder %s29, 1
      %p278 = por %p276, %p277
      %p279 = scmp.ne.s32.totalorder %s270, %s271
      %p280 = scmp.eq.s32.totalorder %s29, 0
      %p281 = por %p279, %p280
      %p282 = scmp.ne.s32.totalorder %s270, %s271
      %p283 = scmp.eq.s32.totalorder %s30, 1
      %p284 = por %p282, %p283
      %p286 = scmp.ne.s32.totalorder %s271, %s285
      %p287 = scmp.eq.s32.totalorder %s30, 0
      %p288 = por %p286, %p287
      %s290 = sadd.s32 %s289, 1
      %p293 = scmp.eq.s32.totalorder %s24, 1
      %p294 = scmp.ne.s32.totalorder %s289, %s291
      %p295 = scmp.eq.s32.totalorder %s24, 0
      %p296 = por %p294, %p295
      %p297 = scmp.ne.s32.totalorder %s289, %s291
      %p298 = scmp.eq.s32.totalorder %s29, 1
      %p299 = por %p297, %p298
      %p300 = scmp.ne.s32.totalorder %s291, %s292
      %p301 = scmp.eq.s32.totalorder %s29, 0
      %p302 = por %p300, %p301
      %p303 = scmp.ne.s32.totalorder %s291, %s292
      %p304 = scmp.eq.s32.totalorder %s30, 1
      %p305 = por %p303, %p304
      %p307 = scmp.ne.s32.totalorder %s292, %s306
      %p308 = scmp.eq.s32.totalorder %s30, 0
      %p309 = por %p307, %p308
      %s310 = ssub.s32 %s24, %s31
      %p311 = scmp.eq.s32.totalorder %s310, 0
      %s313 = sadd.s32 %s312, 1
      %s314 = scalar_select %p311, %s312, %s313
      %p317 = pneg %p311
      %p318 = scmp.eq.s32.totalorder %s24, 1
      %p319 = por %p317, %p318
      %p320 = scmp.ne.s32.totalorder %s312, %s315
      %p321 = scmp.eq.s32.totalorder %s24, 0
      %p322 = por %p320, %p321
      %p323 = scmp.ne.s32.totalorder %s312, %s315
      %p324 = scmp.eq.s32.totalorder %s29, 1
      %p325 = por %p323, %p324
      %p326 = scmp.ne.s32.totalorder %s315, %s316
      %p327 = scmp.eq.s32.totalorder %s29, 0
      %p328 = por %p326, %p327
      %p329 = scmp.ne.s32.totalorder %s315, %s316
      %p330 = scmp.eq.s32.totalorder %s30, 1
      %p331 = por %p329, %p330
      %p333 = scmp.ne.s32.totalorder %s316, %s332
      %p334 = scmp.eq.s32.totalorder %s30, 0
      %p335 = por %p333, %p334
      %p336 = scmp.le.s32.totalorder 1, %s24
      %p337 = scmp.lt.s32.totalorder %s24, 3
      %p338 = pnand %p336, %p337
      %p339 = pneg %p338
      // Predicated region
      $region9: #{generator_forward.1} parent=5 // pred_check
        _
      $region10: #{generator_forward.1} parent=5 // pred_check_branch
        %341 = sbr.rel (%p338) target = $region12
      $region11: #{generator_forward.1} parent=5 // pred_region
        %s342 = ssub.s32 %s24, 1
        // Predicated region
        $region13: #{generator_forward.1} parent=11 // pred_check
          %p343 = pneg %p71
        $region14: #{generator_forward.1} parent=11 // pred_check_branch
          %345 = sbr.rel (%p343) target = $region16
        $region15: #{generator_forward.1} parent=11 // pred_region
          _
        $region16: #{generator_forward.1} parent=11 // pred_fallthru
          _
        // Predicated region
        $region17: #{generator_forward.1} parent=11 // pred_check
          %p346 = pneg %p92
        $region18: #{generator_forward.1} parent=11 // pred_check_branch
          %348 = sbr.rel (%p346) target = $region20
        $region19: #{generator_forward.1} parent=11 // pred_region
          _
        $region20: #{generator_forward.1} parent=11 // pred_fallthru
          _
        // Predicated region
        $region21: #{generator_forward.1} parent=11 // pred_check
          %p349 = pneg %p113
        $region22: #{generator_forward.1} parent=11 // pred_check_branch
          %351 = sbr.rel (%p349) target = $region24
        $region23: #{generator_forward.1} parent=11 // pred_region
          _
        $region24: #{generator_forward.1} parent=11 // pred_fallthru
          _
        // Predicated region
        $region25: #{generator_forward.1} parent=11 // pred_check
          %p352 = pneg %p134
        $region26: #{generator_forward.1} parent=11 // pred_check_branch
          %354 = sbr.rel (%p352) target = $region28
        $region27: #{generator_forward.1} parent=11 // pred_region
          _
        $region28: #{generator_forward.1} parent=11 // pred_fallthru
          _
        // Predicated region
        $region29: #{generator_forward.1} parent=11 // pred_check
          %p355 = pneg %p155
        $region30: #{generator_forward.1} parent=11 // pred_check_branch
          %357 = sbr.rel (%p355) target = $region32
        $region31: #{generator_forward.1} parent=11 // pred_region
          _
        $region32: #{generator_forward.1} parent=11 // pred_fallthru
          _
        // Predicated region
        $region33: #{generator_forward.1} parent=11 // pred_check
          %p358 = pneg %p176
        $region34: #{generator_forward.1} parent=11 // pred_check_branch
          %360 = sbr.rel (%p358) target = $region36
        $region35: #{generator_forward.1} parent=11 // pred_region
          _
        $region36: #{generator_forward.1} parent=11 // pred_fallthru
          _
        // Predicated region
        $region37: #{generator_forward.1} parent=11 // pred_check
          %p361 = pneg %p197
        $region38: #{generator_forward.1} parent=11 // pred_check_branch
          %363 = sbr.rel (%p361) target = $region40
        $region39: #{generator_forward.1} parent=11 // pred_region
          _
        $region40: #{generator_forward.1} parent=11 // pred_fallthru
          _
        // Predicated region
        $region41: #{generator_forward.1} parent=11 // pred_check
          %p364 = pneg %p218
        $region42: #{generator_forward.1} parent=11 // pred_check_branch
          %366 = sbr.rel (%p364) target = $region44
        $region43: #{generator_forward.1} parent=11 // pred_region
          _
        $region44: #{generator_forward.1} parent=11 // pred_fallthru
          _
        // Predicated region
        $region45: #{generator_forward.1} parent=11 // pred_check
          %p367 = pneg %p239
        $region46: #{generator_forward.1} parent=11 // pred_check_branch
          %369 = sbr.rel (%p367) target = $region48
        $region47: #{generator_forward.1} parent=11 // pred_region
          _
        $region48: #{generator_forward.1} parent=11 // pred_fallthru
          _
        // Predicated region
        $region49: #{generator_forward.1} parent=11 // pred_check
          %p370 = pneg %p260
        $region50: #{generator_forward.1} parent=11 // pred_check_branch
          %372 = sbr.rel (%p370) target = $region52
        $region51: #{generator_forward.1} parent=11 // pred_region
          _
        $region52: #{generator_forward.1} parent=11 // pred_fallthru
          _
        // Predicated region
        $region53: #{generator_forward.1} parent=11 // pred_check
          %p373 = pneg %p281
        $region54: #{generator_forward.1} parent=11 // pred_check_branch
          %375 = sbr.rel (%p373) target = $region56
        $region55: #{generator_forward.1} parent=11 // pred_region
          _
        $region56: #{generator_forward.1} parent=11 // pred_fallthru
          _
        // Predicated region
        $region57: #{generator_forward.1} parent=11 // pred_check
          %p376 = pneg %p302
        $region58: #{generator_forward.1} parent=11 // pred_check_branch
          %378 = sbr.rel (%p376) target = $region60
        $region59: #{generator_forward.1} parent=11 // pred_region
          _
        $region60: #{generator_forward.1} parent=11 // pred_fallthru
          _
      $region12: #{generator_forward.1} parent=5 // pred_fallthru
        _
      %p379 = scmp.lt.s32.totalorder %s24, 2
      // Predicated region
      $region61: #{generator_forward.1} parent=5 // pred_check
        %p380 = pneg %p379
      $region62: #{generator_forward.1} parent=5 // pred_check_branch
        %382 = sbr.rel (%p380) target = $region64
      $region63: #{generator_forward.1} parent=5 // pred_region
        // Predicated region
        $region65: #{generator_forward.1} parent=63 // pred_check
          %p383 = pneg %p44
        $region66: #{generator_forward.1} parent=63 // pred_check_branch
          %385 = sbr.rel (%p383) target = $region68
        $region67: #{generator_forward.1} parent=63 // pred_region
          %p386 = scmp.lt.s32.totalorder %s24, 1
          %s387 = scalar_select %p386, %s24, 1
          %s388 = smul.addr %s387, 4
          %s389 = scalar_lea.vmem %s0, %s388
        $region68: #{generator_forward.1} parent=63 // pred_fallthru
          _
      $region64: #{generator_forward.1} parent=5 // pred_fallthru
        _
      %p390 = scmp.le.s32.totalorder 1, %s24
      %p391 = scmp.lt.s32.totalorder %s24, 3
      %p392 = pnand %p390, %p391
      %p393 = pneg %p392
      // Predicated region
      $region69: #{generator_forward.1} parent=5 // pred_check
        _
      $region70: #{generator_forward.1} parent=5 // pred_check_branch
        %395 = sbr.rel (%p392) target = $region72
      $region71: #{generator_forward.1} parent=5 // pred_region
        %s396 = ssub.s32 %s24, 1
        %p397 = scmp.lt.s32.totalorder %s29, 1
        %s398 = scalar_select %p397, %s29, 1
        %s399 = smul.addr %s398, 4
        %s400 = scalar_lea.vmem %s0, %s399
        %p401 = pneg %p50
        %p402 = pneg %p47
        %p403 = pneg %p71
        %p404 = pneg %p68
        %p405 = pneg %p92
        %p406 = pneg %p89
        %p407 = pneg %p113
        %p408 = pneg %p110
        %p409 = pneg %p134
        %p410 = pneg %p131
        %p411 = pneg %p155
        %p412 = pneg %p152
        %p413 = pneg %p176
        %p414 = pneg %p173
        %p415 = pneg %p197
        %p416 = pneg %p194
        %p417 = pneg %p218
        %p418 = pneg %p215
        %p419 = pneg %p239
        %p420 = pneg %p236
        %p421 = pneg %p260
        %p422 = pneg %p257
        %p423 = pneg %p281
        %p424 = pneg %p278
        %p425 = pneg %p302
        %p426 = pneg %p299
        %p427 = pneg %p328
        %p428 = pneg %p325
        %s429 = sand.u32 %s315, 1
        %s430 = scalar_lea.sflag [#allocation4], %s429
        %s431 = sand.u32 %s315, 1
        %s432 = scalar_lea.vmem [#allocation3], %s431
        %p433 = scmp.lt.s32.totalorder %s29, 1
        %s434 = scalar_select %p433, %s29, 1
        %s435 = smul.addr %s434, 4
        %s436 = scalar_lea.vmem %s0, %s435
        %v438 = vld [vmem:[%s436] sm:$0x7]
        %v439 = vld [vmem:[%s1] sm:$0xff]
        %v440 = vld [vmem:[%s1 + $0x8] sm:$0xff]
        %v441 = vld [vmem:[%s1 + $0x10] sm:$0xff]
        %v442 = vld [vmem:[%s1 + $0x18] sm:$0xff]
        %v443 = vld [vmem:[%s1 + $0x20] sm:$0xff]
        %v444 = vld [vmem:[%s1 + $0x28] sm:$0xff]
        %v445 = vld [vmem:[%s1 + $0x30] sm:$0xff]
        %v446 = vld [vmem:[%s1 + $0x38] sm:$0xff]
        %v447 = vld [vmem:[%s1 + $0x40] sm:$0xff]
        %v448 = vld [vmem:[%s1 + $0x48] sm:$0xff]
        %450 = vset.pattern.permute.xlu0 0
        %451 = vperm.xlu0 %450, %v439
        %v452 = vpop.permute.xlu0 %451
        %455 = vset.pattern.permute.xlu0 0
        %456 = vperm.xlu0 %455, %v440
        %v457 = vpop.permute.xlu0 %456
        %460 = vset.pattern.permute.xlu0 0
        %461 = vperm.xlu0 %460, %v441
        %v462 = vpop.permute.xlu0 %461
        %465 = vset.pattern.permute.xlu0 0
        %466 = vperm.xlu0 %465, %v442
        %v467 = vpop.permute.xlu0 %466
        %470 = vset.pattern.permute.xlu0 0
        %471 = vperm.xlu0 %470, %v443
        %v472 = vpop.permute.xlu0 %471
        %475 = vset.pattern.permute.xlu0 0
        %476 = vperm.xlu0 %475, %v444
        %v477 = vpop.permute.xlu0 %476
        %480 = vset.pattern.permute.xlu0 0
        %481 = vperm.xlu0 %480, %v445
        %v482 = vpop.permute.xlu0 %481
        %485 = vset.pattern.permute.xlu0 0
        %486 = vperm.xlu0 %485, %v446
        %v487 = vpop.permute.xlu0 %486
        %490 = vset.pattern.permute.xlu0 0
        %491 = vperm.xlu0 %490, %v447
        %v492 = vpop.permute.xlu0 %491
        %495 = vset.pattern.permute.xlu0 0
        %496 = vperm.xlu0 %495, %v448
        %v497 = vpop.permute.xlu0 %496
        %v499 = vlaneseq
        %v500 = vshrl.u32 %v499, 7
        %v501 = vsub.s32 0, %v500
        %v502 = vrot.slane %v438, %v501
        %v503 = vmul.f32 %v452, %v502
        %v504 = vmul.f32 %v457, %v502
        %v505 = vmul.f32 %v462, %v502
        %v506 = vmul.f32 %v467, %v502
        %v507 = vmul.f32 %v472, %v502
        %v508 = vmul.f32 %v477, %v502
        %v509 = vmul.f32 %v482, %v502
        %v510 = vmul.f32 %v487, %v502
        %v511 = vmul.f32 %v492, %v502
        %v512 = vmul.f32 %v497, %v502
        %513 = vset.pattern.permute.xlu0 1
        %514 = vperm.xlu0 %513, %v439
        %v515 = vpop.permute.xlu0 %514
        %517 = vset.pattern.permute.xlu0 1
        %518 = vperm.xlu0 %517, %v440
        %v519 = vpop.permute.xlu0 %518
        %521 = vset.pattern.permute.xlu0 1
        %522 = vperm.xlu0 %521, %v441
        %v523 = vpop.permute.xlu0 %522
        %525 = vset.pattern.permute.xlu0 1
        %526 = vperm.xlu0 %525, %v442
        %v527 = vpop.permute.xlu0 %526
        %529 = vset.pattern.permute.xlu0 1
        %530 = vperm.xlu0 %529, %v443
        %v531 = vpop.permute.xlu0 %530
        %533 = vset.pattern.permute.xlu0 1
        %534 = vperm.xlu0 %533, %v444
        %v535 = vpop.permute.xlu0 %534
        %537 = vset.pattern.permute.xlu0 1
        %538 = vperm.xlu0 %537, %v445
        %v539 = vpop.permute.xlu0 %538
        %541 = vset.pattern.permute.xlu0 1
        %542 = vperm.xlu0 %541, %v446
        %v543 = vpop.permute.xlu0 %542
        %545 = vset.pattern.permute.xlu0 1
        %546 = vperm.xlu0 %545, %v447
        %v547 = vpop.permute.xlu0 %546
        %549 = vset.pattern.permute.xlu0 1
        %550 = vperm.xlu0 %549, %v448
        %v551 = vpop.permute.xlu0 %550
        %v553 = vlaneseq
        %v554 = vshrl.u32 %v553, 7
        %v555 = vsub.s32 1, %v554
        %v556 = vrot.slane %v438, %v555
        %v557 = vmul.f32 %v515, %v556
        %v558 = vmul.f32 %v519, %v556
        %v559 = vmul.f32 %v523, %v556
        %v560 = vmul.f32 %v527, %v556
        %v561 = vmul.f32 %v531, %v556
        %v562 = vmul.f32 %v535, %v556
        %v563 = vmul.f32 %v539, %v556
        %v564 = vmul.f32 %v543, %v556
        %v565 = vmul.f32 %v547, %v556
        %v566 = vmul.f32 %v551, %v556
        %v567 = vadd.f32 %v503, %v557
        %v568 = vadd.f32 %v504, %v558
        %v569 = vadd.f32 %v505, %v559
        %v570 = vadd.f32 %v506, %v560
        %v571 = vadd.f32 %v507, %v561
        %v572 = vadd.f32 %v508, %v562
        %v573 = vadd.f32 %v509, %v563
        %v574 = vadd.f32 %v510, %v564
        %v575 = vadd.f32 %v511, %v565
        %v576 = vadd.f32 %v512, %v566
        %577 = vset.pattern.permute.xlu0 2
        %578 = vperm.xlu0 %577, %v439
        %v579 = vpop.permute.xlu0 %578
        %581 = vset.pattern.permute.xlu0 2
        %582 = vperm.xlu0 %581, %v440
        %v583 = vpop.permute.xlu0 %582
        %585 = vset.pattern.permute.xlu0 2
        %586 = vperm.xlu0 %585, %v441
        %v587 = vpop.permute.xlu0 %586
        %589 = vset.pattern.permute.xlu0 2
        %590 = vperm.xlu0 %589, %v442
        %v591 = vpop.permute.xlu0 %590
        %593 = vset.pattern.permute.xlu0 2
        %594 = vperm.xlu0 %593, %v443
        %v595 = vpop.permute.xlu0 %594
        %597 = vset.pattern.permute.xlu0 2
        %598 = vperm.xlu0 %597, %v444
        %v599 = vpop.permute.xlu0 %598
        %601 = vset.pattern.permute.xlu0 2
        %602 = vperm.xlu0 %601, %v445
        %v603 = vpop.permute.xlu0 %602
        %605 = vset.pattern.permute.xlu0 2
        %606 = vperm.xlu0 %605, %v446
        %v607 = vpop.permute.xlu0 %606
        %609 = vset.pattern.permute.xlu0 2
        %610 = vperm.xlu0 %609, %v447
        %v611 = vpop.permute.xlu0 %610
        %613 = vset.pattern.permute.xlu0 2
        %614 = vperm.xlu0 %613, %v448
        %v615 = vpop.permute.xlu0 %614
        %v617 = vlaneseq
        %v618 = vshrl.u32 %v617, 7
        %v619 = vsub.s32 2, %v618
        %v620 = vrot.slane %v438, %v619
        %v621 = vmul.f32 %v579, %v620
        %v622 = vmul.f32 %v583, %v620
        %v623 = vmul.f32 %v587, %v620
        %v624 = vmul.f32 %v591, %v620
        %v625 = vmul.f32 %v595, %v620
        %v626 = vmul.f32 %v599, %v620
        %v627 = vmul.f32 %v603, %v620
        %v628 = vmul.f32 %v607, %v620
        %v629 = vmul.f32 %v611, %v620
        %v630 = vmul.f32 %v615, %v620
        %v631 = vadd.f32 %v567, %v621
        %v632 = vadd.f32 %v568, %v622
        %v633 = vadd.f32 %v569, %v623
        %v634 = vadd.f32 %v570, %v624
        %v635 = vadd.f32 %v571, %v625
        %v636 = vadd.f32 %v572, %v626
        %v637 = vadd.f32 %v573, %v627
        %v638 = vadd.f32 %v574, %v628
        %v639 = vadd.f32 %v575, %v629
        %v640 = vadd.f32 %v576, %v630
        %v641 = vld [vmem:[%s2] sm:$0xff]
        %v642 = vld [vmem:[%s2 + $0x8] sm:$0xff]
        %v643 = vld [vmem:[%s2 + $0x10] sm:$0xff]
        %v644 = vld [vmem:[%s2 + $0x18] sm:$0xff]
        %v645 = vld [vmem:[%s2 + $0x20] sm:$0xff]
        %v646 = vld [vmem:[%s2 + $0x28] sm:$0xff]
        %v647 = vld [vmem:[%s2 + $0x30] sm:$0xff]
        %v648 = vld [vmem:[%s2 + $0x38] sm:$0xff]
        %v649 = vld [vmem:[%s2 + $0x40] sm:$0xff]
        %v650 = vld [vmem:[%s2 + $0x48] sm:$0xff]
        %652 = vset.pattern.permute.xlu0 0
        %653 = vperm.xlu0 %652, %v641
        %v654 = vpop.permute.xlu0 %653
        %657 = vset.pattern.permute.xlu0 0
        %658 = vperm.xlu0 %657, %v642
        %v659 = vpop.permute.xlu0 %658
        %662 = vset.pattern.permute.xlu0 0
        %663 = vperm.xlu0 %662, %v643
        %v664 = vpop.permute.xlu0 %663
        %667 = vset.pattern.permute.xlu0 0
        %668 = vperm.xlu0 %667, %v644
        %v669 = vpop.permute.xlu0 %668
        %672 = vset.pattern.permute.xlu0 0
        %673 = vperm.xlu0 %672, %v645
        %v674 = vpop.permute.xlu0 %673
        %677 = vset.pattern.permute.xlu0 0
        %678 = vperm.xlu0 %677, %v646
        %v679 = vpop.permute.xlu0 %678
        %682 = vset.pattern.permute.xlu0 0
        %683 = vperm.xlu0 %682, %v647
        %v684 = vpop.permute.xlu0 %683
        %687 = vset.pattern.permute.xlu0 0
        %688 = vperm.xlu0 %687, %v648
        %v689 = vpop.permute.xlu0 %688
        %692 = vset.pattern.permute.xlu0 0
        %693 = vperm.xlu0 %692, %v649
        %v694 = vpop.permute.xlu0 %693
        %697 = vset.pattern.permute.xlu0 0
        %698 = vperm.xlu0 %697, %v650
        %v699 = vpop.permute.xlu0 %698
        %v701 = vadd.f32 %v631, %v654
        %v702 = vadd.f32 %v632, %v659
        %v703 = vadd.f32 %v633, %v664
        %v704 = vadd.f32 %v634, %v669
        %v705 = vadd.f32 %v635, %v674
        %v706 = vadd.f32 %v636, %v679
        %v707 = vadd.f32 %v637, %v684
        %v708 = vadd.f32 %v638, %v689
        %v709 = vadd.f32 %v639, %v694
        %v710 = vadd.f32 %v640, %v699
        %v711 = vmax.f32 %v701, 0.0
        %v712 = vmax.f32 %v702, 0.0
        %v713 = vmax.f32 %v703, 0.0
        %v714 = vmax.f32 %v704, 0.0
        %v715 = vmax.f32 %v705, 0.0
        %v716 = vmax.f32 %v706, 0.0
        %v717 = vmax.f32 %v707, 0.0
        %v718 = vmax.f32 %v708, 0.0
        %v719 = vmax.f32 %v709, 0.0
        %v720 = vmax.f32 %v710, 0.0
        %v721 = vld [vmem:[%s3] sm:$0xf]
        %v722 = vld [vmem:[%s3 + $0x4] sm:$0xf]
        %v723 = vld [vmem:[%s3 + $0x8] sm:$0xf]
        %v724 = vld [vmem:[%s3 + $0xc] sm:$0xf]
        %v725 = vld [vmem:[%s3 + $0x10] sm:$0xf]
        %v726 = vld [vmem:[%s3 + $0x14] sm:$0xf]
        %v727 = vld [vmem:[%s3 + $0x18] sm:$0xf]
        %v728 = vld [vmem:[%s3 + $0x1c] sm:$0xf]
        %v729 = vld [vmem:[%s3 + $0x20] sm:$0xf]
        %v730 = vld [vmem:[%s3 + $0x24] sm:$0xf]
        %v731 = vpack.c.bf16 %v712, %v711
        %v732 = vpack.c.bf16 %v714, %v713
        %v733 = vpack.c.bf16 %v716, %v715
        %v734 = vpack.c.bf16 %v718, %v717
        %v735 = vpack.c.bf16 %v720, %v719
        %v736 = vld [vmem:[%s4] sm:$0xff]
        %v737 = vld [vmem:[%s4 + $0x8] sm:$0xff]
        %v738 = vld [vmem:[%s4 + $0x10] sm:$0xff]
        %v739 = vld [vmem:[%s4 + $0x18] sm:$0xff]
        %v740 = vld [vmem:[%s4 + $0x20] sm:$0xff]
        %v741 = vld [vmem:[%s4 + $0x28] sm:$0xff]
        %v742 = vld [vmem:[%s4 + $0x30] sm:$0xff]
        %v743 = vld [vmem:[%s4 + $0x38] sm:$0xff]
        %v744 = vld [vmem:[%s4 + $0x40] sm:$0xff]
        %v745 = vld [vmem:[%s4 + $0x48] sm:$0xff]
        %747 = vset.pattern.permute.xlu0 0
        %748 = vperm.xlu0 %747, %v736
        %v749 = vpop.permute.xlu0 %748
        %752 = vset.pattern.permute.xlu0 0
        %753 = vperm.xlu0 %752, %v737
        %v754 = vpop.permute.xlu0 %753
        %757 = vset.pattern.permute.xlu0 0
        %758 = vperm.xlu0 %757, %v738
        %v759 = vpop.permute.xlu0 %758
        %762 = vset.pattern.permute.xlu0 0
        %763 = vperm.xlu0 %762, %v739
        %v764 = vpop.permute.xlu0 %763
        %767 = vset.pattern.permute.xlu0 0
        %768 = vperm.xlu0 %767, %v740
        %v769 = vpop.permute.xlu0 %768
        %772 = vset.pattern.permute.xlu0 0
        %773 = vperm.xlu0 %772, %v741
        %v774 = vpop.permute.xlu0 %773
        %777 = vset.pattern.permute.xlu0 0
        %778 = vperm.xlu0 %777, %v742
        %v779 = vpop.permute.xlu0 %778
        %782 = vset.pattern.permute.xlu0 0
        %783 = vperm.xlu0 %782, %v743
        %v784 = vpop.permute.xlu0 %783
        %787 = vset.pattern.permute.xlu0 0
        %788 = vperm.xlu0 %787, %v744
        %v789 = vpop.permute.xlu0 %788
        %792 = vset.pattern.permute.xlu0 0
        %793 = vperm.xlu0 %792, %v745
        %v794 = vpop.permute.xlu0 %793
        %v806 = vunpack.c.l.b16 %v721
        %v807 = vunpack.c.l.b16 %v722
        %v808 = vunpack.c.l.b16 %v723
        %v809 = vunpack.c.l.b16 %v724
        %v810 = vunpack.c.l.b16 %v725
        %v811 = vunpack.c.l.b16 %v726
        %v812 = vunpack.c.l.b16 %v727
        %v813 = vunpack.c.l.b16 %v728
        %v814 = vunpack.c.l.b16 %v729
        %v815 = vunpack.c.l.b16 %v730
        %v816 = vpack.c.b16 %v807, %v806
        %v817 = vpack.c.b16 %v809, %v808
        %v818 = vpack.c.b16 %v811, %v810
        %v819 = vpack.c.b16 %v813, %v812
        %v820 = vpack.c.b16 %v815, %v814
        %vm821 = vcmask 654336
        %v823 = vsel %vm821, %v816, 0
        %v826 = vsel %vm821, %v817, 0
        %v829 = vsel %vm821, %v818, 0
        %v832 = vsel %vm821, %v819, 0
        %v835 = vsel %vm821, %v820, 0
        %837 = vmatprep.subr.bf16.mxu0 0
        %838 = vmatpush1.bf16.msra.mxu0 %v731
        %839 = vmatprep.subr.bf16.mxu0 0
        %840 = vmatpush1.bf16.msra.mxu0 %v732
        %841 = vmatprep.subr.bf16.mxu0 0
        %842 = vmatpush1.bf16.msra.mxu0 %v733
        %843 = vmatprep.subr.bf16.mxu0 0
        %844 = vmatpush1.bf16.msra.mxu0 %v734
        %845 = vmatprep.subr.bf16.mxu0 0
        %846 = vmatpush1.bf16.msra.mxu0 %v735
        %847 = vmatprep.subr.bf16.mxu0 0
        %848 = vmatpush1.bf16.msra.mxu0 0
        %849 = vmatprep.subr.bf16.mxu0 0
        %850 = vmatpush1.bf16.msra.mxu0 0
        %851 = vmatprep.subr.bf16.mxu0 0
        %852 = vmatpush1.bf16.msra.mxu0 0
        %853 = vmatprep.subr.bf16.mxu0 0
        %854 = vmatpush1.bf16.msra.mxu0 0
        %855 = vmatprep.subr.bf16.mxu0 0
        %856 = vmatpush1.bf16.msra.mxu0 0
        %857 = vmatprep.subr.bf16.mxu0 0
        %858 = vmatpush1.bf16.msra.mxu0 0
        %859 = vmatprep.subr.bf16.mxu0 0
        %860 = vmatpush1.bf16.msra.mxu0 0
        %861 = vmatprep.subr.bf16.mxu0 0
        %862 = vmatpush1.bf16.msra.mxu0 0
        %863 = vmatprep.subr.bf16.mxu0 0
        %864 = vmatpush1.bf16.msra.mxu0 0
        %865 = vmatprep.subr.bf16.mxu0 0
        %866 = vmatpush1.bf16.msra.mxu0 0
        %867 = vmatprep.subr.bf16.mxu0 0
        %868 = vmatpush1.bf16.msra.mxu0 0
        %869 = vmatprep.mubr.bf16.mxu0 0
        %870 = vmatmul.mubr.bf16.gmra.mrb[0].mxu0 %v823
        %v871 = vpop.f32.mrb[0].mxu0
        %v872 = vadd.f32 %v749, %v871
        %v873 = vpop.f32.mrb[0].mxu0
        %v874 = vpop.f32.mrb[0].mxu0
        %v875 = vadd.f32 %v754, %v874
        %v876 = vpop.f32.mrb[0].mxu0
        %877 = vmatprep.mubr.bf16.mxu0 0
        %878 = vmatmul.mubr.bf16.gmra.mrb[0].mxu0 %v826
        %v879 = vpop.f32.mrb[0].mxu0
        %v880 = vadd.f32 %v759, %v879
        %v881 = vpop.f32.mrb[0].mxu0
        %v882 = vpop.f32.mrb[0].mxu0
        %v883 = vadd.f32 %v764, %v882
        %v884 = vpop.f32.mrb[0].mxu0
        %885 = vmatprep.mubr.bf16.mxu0 0
        %886 = vmatmul.mubr.bf16.gmra.mrb[0].mxu0 %v829
        %v887 = vpop.f32.mrb[0].mxu0
        %v888 = vadd.f32 %v769, %v887
        %v889 = vpop.f32.mrb[0].mxu0
        %v890 = vpop.f32.mrb[0].mxu0
        %v891 = vadd.f32 %v774, %v890
        %v892 = vpop.f32.mrb[0].mxu0
        %893 = vmatprep.mubr.bf16.mxu0 0
        %894 = vmatmul.mubr.bf16.gmra.mrb[0].mxu0 %v832
        %v895 = vpop.f32.mrb[0].mxu0
        %v896 = vadd.f32 %v779, %v895
        %v897 = vpop.f32.mrb[0].mxu0
        %v898 = vpop.f32.mrb[0].mxu0
        %v899 = vadd.f32 %v784, %v898
        %v900 = vpop.f32.mrb[0].mxu0
        %901 = vmatprep.mubr.bf16.mxu0 0
        %902 = vmatmul.mubr.bf16.gmra.mrb[0].mxu0 %v835
        %v903 = vpop.f32.mrb[0].mxu0
        %v904 = vadd.f32 %v789, %v903
        %v905 = vpop.f32.mrb[0].mxu0
        %v906 = vpop.f32.mrb[0].mxu0
        %v907 = vadd.f32 %v794, %v906
        %v908 = vpop.f32.mrb[0].mxu0
        %909 = vdwg.mxu0
        %v910 = vmax.f32 %v872, 0.0
        %v911 = vmax.f32 %v875, 0.0
        %v912 = vmax.f32 %v880, 0.0
        %v913 = vmax.f32 %v883, 0.0
        %v914 = vmax.f32 %v888, 0.0
        %v915 = vmax.f32 %v891, 0.0
        %v916 = vmax.f32 %v896, 0.0
        %v917 = vmax.f32 %v899, 0.0
        %v918 = vmax.f32 %v904, 0.0
        %v919 = vmax.f32 %v907, 0.0
        %v920 = vld [vmem:[%s5] sm:$0xff]
        %v921 = vld [vmem:[%s5 + $0x8] sm:$0xff]
        %v922 = vld [vmem:[%s5 + $0x10] sm:$0xff]
        %v923 = vld [vmem:[%s5 + $0x18] sm:$0xff]
        %v924 = vld [vmem:[%s5 + $0x20] sm:$0xff]
        %v925 = vld [vmem:[%s5 + $0x28] sm:$0xff]
        %v926 = vld [vmem:[%s5 + $0x30] sm:$0xff]
        %v927 = vld [vmem:[%s5 + $0x38] sm:$0xff]
        %v928 = vld [vmem:[%s5 + $0x40] sm:$0xff]
        %v929 = vld [vmem:[%s5 + $0x48] sm:$0xff]
        %931 = vset.pattern.permute.xlu0 0
        %932 = vperm.xlu0 %931, %v920
        %v933 = vpop.permute.xlu0 %932
        %936 = vset.pattern.permute.xlu0 0
        %937 = vperm.xlu0 %936, %v921
        %v938 = vpop.permute.xlu0 %937
        %941 = vset.pattern.permute.xlu0 0
        %942 = vperm.xlu0 %941, %v922
        %v943 = vpop.permute.xlu0 %942
        %946 = vset.pattern.permute.xlu0 0
        %947 = vperm.xlu0 %946, %v923
        %v948 = vpop.permute.xlu0 %947
        %951 = vset.pattern.permute.xlu0 0
        %952 = vperm.xlu0 %951, %v924
        %v953 = vpop.permute.xlu0 %952
        %956 = vset.pattern.permute.xlu0 0
        %957 = vperm.xlu0 %956, %v925
        %v958 = vpop.permute.xlu0 %957
        %961 = vset.pattern.permute.xlu0 0
        %962 = vperm.xlu0 %961, %v926
        %v963 = vpop.permute.xlu0 %962
        %966 = vset.pattern.permute.xlu0 0
        %967 = vperm.xlu0 %966, %v927
        %v968 = vpop.permute.xlu0 %967
        %971 = vset.pattern.permute.xlu0 0
        %972 = vperm.xlu0 %971, %v928
        %v973 = vpop.permute.xlu0 %972
        %976 = vset.pattern.permute.xlu0 0
        %977 = vperm.xlu0 %976, %v929
        %v978 = vpop.permute.xlu0 %977
        %v980 = vmul.f32 %v933, %v502
        %v981 = vmul.f32 %v938, %v502
        %v982 = vmul.f32 %v943, %v502
        %v983 = vmul.f32 %v948, %v502
        %v984 = vmul.f32 %v953, %v502
        %v985 = vmul.f32 %v958, %v502
        %v986 = vmul.f32 %v963, %v502
        %v987 = vmul.f32 %v968, %v502
        %v988 = vmul.f32 %v973, %v502
        %v989 = vmul.f32 %v978, %v502
        %990 = vset.pattern.permute.xlu0 1
        %991 = vperm.xlu0 %990, %v920
        %v992 = vpop.permute.xlu0 %991
        %994 = vset.pattern.permute.xlu0 1
        %995 = vperm.xlu0 %994, %v921
        %v996 = vpop.permute.xlu0 %995
        %998 = vset.pattern.permute.xlu0 1
        %999 = vperm.xlu0 %998, %v922
        %v1000 = vpop.permute.xlu0 %999
        %1002 = vset.pattern.permute.xlu0 1
        %1003 = vperm.xlu0 %1002, %v923
        %v1004 = vpop.permute.xlu0 %1003
        %1006 = vset.pattern.permute.xlu0 1
        %1007 = vperm.xlu0 %1006, %v924
        %v1008 = vpop.permute.xlu0 %1007
        %1010 = vset.pattern.permute.xlu0 1
        %1011 = vperm.xlu0 %1010, %v925
        %v1012 = vpop.permute.xlu0 %1011
        %1014 = vset.pattern.permute.xlu0 1
        %1015 = vperm.xlu0 %1014, %v926
        %v1016 = vpop.permute.xlu0 %1015
        %1018 = vset.pattern.permute.xlu0 1
        %1019 = vperm.xlu0 %1018, %v927
        %v1020 = vpop.permute.xlu0 %1019
        %1022 = vset.pattern.permute.xlu0 1
        %1023 = vperm.xlu0 %1022, %v928
        %v1024 = vpop.permute.xlu0 %1023
        %1026 = vset.pattern.permute.xlu0 1
        %1027 = vperm.xlu0 %1026, %v929
        %v1028 = vpop.permute.xlu0 %1027
        %v1030 = vmul.f32 %v992, %v556
        %v1031 = vmul.f32 %v996, %v556
        %v1032 = vmul.f32 %v1000, %v556
        %v1033 = vmul.f32 %v1004, %v556
        %v1034 = vmul.f32 %v1008, %v556
        %v1035 = vmul.f32 %v1012, %v556
        %v1036 = vmul.f32 %v1016, %v556
        %v1037 = vmul.f32 %v1020, %v556
        %v1038 = vmul.f32 %v1024, %v556
        %v1039 = vmul.f32 %v1028, %v556
        %v1040 = vadd.f32 %v980, %v1030
        %v1041 = vadd.f32 %v981, %v1031
        %v1042 = vadd.f32 %v982, %v1032
        %v1043 = vadd.f32 %v983, %v1033
        %v1044 = vadd.f32 %v984, %v1034
        %v1045 = vadd.f32 %v985, %v1035
        %v1046 = vadd.f32 %v986, %v1036
        %v1047 = vadd.f32 %v987, %v1037
        %v1048 = vadd.f32 %v988, %v1038
        %v1049 = vadd.f32 %v989, %v1039
        %1050 = vset.pattern.permute.xlu0 2
        %1051 = vperm.xlu0 %1050, %v920
        %v1052 = vpop.permute.xlu0 %1051
        %1054 = vset.pattern.permute.xlu0 2
        %1055 = vperm.xlu0 %1054, %v921
        %v1056 = vpop.permute.xlu0 %1055
        %1058 = vset.pattern.permute.xlu0 2
        %1059 = vperm.xlu0 %1058, %v922
        %v1060 = vpop.permute.xlu0 %1059
        %1062 = vset.pattern.permute.xlu0 2
        %1063 = vperm.xlu0 %1062, %v923
        %v1064 = vpop.permute.xlu0 %1063
        %1066 = vset.pattern.permute.xlu0 2
        %1067 = vperm.xlu0 %1066, %v924
        %v1068 = vpop.permute.xlu0 %1067
        %1070 = vset.pattern.permute.xlu0 2
        %1071 = vperm.xlu0 %1070, %v925
        %v1072 = vpop.permute.xlu0 %1071
        %1074 = vset.pattern.permute.xlu0 2
        %1075 = vperm.xlu0 %1074, %v926
        %v1076 = vpop.permute.xlu0 %1075
        %1078 = vset.pattern.permute.xlu0 2
        %1079 = vperm.xlu0 %1078, %v927
        %v1080 = vpop.permute.xlu0 %1079
        %1082 = vset.pattern.permute.xlu0 2
        %1083 = vperm.xlu0 %1082, %v928
        %v1084 = vpop.permute.xlu0 %1083
        %1086 = vset.pattern.permute.xlu0 2
        %1087 = vperm.xlu0 %1086, %v929
        %v1088 = vpop.permute.xlu0 %1087
        %v1090 = vmul.f32 %v1052, %v620
        %v1091 = vmul.f32 %v1056, %v620
        %v1092 = vmul.f32 %v1060, %v620
        %v1093 = vmul.f32 %v1064, %v620
        %v1094 = vmul.f32 %v1068, %v620
        %v1095 = vmul.f32 %v1072, %v620
        %v1096 = vmul.f32 %v1076, %v620
        %v1097 = vmul.f32 %v1080, %v620
        %v1098 = vmul.f32 %v1084, %v620
        %v1099 = vmul.f32 %v1088, %v620
        %v1100 = vadd.f32 %v1040, %v1090
        %v1101 = vadd.f32 %v1041, %v1091
        %v1102 = vadd.f32 %v1042, %v1092
        %v1103 = vadd.f32 %v1043, %v1093
        %v1104 = vadd.f32 %v1044, %v1094
        %v1105 = vadd.f32 %v1045, %v1095
        %v1106 = vadd.f32 %v1046, %v1096
        %v1107 = vadd.f32 %v1047, %v1097
        %v1108 = vadd.f32 %v1048, %v1098
        %v1109 = vadd.f32 %v1049, %v1099
        %v1110 = vld [vmem:[%s6] sm:$0xff]
        %v1111 = vld [vmem:[%s6 + $0x8] sm:$0xff]
        %v1112 = vld [vmem:[%s6 + $0x10] sm:$0xff]
        %v1113 = vld [vmem:[%s6 + $0x18] sm:$0xff]
        %v1114 = vld [vmem:[%s6 + $0x20] sm:$0xff]
        %v1115 = vld [vmem:[%s6 + $0x28] sm:$0xff]
        %v1116 = vld [vmem:[%s6 + $0x30] sm:$0xff]
        %v1117 = vld [vmem:[%s6 + $0x38] sm:$0xff]
        %v1118 = vld [vmem:[%s6 + $0x40] sm:$0xff]
        %v1119 = vld [vmem:[%s6 + $0x48] sm:$0xff]
        %1121 = vset.pattern.permute.xlu0 0
        %1122 = vperm.xlu0 %1121, %v1110
        %v1123 = vpop.permute.xlu0 %1122
        %1126 = vset.pattern.permute.xlu0 0
        %1127 = vperm.xlu0 %1126, %v1111
        %v1128 = vpop.permute.xlu0 %1127
        %1131 = vset.pattern.permute.xlu0 0
        %1132 = vperm.xlu0 %1131, %v1112
        %v1133 = vpop.permute.xlu0 %1132
        %1136 = vset.pattern.permute.xlu0 0
        %1137 = vperm.xlu0 %1136, %v1113
        %v1138 = vpop.permute.xlu0 %1137
        %1141 = vset.pattern.permute.xlu0 0
        %1142 = vperm.xlu0 %1141, %v1114
        %v1143 = vpop.permute.xlu0 %1142
        %1146 = vset.pattern.permute.xlu0 0
        %1147 = vperm.xlu0 %1146, %v1115
        %v1148 = vpop.permute.xlu0 %1147
        %1151 = vset.pattern.permute.xlu0 0
        %1152 = vperm.xlu0 %1151, %v1116
        %v1153 = vpop.permute.xlu0 %1152
        %1156 = vset.pattern.permute.xlu0 0
        %1157 = vperm.xlu0 %1156, %v1117
        %v1158 = vpop.permute.xlu0 %1157
        %1161 = vset.pattern.permute.xlu0 0
        %1162 = vperm.xlu0 %1161, %v1118
        %v1163 = vpop.permute.xlu0 %1162
        %1166 = vset.pattern.permute.xlu0 0
        %1167 = vperm.xlu0 %1166, %v1119
        %v1168 = vpop.permute.xlu0 %1167
        %v1170 = vadd.f32 %v1100, %v1123
        %v1171 = vadd.f32 %v1101, %v1128
        %v1172 = vadd.f32 %v1102, %v1133
        %v1173 = vadd.f32 %v1103, %v1138
        %v1174 = vadd.f32 %v1104, %v1143
        %v1175 = vadd.f32 %v1105, %v1148
        %v1176 = vadd.f32 %v1106, %v1153
        %v1177 = vadd.f32 %v1107, %v1158
        %v1178 = vadd.f32 %v1108, %v1163
        %v1179 = vadd.f32 %v1109, %v1168
        %v1180 = vadd.f32 %v910, %v1170
        %v1181 = vadd.f32 %v911, %v1171
        %v1182 = vadd.f32 %v912, %v1172
        %v1183 = vadd.f32 %v913, %v1173
        %v1184 = vadd.f32 %v914, %v1174
        %v1185 = vadd.f32 %v915, %v1175
        %v1186 = vadd.f32 %v916, %v1176
        %v1187 = vadd.f32 %v917, %v1177
        %v1188 = vadd.f32 %v918, %v1178
        %v1189 = vadd.f32 %v919, %v1179
        %v1190 = vmax.f32 %v1180, 0.0
        %v1191 = vmax.f32 %v1181, 0.0
        %v1192 = vmax.f32 %v1182, 0.0
        %v1193 = vmax.f32 %v1183, 0.0
        %v1194 = vmax.f32 %v1184, 0.0
        %v1195 = vmax.f32 %v1185, 0.0
        %v1196 = vmax.f32 %v1186, 0.0
        %v1197 = vmax.f32 %v1187, 0.0
        %v1198 = vmax.f32 %v1188, 0.0
        %v1199 = vmax.f32 %v1189, 0.0
        %v1200 = vlaneseq
        %v1201 = vand.u32 %v1200, 127
        %vm1202 = vcmp.ge.s32.totalorder %v1201, 1
        %v1203 = vld [vmem:[%s7] sm:$0xf]
        %v1204 = vld [vmem:[%s7 + $0x4] sm:$0xf]
        %v1205 = vld [vmem:[%s7 + $0x8] sm:$0xf]
        %v1206 = vld [vmem:[%s7 + $0xc] sm:$0xf]
        %v1207 = vld [vmem:[%s7 + $0x10] sm:$0xf]
        %v1208 = vld [vmem:[%s7 + $0x14] sm:$0xf]
        %v1209 = vld [vmem:[%s7 + $0x18] sm:$0xf]
        %v1210 = vld [vmem:[%s7 + $0x1c] sm:$0xf]
        %v1211 = vld [vmem:[%s7 + $0x20] sm:$0xf]
        %v1212 = vld [vmem:[%s7 + $0x24] sm:$0xf]
        %v1213 = vld [vmem:[%s7 + $0x28] sm:$0xf]
        %v1214 = vld [vmem:[%s7 + $0x2c] sm:$0xf]
        %v1215 = vld [vmem:[%s7 + $0x30] sm:$0xf]
        %v1216 = vld [vmem:[%s7 + $0x34] sm:$0xf]
        %v1217 = vld [vmem:[%s7 + $0x38] sm:$0xf]
        %v1218 = vld [vmem:[%s7 + $0x3c] sm:$0xf]
        %v1219 = vld [vmem:[%s7 + $0x40] sm:$0xf]
        %v1220 = vld [vmem:[%s7 + $0x44] sm:$0xf]
        %v1221 = vld [vmem:[%s7 + $0x48] sm:$0xf]
        %v1222 = vld [vmem:[%s7 + $0x4c] sm:$0xf]
        %v1223 = vpack.c.bf16 %v1191, %v1190
        %v1224 = vpack.c.bf16 %v1193, %v1192
        %v1225 = vpack.c.bf16 %v1195, %v1194
        %v1226 = vpack.c.bf16 %v1197, %v1196
        %v1227 = vpack.c.bf16 %v1199, %v1198
        %v1248 = vunpack.c.l.b16 %v1203
        %v1249 = vunpack.c.l.b16 %v1204
        %v1250 = vunpack.c.l.b16 %v1205
        %v1251 = vunpack.c.l.b16 %v1206
        %v1252 = vunpack.c.l.b16 %v1207
        %v1253 = vunpack.c.l.b16 %v1208
        %v1254 = vunpack.c.l.b16 %v1209
        %v1255 = vunpack.c.l.b16 %v1210
        %v1256 = vunpack.c.l.b16 %v1211
        %v1257 = vunpack.c.l.b16 %v1212
        %v1258 = vunpack.c.l.b16 %v1213
        %v1259 = vunpack.c.l.b16 %v1214
        %v1260 = vunpack.c.l.b16 %v1215
        %v1261 = vunpack.c.l.b16 %v1216
        %v1262 = vunpack.c.l.b16 %v1217
        %v1263 = vunpack.c.l.b16 %v1218
        %v1264 = vunpack.c.l.b16 %v1219
        %v1265 = vunpack.c.l.b16 %v1220
        %v1266 = vunpack.c.l.b16 %v1221
        %v1267 = vunpack.c.l.b16 %v1222
        %v1268 = vpack.c.b16 %v1249, %v1248
        %v1269 = vpack.c.b16 %v1251, %v1250
        %v1270 = vpack.c.b16 %v1253, %v1252
        %v1271 = vpack.c.b16 %v1255, %v1254
        %v1272 = vpack.c.b16 %v1257, %v1256
        %v1273 = vpack.c.b16 %v1259, %v1258
        %v1274 = vpack.c.b16 %v1261, %v1260
        %v1275 = vpack.c.b16 %v1263, %v1262
        %v1276 = vpack.c.b16 %v1265, %v1264
        %v1277 = vpack.c.b16 %v1267, %v1266
        %v1279 = vsel %vm821, %v1268, 0
        %v1282 = vsel %vm821, %v1269, 0
        %v1285 = vsel %vm821, %v1270, 0
        %v1288 = vsel %vm821, %v1271, 0
        %v1291 = vsel %vm821, %v1272, 0
        %v1294 = vsel %vm821, %v1273, 0
        %v1297 = vsel %vm821, %v1274, 0
        %v1300 = vsel %vm821, %v1275, 0
        %v1303 = vsel %vm821, %v1276, 0
        %v1306 = vsel %vm821, %v1277, 0
        %1308 = vmatprep.subr.bf16.mxu0 0
        %1309 = vmatpush1.bf16.msra.mxu0 %v1223
        %1310 = vmatprep.subr.bf16.mxu0 0
        %1311 = vmatpush1.bf16.msra.mxu0 %v1224
        %1312 = vmatprep.subr.bf16.mxu0 0
        %1313 = vmatpush1.bf16.msra.mxu0 %v1225
        %1314 = vmatprep.subr.bf16.mxu0 0
        %1315 = vmatpush1.bf16.msra.mxu0 %v1226
        %1316 = vmatprep.subr.bf16.mxu0 0
        %1317 = vmatpush1.bf16.msra.mxu0 %v1227
        %1318 = vmatprep.subr.bf16.mxu0 0
        %1319 = vmatpush1.bf16.msra.mxu0 0
        %1320 = vmatprep.subr.bf16.mxu0 0
        %1321 = vmatpush1.bf16.msra.mxu0 0
        %1322 = vmatprep.subr.bf16.mxu0 0
        %1323 = vmatpush1.bf16.msra.mxu0 0
        %1324 = vmatprep.subr.bf16.mxu0 0
        %1325 = vmatpush1.bf16.msra.mxu0 0
        %1326 = vmatprep.subr.bf16.mxu0 0
        %1327 = vmatpush1.bf16.msra.mxu0 0
        %1328 = vmatprep.subr.bf16.mxu0 0
        %1329 = vmatpush1.bf16.msra.mxu0 0
        %1330 = vmatprep.subr.bf16.mxu0 0
        %1331 = vmatpush1.bf16.msra.mxu0 0
        %1332 = vmatprep.subr.bf16.mxu0 0
        %1333 = vmatpush1.bf16.msra.mxu0 0
        %1334 = vmatprep.subr.bf16.mxu0 0
        %1335 = vmatpush1.bf16.msra.mxu0 0
        %1336 = vmatprep.subr.bf16.mxu0 0
        %1337 = vmatpush1.bf16.msra.mxu0 0
        %1338 = vmatprep.subr.bf16.mxu0 0
        %1339 = vmatpush1.bf16.msra.mxu0 0
        %1340 = vmatprep.mubr.bf16.mxu0 0
        %1341 = vmatmul.mubr.bf16.gmra.mrb[0].mxu0 %v1279
        %v1342 = vpop.f32.mrb[0].mxu0
        %v1343 = vadd.f32 0.0, %v1342
        %v1344 = vpop.f32.mrb[0].mxu0
        %v1345 = vpop.f32.mrb[0].mxu0
        %v1346 = vadd.f32 0.0, %v1345
        %v1347 = vpop.f32.mrb[0].mxu0
        %1348 = vmatprep.mubr.bf16.mxu0 0
        %1349 = vmatmul.mubr.bf16.gmra.mrb[0].mxu0 %v1282
        %v1350 = vpop.f32.mrb[0].mxu0
        %v1351 = vadd.f32 0.0, %v1350
        %v1352 = vpop.f32.mrb[0].mxu0
        %v1353 = vpop.f32.mrb[0].mxu0
        %v1354 = vadd.f32 0.0, %v1353
        %v1355 = vpop.f32.mrb[0].mxu0
        %1356 = vmatprep.mubr.bf16.mxu0 0
        %1357 = vmatmul.mubr.bf16.gmra.mrb[0].mxu0 %v1285
        %v1358 = vpop.f32.mrb[0].mxu0
        %v1359 = vadd.f32 0.0, %v1358
        %v1360 = vpop.f32.mrb[0].mxu0
        %v1361 = vpop.f32.mrb[0].mxu0
        %v1362 = vadd.f32 0.0, %v1361
        %v1363 = vpop.f32.mrb[0].mxu0
        %1364 = vmatprep.mubr.bf16.mxu0 0
        %1365 = vmatmul.mubr.bf16.gmra.mrb[0].mxu0 %v1288
        %v1366 = vpop.f32.mrb[0].mxu0
        %v1367 = vadd.f32 0.0, %v1366
        %v1368 = vpop.f32.mrb[0].mxu0
        %v1369 = vpop.f32.mrb[0].mxu0
        %v1370 = vadd.f32 0.0, %v1369
        %v1371 = vpop.f32.mrb[0].mxu0
        %1372 = vmatprep.mubr.bf16.mxu0 0
        %1373 = vmatmul.mubr.bf16.gmra.mrb[0].mxu0 %v1291
        %v1374 = vpop.f32.mrb[0].mxu0
        %v1375 = vadd.f32 0.0, %v1374
        %v1376 = vpop.f32.mrb[0].mxu0
        %v1377 = vpop.f32.mrb[0].mxu0
        %v1378 = vadd.f32 0.0, %v1377
        %v1379 = vpop.f32.mrb[0].mxu0
        %1380 = vmatprep.mubr.bf16.mxu0 0
        %1381 = vmatmul.mubr.bf16.gmra.mrb[0].mxu0 %v1294
        %v1382 = vpop.f32.mrb[0].mxu0
        %v1383 = vadd.f32 0.0, %v1382
        %v1384 = vpop.f32.mrb[0].mxu0
        %v1385 = vpop.f32.mrb[0].mxu0
        %v1386 = vadd.f32 0.0, %v1385
        %v1387 = vpop.f32.mrb[0].mxu0
        %1388 = vmatprep.mubr.bf16.mxu0 0
        %1389 = vmatmul.mubr.bf16.gmra.mrb[0].mxu0 %v1297
        %v1390 = vpop.f32.mrb[0].mxu0
        %v1391 = vadd.f32 0.0, %v1390
        %v1392 = vpop.f32.mrb[0].mxu0
        %v1393 = vpop.f32.mrb[0].mxu0
        %v1394 = vadd.f32 0.0, %v1393
        %v1395 = vpop.f32.mrb[0].mxu0
        %1396 = vmatprep.mubr.bf16.mxu0 0
        %1397 = vmatmul.mubr.bf16.gmra.mrb[0].mxu0 %v1300
        %v1398 = vpop.f32.mrb[0].mxu0
        %v1399 = vadd.f32 0.0, %v1398
        %v1400 = vpop.f32.mrb[0].mxu0
        %v1401 = vpop.f32.mrb[0].mxu0
        %v1402 = vadd.f32 0.0, %v1401
        %v1403 = vpop.f32.mrb[0].mxu0
        %1404 = vmatprep.mubr.bf16.mxu0 0
        %1405 = vmatmul.mubr.bf16.gmra.mrb[0].mxu0 %v1303
        %v1406 = vpop.f32.mrb[0].mxu0
        %v1407 = vadd.f32 0.0, %v1406
        %v1408 = vpop.f32.mrb[0].mxu0
        %v1409 = vpop.f32.mrb[0].mxu0
        %v1410 = vadd.f32 0.0, %v1409
        %v1411 = vpop.f32.mrb[0].mxu0
        %1412 = vmatprep.mubr.bf16.mxu0 0
        %1413 = vmatmul.mubr.bf16.gmra.mrb[0].mxu0 %v1306
        %v1414 = vpop.f32.mrb[0].mxu0
        %v1415 = vadd.f32 0.0, %v1414
        %v1416 = vpop.f32.mrb[0].mxu0
        %v1417 = vpop.f32.mrb[0].mxu0
        %v1418 = vadd.f32 0.0, %v1417
        %v1419 = vpop.f32.mrb[0].mxu0
        %1420 = vdwg.mxu0
        %1421 = vrot.lane.b32.xlu0 %v1343, 1
        %v1422 = vpop.permute.xlu0 %1421
        %1423 = vrot.lane.b32.xlu0 %v1346, 1
        %v1424 = vpop.permute.xlu0 %1423
        %1425 = vrot.lane.b32.xlu0 %v1351, 1
        %v1426 = vpop.permute.xlu0 %1425
        %1427 = vrot.lane.b32.xlu0 %v1354, 1
        %v1428 = vpop.permute.xlu0 %1427
        %1429 = vrot.lane.b32.xlu0 %v1359, 1
        %v1430 = vpop.permute.xlu0 %1429
        %1431 = vrot.lane.b32.xlu0 %v1362, 1
        %v1432 = vpop.permute.xlu0 %1431
        %1433 = vrot.lane.b32.xlu0 %v1367, 1
        %v1434 = vpop.permute.xlu0 %1433
        %1435 = vrot.lane.b32.xlu0 %v1370, 1
        %v1436 = vpop.permute.xlu0 %1435
        %1437 = vrot.lane.b32.xlu0 %v1375, 1
        %v1438 = vpop.permute.xlu0 %1437
        %1439 = vrot.lane.b32.xlu0 %v1378, 1
        %v1440 = vpop.permute.xlu0 %1439
        %v1441 = vsel %vm1202, %v1422, 0.0
        %v1442 = vsel %vm1202, %v1424, 0.0
        %v1443 = vsel %vm1202, %v1426, 0.0
        %v1444 = vsel %vm1202, %v1428, 0.0
        %v1445 = vsel %vm1202, %v1430, 0.0
        %v1446 = vsel %vm1202, %v1432, 0.0
        %v1447 = vsel %vm1202, %v1434, 0.0
        %v1448 = vsel %vm1202, %v1436, 0.0
        %v1449 = vsel %vm1202, %v1438, 0.0
        %v1450 = vsel %vm1202, %v1440, 0.0
        %v1451 = vadd.f32 %v1441, %v1383
        %v1452 = vadd.f32 %v1442, %v1386
        %v1453 = vadd.f32 %v1443, %v1391
        %v1454 = vadd.f32 %v1444, %v1394
        %v1455 = vadd.f32 %v1445, %v1399
        %v1456 = vadd.f32 %v1446, %v1402
        %v1457 = vadd.f32 %v1447, %v1407
        %v1458 = vadd.f32 %v1448, %v1410
        %v1459 = vadd.f32 %v1449, %v1415
        %v1460 = vadd.f32 %v1450, %v1418
        %v1461 = vld [vmem:[%s8] sm:$0xff]
        %v1462 = vld [vmem:[%s8 + $0x8] sm:$0xff]
        %v1463 = vld [vmem:[%s8 + $0x10] sm:$0xff]
        %v1464 = vld [vmem:[%s8 + $0x18] sm:$0xff]
        %v1465 = vld [vmem:[%s8 + $0x20] sm:$0xff]
        %v1466 = vld [vmem:[%s8 + $0x28] sm:$0xff]
        %v1467 = vld [vmem:[%s8 + $0x30] sm:$0xff]
        %v1468 = vld [vmem:[%s8 + $0x38] sm:$0xff]
        %v1469 = vld [vmem:[%s8 + $0x40] sm:$0xff]
        %v1470 = vld [vmem:[%s8 + $0x48] sm:$0xff]
        %1472 = vset.pattern.permute.xlu0 0
        %1473 = vperm.xlu0 %1472, %v1461
        %v1474 = vpop.permute.xlu0 %1473
        %1477 = vset.pattern.permute.xlu0 0
        %1478 = vperm.xlu0 %1477, %v1462
        %v1479 = vpop.permute.xlu0 %1478
        %1482 = vset.pattern.permute.xlu0 0
        %1483 = vperm.xlu0 %1482, %v1463
        %v1484 = vpop.permute.xlu0 %1483
        %1487 = vset.pattern.permute.xlu0 0
        %1488 = vperm.xlu0 %1487, %v1464
        %v1489 = vpop.permute.xlu0 %1488
        %1492 = vset.pattern.permute.xlu0 0
        %1493 = vperm.xlu0 %1492, %v1465
        %v1494 = vpop.permute.xlu0 %1493
        %1497 = vset.pattern.permute.xlu0 0
        %1498 = vperm.xlu0 %1497, %v1466
        %v1499 = vpop.permute.xlu0 %1498
        %1502 = vset.pattern.permute.xlu0 0
        %1503 = vperm.xlu0 %1502, %v1467
        %v1504 = vpop.permute.xlu0 %1503
        %1507 = vset.pattern.permute.xlu0 0
        %1508 = vperm.xlu0 %1507, %v1468
        %v1509 = vpop.permute.xlu0 %1508
        %1512 = vset.pattern.permute.xlu0 0
        %1513 = vperm.xlu0 %1512, %v1469
        %v1514 = vpop.permute.xlu0 %1513
        %1517 = vset.pattern.permute.xlu0 0
        %1518 = vperm.xlu0 %1517, %v1470
        %v1519 = vpop.permute.xlu0 %1518
        %v1521 = vadd.f32 %v1451, %v1474
        %v1522 = vadd.f32 %v1452, %v1479
        %v1523 = vadd.f32 %v1453, %v1484
        %v1524 = vadd.f32 %v1454, %v1489
        %v1525 = vadd.f32 %v1455, %v1494
        %v1526 = vadd.f32 %v1456, %v1499
        %v1527 = vadd.f32 %v1457, %v1504
        %v1528 = vadd.f32 %v1458, %v1509
        %v1529 = vadd.f32 %v1459, %v1514
        %v1530 = vadd.f32 %v1460, %v1519
        %v1531 = vmax.f32 %v1521, 0.0
        %v1532 = vmax.f32 %v1522, 0.0
        %v1533 = vmax.f32 %v1523, 0.0
        %v1534 = vmax.f32 %v1524, 0.0
        %v1535 = vmax.f32 %v1525, 0.0
        %v1536 = vmax.f32 %v1526, 0.0
        %v1537 = vmax.f32 %v1527, 0.0
        %v1538 = vmax.f32 %v1528, 0.0
        %v1539 = vmax.f32 %v1529, 0.0
        %v1540 = vmax.f32 %v1530, 0.0
        %v1541 = vld [vmem:[%s9] sm:$0xf]
        %v1542 = vld [vmem:[%s9 + $0x4] sm:$0xf]
        %v1543 = vld [vmem:[%s9 + $0x8] sm:$0xf]
        %v1544 = vld [vmem:[%s9 + $0xc] sm:$0xf]
        %v1545 = vld [vmem:[%s9 + $0x10] sm:$0xf]
        %v1546 = vld [vmem:[%s9 + $0x14] sm:$0xf]
        %v1547 = vld [vmem:[%s9 + $0x18] sm:$0xf]
        %v1548 = vld [vmem:[%s9 + $0x1c] sm:$0xf]
        %v1549 = vld [vmem:[%s9 + $0x20] sm:$0xf]
        %v1550 = vld [vmem:[%s9 + $0x24] sm:$0xf]
        %v1551 = vld [vmem:[%s9 + $0x28] sm:$0xf]
        %v1552 = vld [vmem:[%s9 + $0x2c] sm:$0xf]
        %v1553 = vld [vmem:[%s9 + $0x30] sm:$0xf]
        %v1554 = vld [vmem:[%s9 + $0x34] sm:$0xf]
        %v1555 = vld [vmem:[%s9 + $0x38] sm:$0xf]
        %v1556 = vld [vmem:[%s9 + $0x3c] sm:$0xf]
        %v1557 = vld [vmem:[%s9 + $0x40] sm:$0xf]
        %v1558 = vld [vmem:[%s9 + $0x44] sm:$0xf]
        %v1559 = vld [vmem:[%s9 + $0x48] sm:$0xf]
        %v1560 = vld [vmem:[%s9 + $0x4c] sm:$0xf]
        %v1561 = vpack.c.bf16 %v1532, %v1531
        %v1562 = vpack.c.bf16 %v1534, %v1533
        %v1563 = vpack.c.bf16 %v1536, %v1535
        %v1564 = vpack.c.bf16 %v1538, %v1537
        %v1565 = vpack.c.bf16 %v1540, %v1539
        %v1586 = vunpack.c.l.b16 %v1541
        %v1587 = vunpack.c.l.b16 %v1542
        %v1588 = vunpack.c.l.b16 %v1543
        %v1589 = vunpack.c.l.b16 %v1544
        %v1590 = vunpack.c.l.b16 %v1545
        %v1591 = vunpack.c.l.b16 %v1546
        %v1592 = vunpack.c.l.b16 %v1547
        %v1593 = vunpack.c.l.b16 %v1548
        %v1594 = vunpack.c.l.b16 %v1549
        %v1595 = vunpack.c.l.b16 %v1550
        %v1596 = vunpack.c.l.b16 %v1551
        %v1597 = vunpack.c.l.b16 %v1552
        %v1598 = vunpack.c.l.b16 %v1553
        %v1599 = vunpack.c.l.b16 %v1554
        %v1600 = vunpack.c.l.b16 %v1555
        %v1601 = vunpack.c.l.b16 %v1556
        %v1602 = vunpack.c.l.b16 %v1557
        %v1603 = vunpack.c.l.b16 %v1558
        %v1604 = vunpack.c.l.b16 %v1559
        %v1605 = vunpack.c.l.b16 %v1560
        %v1606 = vpack.c.b16 %v1587, %v1586
        %v1607 = vpack.c.b16 %v1589, %v1588
        %v1608 = vpack.c.b16 %v1591, %v1590
        %v1609 = vpack.c.b16 %v1593, %v1592
        %v1610 = vpack.c.b16 %v1595, %v1594
        %v1611 = vpack.c.b16 %v1597, %v1596
        %v1612 = vpack.c.b16 %v1599, %v1598
        %v1613 = vpack.c.b16 %v1601, %v1600
        %v1614 = vpack.c.b16 %v1603, %v1602
        %v1615 = vpack.c.b16 %v1605, %v1604
        %v1617 = vsel %vm821, %v1606, 0
        %v1620 = vsel %vm821, %v1607, 0
        %v1623 = vsel %vm821, %v1608, 0
        %v1626 = vsel %vm821, %v1609, 0
        %v1629 = vsel %vm821, %v1610, 0
        %v1632 = vsel %vm821, %v1611, 0
        %v1635 = vsel %vm821, %v1612, 0
        %v1638 = vsel %vm821, %v1613, 0
        %v1641 = vsel %vm821, %v1614, 0
        %v1644 = vsel %vm821, %v1615, 0
        %1646 = vmatprep.subr.bf16.mxu0 0
        %1647 = vmatpush1.bf16.msra.mxu0 %v1561
        %1648 = vmatprep.subr.bf16.mxu0 0
        %1649 = vmatpush1.bf16.msra.mxu0 %v1562
        %1650 = vmatprep.subr.bf16.mxu0 0
        %1651 = vmatpush1.bf16.msra.mxu0 %v1563
        %1652 = vmatprep.subr.bf16.mxu0 0
        %1653 = vmatpush1.bf16.msra.mxu0 %v1564
        %1654 = vmatprep.subr.bf16.mxu0 0
        %1655 = vmatpush1.bf16.msra.mxu0 %v1565
        %1656 = vmatprep.subr.bf16.mxu0 0
        %1657 = vmatpush1.bf16.msra.mxu0 0
        %1658 = vmatprep.subr.bf16.mxu0 0
        %1659 = vmatpush1.bf16.msra.mxu0 0
        %1660 = vmatprep.subr.bf16.mxu0 0
        %1661 = vmatpush1.bf16.msra.mxu0 0
        %1662 = vmatprep.subr.bf16.mxu0 0
        %1663 = vmatpush1.bf16.msra.mxu0 0
        %1664 = vmatprep.subr.bf16.mxu0 0
        %1665 = vmatpush1.bf16.msra.mxu0 0
        %1666 = vmatprep.subr.bf16.mxu0 0
        %1667 = vmatpush1.bf16.msra.mxu0 0
        %1668 = vmatprep.subr.bf16.mxu0 0
        %1669 = vmatpush1.bf16.msra.mxu0 0
        %1670 = vmatprep.subr.bf16.mxu0 0
        %1671 = vmatpush1.bf16.msra.mxu0 0
        %1672 = vmatprep.subr.bf16.mxu0 0
        %1673 = vmatpush1.bf16.msra.mxu0 0
        %1674 = vmatprep.subr.bf16.mxu0 0
        %1675 = vmatpush1.bf16.msra.mxu0 0
        %1676 = vmatprep.subr.bf16.mxu0 0
        %1677 = vmatpush1.bf16.msra.mxu0 0
        %1678 = vmatprep.mubr.bf16.mxu0 0
        %1679 = vmatmul.mubr.bf16.gmra.mrb[0].mxu0 %v1617
        %v1680 = vpop.f32.mrb[0].mxu0
        %v1681 = vadd.f32 0.0, %v1680
        %v1682 = vpop.f32.mrb[0].mxu0
        %v1683 = vpop.f32.mrb[0].mxu0
        %v1684 = vadd.f32 0.0, %v1683
        %v1685 = vpop.f32.mrb[0].mxu0
        %1686 = vmatprep.mubr.bf16.mxu0 0
        %1687 = vmatmul.mubr.bf16.gmra.mrb[0].mxu0 %v1620
        %v1688 = vpop.f32.mrb[0].mxu0
        %v1689 = vadd.f32 0.0, %v1688
        %v1690 = vpop.f32.mrb[0].mxu0
        %v1691 = vpop.f32.mrb[0].mxu0
        %v1692 = vadd.f32 0.0, %v1691
        %v1693 = vpop.f32.mrb[0].mxu0
        %1694 = vmatprep.mubr.bf16.mxu0 0
        %1695 = vmatmul.mubr.bf16.gmra.mrb[0].mxu0 %v1623
        %v1696 = vpop.f32.mrb[0].mxu0
        %v1697 = vadd.f32 0.0, %v1696
        %v1698 = vpop.f32.mrb[0].mxu0
        %v1699 = vpop.f32.mrb[0].mxu0
        %v1700 = vadd.f32 0.0, %v1699
        %v1701 = vpop.f32.mrb[0].mxu0
        %1702 = vmatprep.mubr.bf16.mxu0 0
        %1703 = vmatmul.mubr.bf16.gmra.mrb[0].mxu0 %v1626
        %v1704 = vpop.f32.mrb[0].mxu0
        %v1705 = vadd.f32 0.0, %v1704
        %v1706 = vpop.f32.mrb[0].mxu0
        %v1707 = vpop.f32.mrb[0].mxu0
        %v1708 = vadd.f32 0.0, %v1707
        %v1709 = vpop.f32.mrb[0].mxu0
        %1710 = vmatprep.mubr.bf16.mxu0 0
        %1711 = vmatmul.mubr.bf16.gmra.mrb[0].mxu0 %v1629
        %v1712 = vpop.f32.mrb[0].mxu0
        %v1713 = vadd.f32 0.0, %v1712
        %v1714 = vpop.f32.mrb[0].mxu0
        %v1715 = vpop.f32.mrb[0].mxu0
        %v1716 = vadd.f32 0.0, %v1715
        %v1717 = vpop.f32.mrb[0].mxu0
        %1718 = vmatprep.mubr.bf16.mxu0 0
        %1719 = vmatmul.mubr.bf16.gmra.mrb[0].mxu0 %v1632
        %v1720 = vpop.f32.mrb[0].mxu0
        %v1721 = vadd.f32 0.0, %v1720
        %v1722 = vpop.f32.mrb[0].mxu0
        %v1723 = vpop.f32.mrb[0].mxu0
        %v1724 = vadd.f32 0.0, %v1723
        %v1725 = vpop.f32.mrb[0].mxu0
        %1726 = vmatprep.mubr.bf16.mxu0 0
        %1727 = vmatmul.mubr.bf16.gmra.mrb[0].mxu0 %v1635
        %v1728 = vpop.f32.mrb[0].mxu0
        %v1729 = vadd.f32 0.0, %v1728
        %v1730 = vpop.f32.mrb[0].mxu0
        %v1731 = vpop.f32.mrb[0].mxu0
        %v1732 = vadd.f32 0.0, %v1731
        %v1733 = vpop.f32.mrb[0].mxu0
        %1734 = vmatprep.mubr.bf16.mxu0 0
        %1735 = vmatmul.mubr.bf16.gmra.mrb[0].mxu0 %v1638
        %v1736 = vpop.f32.mrb[0].mxu0
        %v1737 = vadd.f32 0.0, %v1736
        %v1738 = vpop.f32.mrb[0].mxu0
        %v1739 = vpop.f32.mrb[0].mxu0
        %v1740 = vadd.f32 0.0, %v1739
        %v1741 = vpop.f32.mrb[0].mxu0
        %1742 = vmatprep.mubr.bf16.mxu0 0
        %1743 = vmatmul.mubr.bf16.gmra.mrb[0].mxu0 %v1641
        %v1744 = vpop.f32.mrb[0].mxu0
        %v1745 = vadd.f32 0.0, %v1744
        %v1746 = vpop.f32.mrb[0].mxu0
        %v1747 = vpop.f32.mrb[0].mxu0
        %v1748 = vadd.f32 0.0, %v1747
        %v1749 = vpop.f32.mrb[0].mxu0
        %1750 = vmatprep.mubr.bf16.mxu0 0
        %1751 = vmatmul.mubr.bf16.gmra.mrb[0].mxu0 %v1644
        %v1752 = vpop.f32.mrb[0].mxu0
        %v1753 = vadd.f32 0.0, %v1752
        %v1754 = vpop.f32.mrb[0].mxu0
        %v1755 = vpop.f32.mrb[0].mxu0
        %v1756 = vadd.f32 0.0, %v1755
        %v1757 = vpop.f32.mrb[0].mxu0
        %1758 = vdwg.mxu0
        %1759 = vrot.lane.b32.xlu0 %v1681, 1
        %v1760 = vpop.permute.xlu0 %1759
        %1761 = vrot.lane.b32.xlu0 %v1684, 1
        %v1762 = vpop.permute.xlu0 %1761
        %1763 = vrot.lane.b32.xlu0 %v1689, 1
        %v1764 = vpop.permute.xlu0 %1763
        %1765 = vrot.lane.b32.xlu0 %v1692, 1
        %v1766 = vpop.permute.xlu0 %1765
        %1767 = vrot.lane.b32.xlu0 %v1697, 1
        %v1768 = vpop.permute.xlu0 %1767
        %1769 = vrot.lane.b32.xlu0 %v1700, 1
        %v1770 = vpop.permute.xlu0 %1769
        %1771 = vrot.lane.b32.xlu0 %v1705, 1
        %v1772 = vpop.permute.xlu0 %1771
        %1773 = vrot.lane.b32.xlu0 %v1708, 1
        %v1774 = vpop.permute.xlu0 %1773
        %1775 = vrot.lane.b32.xlu0 %v1713, 1
        %v1776 = vpop.permute.xlu0 %1775
        %1777 = vrot.lane.b32.xlu0 %v1716, 1
        %v1778 = vpop.permute.xlu0 %1777
        %v1779 = vsel %vm1202, %v1760, 0.0
        %v1780 = vsel %vm1202, %v1762, 0.0
        %v1781 = vsel %vm1202, %v1764, 0.0
        %v1782 = vsel %vm1202, %v1766, 0.0
        %v1783 = vsel %vm1202, %v1768, 0.0
        %v1784 = vsel %vm1202, %v1770, 0.0
        %v1785 = vsel %vm1202, %v1772, 0.0
        %v1786 = vsel %vm1202, %v1774, 0.0
        %v1787 = vsel %vm1202, %v1776, 0.0
        %v1788 = vsel %vm1202, %v1778, 0.0
        %v1789 = vadd.f32 %v1779, %v1721
        %v1790 = vadd.f32 %v1780, %v1724
        %v1791 = vadd.f32 %v1781, %v1729
        %v1792 = vadd.f32 %v1782, %v1732
        %v1793 = vadd.f32 %v1783, %v1737
        %v1794 = vadd.f32 %v1784, %v1740
        %v1795 = vadd.f32 %v1785, %v1745
        %v1796 = vadd.f32 %v1786, %v1748
        %v1797 = vadd.f32 %v1787, %v1753
        %v1798 = vadd.f32 %v1788, %v1756
        %v1799 = vld [vmem:[%s10] sm:$0xff]
        %v1800 = vld [vmem:[%s10 + $0x8] sm:$0xff]
        %v1801 = vld [vmem:[%s10 + $0x10] sm:$0xff]
        %v1802 = vld [vmem:[%s10 + $0x18] sm:$0xff]
        %v1803 = vld [vmem:[%s10 + $0x20] sm:$0xff]
        %v1804 = vld [vmem:[%s10 + $0x28] sm:$0xff]
        %v1805 = vld [vmem:[%s10 + $0x30] sm:$0xff]
        %v1806 = vld [vmem:[%s10 + $0x38] sm:$0xff]
        %v1807 = vld [vmem:[%s10 + $0x40] sm:$0xff]
        %v1808 = vld [vmem:[%s10 + $0x48] sm:$0xff]
        %1810 = vset.pattern.permute.xlu0 0
        %1811 = vperm.xlu0 %1810, %v1799
        %v1812 = vpop.permute.xlu0 %1811
        %1815 = vset.pattern.permute.xlu0 0
        %1816 = vperm.xlu0 %1815, %v1800
        %v1817 = vpop.permute.xlu0 %1816
        %1820 = vset.pattern.permute.xlu0 0
        %1821 = vperm.xlu0 %1820, %v1801
        %v1822 = vpop.permute.xlu0 %1821
        %1825 = vset.pattern.permute.xlu0 0
        %1826 = vperm.xlu0 %1825, %v1802
        %v1827 = vpop.permute.xlu0 %1826
        %1830 = vset.pattern.permute.xlu0 0
        %1831 = vperm.xlu0 %1830, %v1803
        %v1832 = vpop.permute.xlu0 %1831
        %1835 = vset.pattern.permute.xlu0 0
        %1836 = vperm.xlu0 %1835, %v1804
        %v1837 = vpop.permute.xlu0 %1836
        %1840 = vset.pattern.permute.xlu0 0
        %1841 = vperm.xlu0 %1840, %v1805
        %v1842 = vpop.permute.xlu0 %1841
        %1845 = vset.pattern.permute.xlu0 0
        %1846 = vperm.xlu0 %1845, %v1806
        %v1847 = vpop.permute.xlu0 %1846
        %1850 = vset.pattern.permute.xlu0 0
        %1851 = vperm.xlu0 %1850, %v1807
        %v1852 = vpop.permute.xlu0 %1851
        %1855 = vset.pattern.permute.xlu0 0
        %1856 = vperm.xlu0 %1855, %v1808
        %v1857 = vpop.permute.xlu0 %1856
        %v1859 = vadd.f32 %v1789, %v1812
        %v1860 = vadd.f32 %v1790, %v1817
        %v1861 = vadd.f32 %v1791, %v1822
        %v1862 = vadd.f32 %v1792, %v1827
        %v1863 = vadd.f32 %v1793, %v1832
        %v1864 = vadd.f32 %v1794, %v1837
        %v1865 = vadd.f32 %v1795, %v1842
        %v1866 = vadd.f32 %v1796, %v1847
        %v1867 = vadd.f32 %v1797, %v1852
        %v1868 = vadd.f32 %v1798, %v1857
        %v1869 = vmax.f32 %v1859, 0.0
        %v1870 = vmax.f32 %v1860, 0.0
        %v1871 = vmax.f32 %v1861, 0.0
        %v1872 = vmax.f32 %v1862, 0.0
        %v1873 = vmax.f32 %v1863, 0.0
        %v1874 = vmax.f32 %v1864, 0.0
        %v1875 = vmax.f32 %v1865, 0.0
        %v1876 = vmax.f32 %v1866, 0.0
        %v1877 = vmax.f32 %v1867, 0.0
        %v1878 = vmax.f32 %v1868, 0.0
        %v1879 = vadd.f32 %v910, %v1869
        %v1880 = vadd.f32 %v911, %v1870
        %v1881 = vadd.f32 %v912, %v1871
        %v1882 = vadd.f32 %v913, %v1872
        %v1883 = vadd.f32 %v914, %v1873
        %v1884 = vadd.f32 %v915, %v1874
        %v1885 = vadd.f32 %v916, %v1875
        %v1886 = vadd.f32 %v917, %v1876
        %v1887 = vadd.f32 %v918, %v1877
        %v1888 = vadd.f32 %v919, %v1878
        %v1889 = vadd.f32 %v1869, %v1190
        %v1890 = vadd.f32 %v1870, %v1191
        %v1891 = vadd.f32 %v1871, %v1192
        %v1892 = vadd.f32 %v1872, %v1193
        %v1893 = vadd.f32 %v1873, %v1194
        %v1894 = vadd.f32 %v1874, %v1195
        %v1895 = vadd.f32 %v1875, %v1196
        %v1896 = vadd.f32 %v1876, %v1197
        %v1897 = vadd.f32 %v1877, %v1198
        %v1898 = vadd.f32 %v1878, %v1199
        %v1899 = vmax.f32 %v1889, 0.0
        %v1900 = vmax.f32 %v1890, 0.0
        %v1901 = vmax.f32 %v1891, 0.0
        %v1902 = vmax.f32 %v1892, 0.0
        %v1903 = vmax.f32 %v1893, 0.0
        %v1904 = vmax.f32 %v1894, 0.0
        %v1905 = vmax.f32 %v1895, 0.0
        %v1906 = vmax.f32 %v1896, 0.0
        %v1907 = vmax.f32 %v1897, 0.0
        %v1908 = vmax.f32 %v1898, 0.0
        %vm1909 = vcmp.ge.s32.totalorder %v1201, 2
        %s1910 = scalar_lea.vmem %s7, 80
        %v1911 = vld [vmem:[%s1910] sm:$0xf]
        %v1912 = vld [vmem:[%s1910 + $0x4] sm:$0xf]
        %v1913 = vld [vmem:[%s1910 + $0x8] sm:$0xf]
        %v1914 = vld [vmem:[%s1910 + $0xc] sm:$0xf]
        %v1915 = vld [vmem:[%s1910 + $0x10] sm:$0xf]
        %v1916 = vld [vmem:[%s1910 + $0x14] sm:$0xf]
        %v1917 = vld [vmem:[%s1910 + $0x18] sm:$0xf]
        %v1918 = vld [vmem:[%s1910 + $0x1c] sm:$0xf]
        %v1919 = vld [vmem:[%s1910 + $0x20] sm:$0xf]
        %v1920 = vld [vmem:[%s1910 + $0x24] sm:$0xf]
        %v1921 = vld [vmem:[%s1910 + $0x28] sm:$0xf]
        %v1922 = vld [vmem:[%s1910 + $0x2c] sm:$0xf]
        %v1923 = vld [vmem:[%s1910 + $0x30] sm:$0xf]
        %v1924 = vld [vmem:[%s1910 + $0x34] sm:$0xf]
        %v1925 = vld [vmem:[%s1910 + $0x38] sm:$0xf]
        %v1926 = vld [vmem:[%s1910 + $0x3c] sm:$0xf]
        %v1927 = vld [vmem:[%s1910 + $0x40] sm:$0xf]
        %v1928 = vld [vmem:[%s1910 + $0x44] sm:$0xf]
        %v1929 = vld [vmem:[%s1910 + $0x48] sm:$0xf]
        %v1930 = vld [vmem:[%s1910 + $0x4c] sm:$0xf]
        %v1931 = vpack.c.bf16 %v1900, %v1899
        %v1932 = vpack.c.bf16 %v1902, %v1901
        %v1933 = vpack.c.bf16 %v1904, %v1903
        %v1934 = vpack.c.bf16 %v1906, %v1905
        %v1935 = vpack.c.bf16 %v1908, %v1907
        %v1956 = vunpack.c.l.b16 %v1911
        %v1957 = vunpack.c.l.b16 %v1912
        %v1958 = vunpack.c.l.b16 %v1913
        %v1959 = vunpack.c.l.b16 %v1914
        %v1960 = vunpack.c.l.b16 %v1915
        %v1961 = vunpack.c.l.b16 %v1916
        %v1962 = vunpack.c.l.b16 %v1917
        %v1963 = vunpack.c.l.b16 %v1918
        %v1964 = vunpack.c.l.b16 %v1919
        %v1965 = vunpack.c.l.b16 %v1920
        %v1966 = vunpack.c.l.b16 %v1921
        %v1967 = vunpack.c.l.b16 %v1922
        %v1968 = vunpack.c.l.b16 %v1923
        %v1969 = vunpack.c.l.b16 %v1924
        %v1970 = vunpack.c.l.b16 %v1925
        %v1971 = vunpack.c.l.b16 %v1926
        %v1972 = vunpack.c.l.b16 %v1927
        %v1973 = vunpack.c.l.b16 %v1928
        %v1974 = vunpack.c.l.b16 %v1929
        %v1975 = vunpack.c.l.b16 %v1930
        %v1976 = vpack.c.b16 %v1957, %v1956
        %v1977 = vpack.c.b16 %v1959, %v1958
        %v1978 = vpack.c.b16 %v1961, %v1960
        %v1979 = vpack.c.b16 %v1963, %v1962
        %v1980 = vpack.c.b16 %v1965, %v1964
        %v1981 = vpack.c.b16 %v1967, %v1966
        %v1982 = vpack.c.b16 %v1969, %v1968
        %v1983 = vpack.c.b16 %v1971, %v1970
        %v1984 = vpack.c.b16 %v1973, %v1972
        %v1985 = vpack.c.b16 %v1975, %v1974
        %v1987 = vsel %vm821, %v1976, 0
        %v1990 = vsel %vm821, %v1977, 0
        %v1993 = vsel %vm821, %v1978, 0
        %v1996 = vsel %vm821, %v1979, 0
        %v1999 = vsel %vm821, %v1980, 0
        %v2002 = vsel %vm821, %v1981, 0
        %v2005 = vsel %vm821, %v1982, 0
        %v2008 = vsel %vm821, %v1983, 0
        %v2011 = vsel %vm821, %v1984, 0
        %v2014 = vsel %vm821, %v1985, 0
        %2016 = vmatprep.subr.bf16.mxu0 0
        %2017 = vmatpush1.bf16.msra.mxu0 %v1931
        %2018 = vmatprep.subr.bf16.mxu0 0
        %2019 = vmatpush1.bf16.msra.mxu0 %v1932
        %2020 = vmatprep.subr.bf16.mxu0 0
        %2021 = vmatpush1.bf16.msra.mxu0 %v1933
        %2022 = vmatprep.subr.bf16.mxu0 0
        %2023 = vmatpush1.bf16.msra.mxu0 %v1934
        %2024 = vmatprep.subr.bf16.mxu0 0
        %2025 = vmatpush1.bf16.msra.mxu0 %v1935
        %2026 = vmatprep.subr.bf16.mxu0 0
        %2027 = vmatpush1.bf16.msra.mxu0 0
        %2028 = vmatprep.subr.bf16.mxu0 0
        %2029 = vmatpush1.bf16.msra.mxu0 0
        %2030 = vmatprep.subr.bf16.mxu0 0
        %2031 = vmatpush1.bf16.msra.mxu0 0
        %2032 = vmatprep.subr.bf16.mxu0 0
        %2033 = vmatpush1.bf16.msra.mxu0 0
        %2034 = vmatprep.subr.bf16.mxu0 0
        %2035 = vmatpush1.bf16.msra.mxu0 0
        %2036 = vmatprep.subr.bf16.mxu0 0
        %2037 = vmatpush1.bf16.msra.mxu0 0
        %2038 = vmatprep.subr.bf16.mxu0 0
        %2039 = vmatpush1.bf16.msra.mxu0 0
        %2040 = vmatprep.subr.bf16.mxu0 0
        %2041 = vmatpush1.bf16.msra.mxu0 0
        %2042 = vmatprep.subr.bf16.mxu0 0
        %2043 = vmatpush1.bf16.msra.mxu0 0
        %2044 = vmatprep.subr.bf16.mxu0 0
        %2045 = vmatpush1.bf16.msra.mxu0 0
        %2046 = vmatprep.subr.bf16.mxu0 0
        %2047 = vmatpush1.bf16.msra.mxu0 0
        %2048 = vmatprep.mubr.bf16.mxu0 0
        %2049 = vmatmul.mubr.bf16.gmra.mrb[0].mxu0 %v1987
        %v2050 = vpop.f32.mrb[0].mxu0
        %v2051 = vadd.f32 0.0, %v2050
        %v2052 = vpop.f32.mrb[0].mxu0
        %v2053 = vpop.f32.mrb[0].mxu0
        %v2054 = vadd.f32 0.0, %v2053
        %v2055 = vpop.f32.mrb[0].mxu0
        %2056 = vmatprep.mubr.bf16.mxu0 0
        %2057 = vmatmul.mubr.bf16.gmra.mrb[0].mxu0 %v1990
        %v2058 = vpop.f32.mrb[0].mxu0
        %v2059 = vadd.f32 0.0, %v2058
        %v2060 = vpop.f32.mrb[0].mxu0
        %v2061 = vpop.f32.mrb[0].mxu0
        %v2062 = vadd.f32 0.0, %v2061
        %v2063 = vpop.f32.mrb[0].mxu0
        %2064 = vmatprep.mubr.bf16.mxu0 0
        %2065 = vmatmul.mubr.bf16.gmra.mrb[0].mxu0 %v1993
        %v2066 = vpop.f32.mrb[0].mxu0
        %v2067 = vadd.f32 0.0, %v2066
        %v2068 = vpop.f32.mrb[0].mxu0
        %v2069 = vpop.f32.mrb[0].mxu0
        %v2070 = vadd.f32 0.0, %v2069
        %v2071 = vpop.f32.mrb[0].mxu0
        %2072 = vmatprep.mubr.bf16.mxu0 0
        %2073 = vmatmul.mubr.bf16.gmra.mrb[0].mxu0 %v1996
        %v2074 = vpop.f32.mrb[0].mxu0
        %v2075 = vadd.f32 0.0, %v2074
        %v2076 = vpop.f32.mrb[0].mxu0
        %v2077 = vpop.f32.mrb[0].mxu0
        %v2078 = vadd.f32 0.0, %v2077
        %v2079 = vpop.f32.mrb[0].mxu0
        %2080 = vmatprep.mubr.bf16.mxu0 0
        %2081 = vmatmul.mubr.bf16.gmra.mrb[0].mxu0 %v1999
        %v2082 = vpop.f32.mrb[0].mxu0
        %v2083 = vadd.f32 0.0, %v2082
        %v2084 = vpop.f32.mrb[0].mxu0
        %v2085 = vpop.f32.mrb[0].mxu0
        %v2086 = vadd.f32 0.0, %v2085
        %v2087 = vpop.f32.mrb[0].mxu0
        %2088 = vmatprep.mubr.bf16.mxu0 0
        %2089 = vmatmul.mubr.bf16.gmra.mrb[0].mxu0 %v2002
        %v2090 = vpop.f32.mrb[0].mxu0
        %v2091 = vadd.f32 0.0, %v2090
        %v2092 = vpop.f32.mrb[0].mxu0
        %v2093 = vpop.f32.mrb[0].mxu0
        %v2094 = vadd.f32 0.0, %v2093
        %v2095 = vpop.f32.mrb[0].mxu0
        %2096 = vmatprep.mubr.bf16.mxu0 0
        %2097 = vmatmul.mubr.bf16.gmra.mrb[0].mxu0 %v2005
        %v2098 = vpop.f32.mrb[0].mxu0
        %v2099 = vadd.f32 0.0, %v2098
        %v2100 = vpop.f32.mrb[0].mxu0
        %v2101 = vpop.f32.mrb[0].mxu0
        %v2102 = vadd.f32 0.0, %v2101
        %v2103 = vpop.f32.mrb[0].mxu0
        %2104 = vmatprep.mubr.bf16.mxu0 0
        %2105 = vmatmul.mubr.bf16.gmra.mrb[0].mxu0 %v2008
        %v2106 = vpop.f32.mrb[0].mxu0
        %v2107 = vadd.f32 0.0, %v2106
        %v2108 = vpop.f32.mrb[0].mxu0
        %v2109 = vpop.f32.mrb[0].mxu0
        %v2110 = vadd.f32 0.0, %v2109
        %v2111 = vpop.f32.mrb[0].mxu0
        %2112 = vmatprep.mubr.bf16.mxu0 0
        %2113 = vmatmul.mubr.bf16.gmra.mrb[0].mxu0 %v2011
        %v2114 = vpop.f32.mrb[0].mxu0
        %v2115 = vadd.f32 0.0, %v2114
        %v2116 = vpop.f32.mrb[0].mxu0
        %v2117 = vpop.f32.mrb[0].mxu0
        %v2118 = vadd.f32 0.0, %v2117
        %v2119 = vpop.f32.mrb[0].mxu0
        %2120 = vmatprep.mubr.bf16.mxu0 0
        %2121 = vmatmul.mubr.bf16.gmra.mrb[0].mxu0 %v2014
        %v2122 = vpop.f32.mrb[0].mxu0
        %v2123 = vadd.f32 0.0, %v2122
        %v2124 = vpop.f32.mrb[0].mxu0
        %v2125 = vpop.f32.mrb[0].mxu0
        %v2126 = vadd.f32 0.0, %v2125
        %v2127 = vpop.f32.mrb[0].mxu0
        %2128 = vdwg.mxu0
        %2129 = vrot.lane.b32.xlu0 %v2051, 2
        %v2130 = vpop.permute.xlu0 %2129
        %2131 = vrot.lane.b32.xlu0 %v2054, 2
        %v2132 = vpop.permute.xlu0 %2131
        %2133 = vrot.lane.b32.xlu0 %v2059, 2
        %v2134 = vpop.permute.xlu0 %2133
        %2135 = vrot.lane.b32.xlu0 %v2062, 2
        %v2136 = vpop.permute.xlu0 %2135
        %2137 = vrot.lane.b32.xlu0 %v2067, 2
        %v2138 = vpop.permute.xlu0 %2137
        %2139 = vrot.lane.b32.xlu0 %v2070, 2
        %v2140 = vpop.permute.xlu0 %2139
        %2141 = vrot.lane.b32.xlu0 %v2075, 2
        %v2142 = vpop.permute.xlu0 %2141
        %2143 = vrot.lane.b32.xlu0 %v2078, 2
        %v2144 = vpop.permute.xlu0 %2143
        %2145 = vrot.lane.b32.xlu0 %v2083, 2
        %v2146 = vpop.permute.xlu0 %2145
        %2147 = vrot.lane.b32.xlu0 %v2086, 2
        %v2148 = vpop.permute.xlu0 %2147
        %v2149 = vsel %vm1909, %v2130, 0.0
        %v2150 = vsel %vm1909, %v2132, 0.0
        %v2151 = vsel %vm1909, %v2134, 0.0
        %v2152 = vsel %vm1909, %v2136, 0.0
        %v2153 = vsel %vm1909, %v2138, 0.0
        %v2154 = vsel %vm1909, %v2140, 0.0
        %v2155 = vsel %vm1909, %v2142, 0.0
        %v2156 = vsel %vm1909, %v2144, 0.0
        %v2157 = vsel %vm1909, %v2146, 0.0
        %v2158 = vsel %vm1909, %v2148, 0.0
        %v2159 = vadd.f32 %v2149, %v2091
        %v2160 = vadd.f32 %v2150, %v2094
        %v2161 = vadd.f32 %v2151, %v2099
        %v2162 = vadd.f32 %v2152, %v2102
        %v2163 = vadd.f32 %v2153, %v2107
        %v2164 = vadd.f32 %v2154, %v2110
        %v2165 = vadd.f32 %v2155, %v2115
        %v2166 = vadd.f32 %v2156, %v2118
        %v2167 = vadd.f32 %v2157, %v2123
        %v2168 = vadd.f32 %v2158, %v2126
        %s2169 = scalar_lea.vmem %s8, 80
        %v2170 = vld [vmem:[%s2169] sm:$0xff]
        %v2171 = vld [vmem:[%s2169 + $0x8] sm:$0xff]
        %v2172 = vld [vmem:[%s2169 + $0x10] sm:$0xff]
        %v2173 = vld [vmem:[%s2169 + $0x18] sm:$0xff]
        %v2174 = vld [vmem:[%s2169 + $0x20] sm:$0xff]
        %v2175 = vld [vmem:[%s2169 + $0x28] sm:$0xff]
        %v2176 = vld [vmem:[%s2169 + $0x30] sm:$0xff]
        %v2177 = vld [vmem:[%s2169 + $0x38] sm:$0xff]
        %v2178 = vld [vmem:[%s2169 + $0x40] sm:$0xff]
        %v2179 = vld [vmem:[%s2169 + $0x48] sm:$0xff]
        %2181 = vset.pattern.permute.xlu0 0
        %2182 = vperm.xlu0 %2181, %v2170
        %v2183 = vpop.permute.xlu0 %2182
        %2186 = vset.pattern.permute.xlu0 0
        %2187 = vperm.xlu0 %2186, %v2171
        %v2188 = vpop.permute.xlu0 %2187
        %2191 = vset.pattern.permute.xlu0 0
        %2192 = vperm.xlu0 %2191, %v2172
        %v2193 = vpop.permute.xlu0 %2192
        %2196 = vset.pattern.permute.xlu0 0
        %2197 = vperm.xlu0 %2196, %v2173
        %v2198 = vpop.permute.xlu0 %2197
        %2201 = vset.pattern.permute.xlu0 0
        %2202 = vperm.xlu0 %2201, %v2174
        %v2203 = vpop.permute.xlu0 %2202
        %2206 = vset.pattern.permute.xlu0 0
        %2207 = vperm.xlu0 %2206, %v2175
        %v2208 = vpop.permute.xlu0 %2207
        %2211 = vset.pattern.permute.xlu0 0
        %2212 = vperm.xlu0 %2211, %v2176
        %v2213 = vpop.permute.xlu0 %2212
        %2216 = vset.pattern.permute.xlu0 0
        %2217 = vperm.xlu0 %2216, %v2177
        %v2218 = vpop.permute.xlu0 %2217
        %2221 = vset.pattern.permute.xlu0 0
        %2222 = vperm.xlu0 %2221, %v2178
        %v2223 = vpop.permute.xlu0 %2222
        %2226 = vset.pattern.permute.xlu0 0
        %2227 = vperm.xlu0 %2226, %v2179
        %v2228 = vpop.permute.xlu0 %2227
        %v2230 = vadd.f32 %v2159, %v2183
        %v2231 = vadd.f32 %v2160, %v2188
        %v2232 = vadd.f32 %v2161, %v2193
        %v2233 = vadd.f32 %v2162, %v2198
        %v2234 = vadd.f32 %v2163, %v2203
        %v2235 = vadd.f32 %v2164, %v2208
        %v2236 = vadd.f32 %v2165, %v2213
        %v2237 = vadd.f32 %v2166, %v2218
        %v2238 = vadd.f32 %v2167, %v2223
        %v2239 = vadd.f32 %v2168, %v2228
        %v2240 = vmax.f32 %v2230, 0.0
        %v2241 = vmax.f32 %v2231, 0.0
        %v2242 = vmax.f32 %v2232, 0.0
        %v2243 = vmax.f32 %v2233, 0.0
        %v2244 = vmax.f32 %v2234, 0.0
        %v2245 = vmax.f32 %v2235, 0.0
        %v2246 = vmax.f32 %v2236, 0.0
        %v2247 = vmax.f32 %v2237, 0.0
        %v2248 = vmax.f32 %v2238, 0.0
        %v2249 = vmax.f32 %v2239, 0.0
        %s2250 = scalar_lea.vmem %s9, 80
        %v2251 = vld [vmem:[%s2250] sm:$0xf]
        %v2252 = vld [vmem:[%s2250 + $0x4] sm:$0xf]
        %v2253 = vld [vmem:[%s2250 + $0x8] sm:$0xf]
        %v2254 = vld [vmem:[%s2250 + $0xc] sm:$0xf]
        %v2255 = vld [vmem:[%s2250 + $0x10] sm:$0xf]
        %v2256 = vld [vmem:[%s2250 + $0x14] sm:$0xf]
        %v2257 = vld [vmem:[%s2250 + $0x18] sm:$0xf]
        %v2258 = vld [vmem:[%s2250 + $0x1c] sm:$0xf]
        %v2259 = vld [vmem:[%s2250 + $0x20] sm:$0xf]
        %v2260 = vld [vmem:[%s2250 + $0x24] sm:$0xf]
        %v2261 = vld [vmem:[%s2250 + $0x28] sm:$0xf]
        %v2262 = vld [vmem:[%s2250 + $0x2c] sm:$0xf]
        %v2263 = vld [vmem:[%s2250 + $0x30] sm:$0xf]
        %v2264 = vld [vmem:[%s2250 + $0x34] sm:$0xf]
        %v2265 = vld [vmem:[%s2250 + $0x38] sm:$0xf]
        %v2266 = vld [vmem:[%s2250 + $0x3c] sm:$0xf]
        %v2267 = vld [vmem:[%s2250 + $0x40] sm:$0xf]
        %v2268 = vld [vmem:[%s2250 + $0x44] sm:$0xf]
        %v2269 = vld [vmem:[%s2250 + $0x48] sm:$0xf]
        %v2270 = vld [vmem:[%s2250 + $0x4c] sm:$0xf]
        %v2271 = vpack.c.bf16 %v2241, %v2240
        %v2272 = vpack.c.bf16 %v2243, %v2242
        %v2273 = vpack.c.bf16 %v2245, %v2244
        %v2274 = vpack.c.bf16 %v2247, %v2246
        %v2275 = vpack.c.bf16 %v2249, %v2248
        %v2296 = vunpack.c.l.b16 %v2251
        %v2297 = vunpack.c.l.b16 %v2252
        %v2298 = vunpack.c.l.b16 %v2253
        %v2299 = vunpack.c.l.b16 %v2254
        %v2300 = vunpack.c.l.b16 %v2255
        %v2301 = vunpack.c.l.b16 %v2256
        %v2302 = vunpack.c.l.b16 %v2257
        %v2303 = vunpack.c.l.b16 %v2258
        %v2304 = vunpack.c.l.b16 %v2259
        %v2305 = vunpack.c.l.b16 %v2260
        %v2306 = vunpack.c.l.b16 %v2261
        %v2307 = vunpack.c.l.b16 %v2262
        %v2308 = vunpack.c.l.b16 %v2263
        %v2309 = vunpack.c.l.b16 %v2264
        %v2310 = vunpack.c.l.b16 %v2265
        %v2311 = vunpack.c.l.b16 %v2266
        %v2312 = vunpack.c.l.b16 %v2267
        %v2313 = vunpack.c.l.b16 %v2268
        %v2314 = vunpack.c.l.b16 %v2269
        %v2315 = vunpack.c.l.b16 %v2270
        %v2316 = vpack.c.b16 %v2297, %v2296
        %v2317 = vpack.c.b16 %v2299, %v2298
        %v2318 = vpack.c.b16 %v2301, %v2300
        %v2319 = vpack.c.b16 %v2303, %v2302
        %v2320 = vpack.c.b16 %v2305, %v2304
        %v2321 = vpack.c.b16 %v2307, %v2306
        %v2322 = vpack.c.b16 %v2309, %v2308
        %v2323 = vpack.c.b16 %v2311, %v2310
        %v2324 = vpack.c.b16 %v2313, %v2312
        %v2325 = vpack.c.b16 %v2315, %v2314
        %v2327 = vsel %vm821, %v2316, 0
        %v2330 = vsel %vm821, %v2317, 0
        %v2333 = vsel %vm821, %v2318, 0
        %v2336 = vsel %vm821, %v2319, 0
        %v2339 = vsel %vm821, %v2320, 0
        %v2342 = vsel %vm821, %v2321, 0
        %v2345 = vsel %vm821, %v2322, 0
        %v2348 = vsel %vm821, %v2323, 0
        %v2351 = vsel %vm821, %v2324, 0
        %v2354 = vsel %vm821, %v2325, 0
        %2356 = vmatprep.subr.bf16.mxu0 0
        %2357 = vmatpush1.bf16.msra.mxu0 %v2271
        %2358 = vmatprep.subr.bf16.mxu0 0
        %2359 = vmatpush1.bf16.msra.mxu0 %v2272
        %2360 = vmatprep.subr.bf16.mxu0 0
        %2361 = vmatpush1.bf16.msra.mxu0 %v2273
        %2362 = vmatprep.subr.bf16.mxu0 0
        %2363 = vmatpush1.bf16.msra.mxu0 %v2274
        %2364 = vmatprep.subr.bf16.mxu0 0
        %2365 = vmatpush1.bf16.msra.mxu0 %v2275
        %2366 = vmatprep.subr.bf16.mxu0 0
        %2367 = vmatpush1.bf16.msra.mxu0 0
        %2368 = vmatprep.subr.bf16.mxu0 0
        %2369 = vmatpush1.bf16.msra.mxu0 0
        %2370 = vmatprep.subr.bf16.mxu0 0
        %2371 = vmatpush1.bf16.msra.mxu0 0
        %2372 = vmatprep.subr.bf16.mxu0 0
        %2373 = vmatpush1.bf16.msra.mxu0 0
        %2374 = vmatprep.subr.bf16.mxu0 0
        %2375 = vmatpush1.bf16.msra.mxu0 0
        %2376 = vmatprep.subr.bf16.mxu0 0
        %2377 = vmatpush1.bf16.msra.mxu0 0
        %2378 = vmatprep.subr.bf16.mxu0 0
        %2379 = vmatpush1.bf16.msra.mxu0 0
        %2380 = vmatprep.subr.bf16.mxu0 0
        %2381 = vmatpush1.bf16.msra.mxu0 0
        %2382 = vmatprep.subr.bf16.mxu0 0
        %2383 = vmatpush1.bf16.msra.mxu0 0
        %2384 = vmatprep.subr.bf16.mxu0 0
        %2385 = vmatpush1.bf16.msra.mxu0 0
        %2386 = vmatprep.subr.bf16.mxu0 0
        %2387 = vmatpush1.bf16.msra.mxu0 0
        %2388 = vmatprep.mubr.bf16.mxu0 0
        %2389 = vmatmul.mubr.bf16.gmra.mrb[0].mxu0 %v2327
        %v2390 = vpop.f32.mrb[0].mxu0
        %v2391 = vadd.f32 0.0, %v2390
        %v2392 = vpop.f32.mrb[0].mxu0
        %v2393 = vpop.f32.mrb[0].mxu0
        %v2394 = vadd.f32 0.0, %v2393
        %v2395 = vpop.f32.mrb[0].mxu0
        %2396 = vmatprep.mubr.bf16.mxu0 0
        %2397 = vmatmul.mubr.bf16.gmra.mrb[0].mxu0 %v2330
        %v2398 = vpop.f32.mrb[0].mxu0
        %v2399 = vadd.f32 0.0, %v2398
        %v2400 = vpop.f32.mrb[0].mxu0
        %v2401 = vpop.f32.mrb[0].mxu0
        %v2402 = vadd.f32 0.0, %v2401
        %v2403 = vpop.f32.mrb[0].mxu0
        %2404 = vmatprep.mubr.bf16.mxu0 0
        %2405 = vmatmul.mubr.bf16.gmra.mrb[0].mxu0 %v2333
        %v2406 = vpop.f32.mrb[0].mxu0
        %v2407 = vadd.f32 0.0, %v2406
        %v2408 = vpop.f32.mrb[0].mxu0
        %v2409 = vpop.f32.mrb[0].mxu0
        %v2410 = vadd.f32 0.0, %v2409
        %v2411 = vpop.f32.mrb[0].mxu0
        %2412 = vmatprep.mubr.bf16.mxu0 0
        %2413 = vmatmul.mubr.bf16.gmra.mrb[0].mxu0 %v2336
        %v2414 = vpop.f32.mrb[0].mxu0
        %v2415 = vadd.f32 0.0, %v2414
        %v2416 = vpop.f32.mrb[0].mxu0
        %v2417 = vpop.f32.mrb[0].mxu0
        %v2418 = vadd.f32 0.0, %v2417
        %v2419 = vpop.f32.mrb[0].mxu0
        %2420 = vmatprep.mubr.bf16.mxu0 0
        %2421 = vmatmul.mubr.bf16.gmra.mrb[0].mxu0 %v2339
        %v2422 = vpop.f32.mrb[0].mxu0
        %v2423 = vadd.f32 0.0, %v2422
        %v2424 = vpop.f32.mrb[0].mxu0
        %v2425 = vpop.f32.mrb[0].mxu0
        %v2426 = vadd.f32 0.0, %v2425
        %v2427 = vpop.f32.mrb[0].mxu0
        %2428 = vmatprep.mubr.bf16.mxu0 0
        %2429 = vmatmul.mubr.bf16.gmra.mrb[0].mxu0 %v2342
        %v2430 = vpop.f32.mrb[0].mxu0
        %v2431 = vadd.f32 0.0, %v2430
        %v2432 = vpop.f32.mrb[0].mxu0
        %v2433 = vpop.f32.mrb[0].mxu0
        %v2434 = vadd.f32 0.0, %v2433
        %v2435 = vpop.f32.mrb[0].mxu0
        %2436 = vmatprep.mubr.bf16.mxu0 0
        %2437 = vmatmul.mubr.bf16.gmra.mrb[0].mxu0 %v2345
        %v2438 = vpop.f32.mrb[0].mxu0
        %v2439 = vadd.f32 0.0, %v2438
        %v2440 = vpop.f32.mrb[0].mxu0
        %v2441 = vpop.f32.mrb[0].mxu0
        %v2442 = vadd.f32 0.0, %v2441
        %v2443 = vpop.f32.mrb[0].mxu0
        %2444 = vmatprep.mubr.bf16.mxu0 0
        %2445 = vmatmul.mubr.bf16.gmra.mrb[0].mxu0 %v2348
        %v2446 = vpop.f32.mrb[0].mxu0
        %v2447 = vadd.f32 0.0, %v2446
        %v2448 = vpop.f32.mrb[0].mxu0
        %v2449 = vpop.f32.mrb[0].mxu0
        %v2450 = vadd.f32 0.0, %v2449
        %v2451 = vpop.f32.mrb[0].mxu0
        %2452 = vmatprep.mubr.bf16.mxu0 0
        %2453 = vmatmul.mubr.bf16.gmra.mrb[0].mxu0 %v2351
        %v2454 = vpop.f32.mrb[0].mxu0
        %v2455 = vadd.f32 0.0, %v2454
        %v2456 = vpop.f32.mrb[0].mxu0
        %v2457 = vpop.f32.mrb[0].mxu0
        %v2458 = vadd.f32 0.0, %v2457
        %v2459 = vpop.f32.mrb[0].mxu0
        %2460 = vmatprep.mubr.bf16.mxu0 0
        %2461 = vmatmul.mubr.bf16.gmra.mrb[0].mxu0 %v2354
        %v2462 = vpop.f32.mrb[0].mxu0
        %v2463 = vadd.f32 0.0, %v2462
        %v2464 = vpop.f32.mrb[0].mxu0
        %v2465 = vpop.f32.mrb[0].mxu0
        %v2466 = vadd.f32 0.0, %v2465
        %v2467 = vpop.f32.mrb[0].mxu0
        %2468 = vdwg.mxu0
        %2469 = vrot.lane.b32.xlu0 %v2391, 2
        %v2470 = vpop.permute.xlu0 %2469
        %2471 = vrot.lane.b32.xlu0 %v2394, 2
        %v2472 = vpop.permute.xlu0 %2471
        %2473 = vrot.lane.b32.xlu0 %v2399, 2
        %v2474 = vpop.permute.xlu0 %2473
        %2475 = vrot.lane.b32.xlu0 %v2402, 2
        %v2476 = vpop.permute.xlu0 %2475
        %2477 = vrot.lane.b32.xlu0 %v2407, 2
        %v2478 = vpop.permute.xlu0 %2477
        %2479 = vrot.lane.b32.xlu0 %v2410, 2
        %v2480 = vpop.permute.xlu0 %2479
        %2481 = vrot.lane.b32.xlu0 %v2415, 2
        %v2482 = vpop.permute.xlu0 %2481
        %2483 = vrot.lane.b32.xlu0 %v2418, 2
        %v2484 = vpop.permute.xlu0 %2483
        %2485 = vrot.lane.b32.xlu0 %v2423, 2
        %v2486 = vpop.permute.xlu0 %2485
        %2487 = vrot.lane.b32.xlu0 %v2426, 2
        %v2488 = vpop.permute.xlu0 %2487
        %v2489 = vsel %vm1909, %v2470, 0.0
        %v2490 = vsel %vm1909, %v2472, 0.0
        %v2491 = vsel %vm1909, %v2474, 0.0
        %v2492 = vsel %vm1909, %v2476, 0.0
        %v2493 = vsel %vm1909, %v2478, 0.0
        %v2494 = vsel %vm1909, %v2480, 0.0
        %v2495 = vsel %vm1909, %v2482, 0.0
        %v2496 = vsel %vm1909, %v2484, 0.0
        %v2497 = vsel %vm1909, %v2486, 0.0
        %v2498 = vsel %vm1909, %v2488, 0.0
        %v2499 = vadd.f32 %v2489, %v2431
        %v2500 = vadd.f32 %v2490, %v2434
        %v2501 = vadd.f32 %v2491, %v2439
        %v2502 = vadd.f32 %v2492, %v2442
        %v2503 = vadd.f32 %v2493, %v2447
        %v2504 = vadd.f32 %v2494, %v2450
        %v2505 = vadd.f32 %v2495, %v2455
        %v2506 = vadd.f32 %v2496, %v2458
        %v2507 = vadd.f32 %v2497, %v2463
        %v2508 = vadd.f32 %v2498, %v2466
        %s2509 = scalar_lea.vmem %s10, 80
        %v2510 = vld [vmem:[%s2509] sm:$0xff]
        %v2511 = vld [vmem:[%s2509 + $0x8] sm:$0xff]
        %v2512 = vld [vmem:[%s2509 + $0x10] sm:$0xff]
        %v2513 = vld [vmem:[%s2509 + $0x18] sm:$0xff]
        %v2514 = vld [vmem:[%s2509 + $0x20] sm:$0xff]
        %v2515 = vld [vmem:[%s2509 + $0x28] sm:$0xff]
        %v2516 = vld [vmem:[%s2509 + $0x30] sm:$0xff]
        %v2517 = vld [vmem:[%s2509 + $0x38] sm:$0xff]
        %v2518 = vld [vmem:[%s2509 + $0x40] sm:$0xff]
        %v2519 = vld [vmem:[%s2509 + $0x48] sm:$0xff]
        %2521 = vset.pattern.permute.xlu0 0
        %2522 = vperm.xlu0 %2521, %v2510
        %v2523 = vpop.permute.xlu0 %2522
        %2526 = vset.pattern.permute.xlu0 0
        %2527 = vperm.xlu0 %2526, %v2511
        %v2528 = vpop.permute.xlu0 %2527
        %2531 = vset.pattern.permute.xlu0 0
        %2532 = vperm.xlu0 %2531, %v2512
        %v2533 = vpop.permute.xlu0 %2532
        %2536 = vset.pattern.permute.xlu0 0
        %2537 = vperm.xlu0 %2536, %v2513
        %v2538 = vpop.permute.xlu0 %2537
        %2541 = vset.pattern.permute.xlu0 0
        %2542 = vperm.xlu0 %2541, %v2514
        %v2543 = vpop.permute.xlu0 %2542
        %2546 = vset.pattern.permute.xlu0 0
        %2547 = vperm.xlu0 %2546, %v2515
        %v2548 = vpop.permute.xlu0 %2547
        %2551 = vset.pattern.permute.xlu0 0
        %2552 = vperm.xlu0 %2551, %v2516
        %v2553 = vpop.permute.xlu0 %2552
        %2556 = vset.pattern.permute.xlu0 0
        %2557 = vperm.xlu0 %2556, %v2517
        %v2558 = vpop.permute.xlu0 %2557
        %2561 = vset.pattern.permute.xlu0 0
        %2562 = vperm.xlu0 %2561, %v2518
        %v2563 = vpop.permute.xlu0 %2562
        %2566 = vset.pattern.permute.xlu0 0
        %2567 = vperm.xlu0 %2566, %v2519
        %v2568 = vpop.permute.xlu0 %2567
        %v2570 = vadd.f32 %v2499, %v2523
        %v2571 = vadd.f32 %v2500, %v2528
        %v2572 = vadd.f32 %v2501, %v2533
        %v2573 = vadd.f32 %v2502, %v2538
        %v2574 = vadd.f32 %v2503, %v2543
        %v2575 = vadd.f32 %v2504, %v2548
        %v2576 = vadd.f32 %v2505, %v2553
        %v2577 = vadd.f32 %v2506, %v2558
        %v2578 = vadd.f32 %v2507, %v2563
        %v2579 = vadd.f32 %v2508, %v2568
        %v2580 = vmax.f32 %v2570, 0.0
        %v2581 = vmax.f32 %v2571, 0.0
        %v2582 = vmax.f32 %v2572, 0.0
        %v2583 = vmax.f32 %v2573, 0.0
        %v2584 = vmax.f32 %v2574, 0.0
        %v2585 = vmax.f32 %v2575, 0.0
        %v2586 = vmax.f32 %v2576, 0.0
        %v2587 = vmax.f32 %v2577, 0.0
        %v2588 = vmax.f32 %v2578, 0.0
        %v2589 = vmax.f32 %v2579, 0.0
        %v2590 = vadd.f32 %v1879, %v2580
        %v2591 = vadd.f32 %v1880, %v2581
        %v2592 = vadd.f32 %v1881, %v2582
        %v2593 = vadd.f32 %v1882, %v2583
        %v2594 = vadd.f32 %v1883, %v2584
        %v2595 = vadd.f32 %v1884, %v2585
        %v2596 = vadd.f32 %v1885, %v2586
        %v2597 = vadd.f32 %v1886, %v2587
        %v2598 = vadd.f32 %v1887, %v2588
        %v2599 = vadd.f32 %v1888, %v2589
        %v2600 = vadd.f32 %v2580, %v1899
        %v2601 = vadd.f32 %v2581, %v1900
        %v2602 = vadd.f32 %v2582, %v1901
        %v2603 = vadd.f32 %v2583, %v1902
        %v2604 = vadd.f32 %v2584, %v1903
        %v2605 = vadd.f32 %v2585, %v1904
        %v2606 = vadd.f32 %v2586, %v1905
        %v2607 = vadd.f32 %v2587, %v1906
        %v2608 = vadd.f32 %v2588, %v1907
        %v2609 = vadd.f32 %v2589, %v1908
        %v2610 = vmax.f32 %v2600, 0.0
        %v2611 = vmax.f32 %v2601, 0.0
        %v2612 = vmax.f32 %v2602, 0.0
        %v2613 = vmax.f32 %v2603, 0.0
        %v2614 = vmax.f32 %v2604, 0.0
        %v2615 = vmax.f32 %v2605, 0.0
        %v2616 = vmax.f32 %v2606, 0.0
        %v2617 = vmax.f32 %v2607, 0.0
        %v2618 = vmax.f32 %v2608, 0.0
        %v2619 = vmax.f32 %v2609, 0.0
        %vm2620 = vcmp.ge.s32.totalorder %v1201, 4
        %s2621 = scalar_lea.vmem %s7, 160
        %v2622 = vld [vmem:[%s2621] sm:$0xf]
        %v2623 = vld [vmem:[%s2621 + $0x4] sm:$0xf]
        %v2624 = vld [vmem:[%s2621 + $0x8] sm:$0xf]
        %v2625 = vld [vmem:[%s2621 + $0xc] sm:$0xf]
        %v2626 = vld [vmem:[%s2621 + $0x10] sm:$0xf]
        %v2627 = vld [vmem:[%s2621 + $0x14] sm:$0xf]
        %v2628 = vld [vmem:[%s2621 + $0x18] sm:$0xf]
        %v2629 = vld [vmem:[%s2621 + $0x1c] sm:$0xf]
        %v2630 = vld [vmem:[%s2621 + $0x20] sm:$0xf]
        %v2631 = vld [vmem:[%s2621 + $0x24] sm:$0xf]
        %v2632 = vld [vmem:[%s2621 + $0x28] sm:$0xf]
        %v2633 = vld [vmem:[%s2621 + $0x2c] sm:$0xf]
        %v2634 = vld [vmem:[%s2621 + $0x30] sm:$0xf]
        %v2635 = vld [vmem:[%s2621 + $0x34] sm:$0xf]
        %v2636 = vld [vmem:[%s2621 + $0x38] sm:$0xf]
        %v2637 = vld [vmem:[%s2621 + $0x3c] sm:$0xf]
        %v2638 = vld [vmem:[%s2621 + $0x40] sm:$0xf]
        %v2639 = vld [vmem:[%s2621 + $0x44] sm:$0xf]
        %v2640 = vld [vmem:[%s2621 + $0x48] sm:$0xf]
        %v2641 = vld [vmem:[%s2621 + $0x4c] sm:$0xf]
        %v2642 = vpack.c.bf16 %v2611, %v2610
        %v2643 = vpack.c.bf16 %v2613, %v2612
        %v2644 = vpack.c.bf16 %v2615, %v2614
        %v2645 = vpack.c.bf16 %v2617, %v2616
        %v2646 = vpack.c.bf16 %v2619, %v2618
        %v2667 = vunpack.c.l.b16 %v2622
        %v2668 = vunpack.c.l.b16 %v2623
        %v2669 = vunpack.c.l.b16 %v2624
        %v2670 = vunpack.c.l.b16 %v2625
        %v2671 = vunpack.c.l.b16 %v2626
        %v2672 = vunpack.c.l.b16 %v2627
        %v2673 = vunpack.c.l.b16 %v2628
        %v2674 = vunpack.c.l.b16 %v2629
        %v2675 = vunpack.c.l.b16 %v2630
        %v2676 = vunpack.c.l.b16 %v2631
        %v2677 = vunpack.c.l.b16 %v2632
        %v2678 = vunpack.c.l.b16 %v2633
        %v2679 = vunpack.c.l.b16 %v2634
        %v2680 = vunpack.c.l.b16 %v2635
        %v2681 = vunpack.c.l.b16 %v2636
        %v2682 = vunpack.c.l.b16 %v2637
        %v2683 = vunpack.c.l.b16 %v2638
        %v2684 = vunpack.c.l.b16 %v2639
        %v2685 = vunpack.c.l.b16 %v2640
        %v2686 = vunpack.c.l.b16 %v2641
        %v2687 = vpack.c.b16 %v2668, %v2667
        %v2688 = vpack.c.b16 %v2670, %v2669
        %v2689 = vpack.c.b16 %v2672, %v2671
        %v2690 = vpack.c.b16 %v2674, %v2673
        %v2691 = vpack.c.b16 %v2676, %v2675
        %v2692 = vpack.c.b16 %v2678, %v2677
        %v2693 = vpack.c.b16 %v2680, %v2679
        %v2694 = vpack.c.b16 %v2682, %v2681
        %v2695 = vpack.c.b16 %v2684, %v2683
        %v2696 = vpack.c.b16 %v2686, %v2685
        %v2698 = vsel %vm821, %v2687, 0
        %v2701 = vsel %vm821, %v2688, 0
        %v2704 = vsel %vm821, %v2689, 0
        %v2707 = vsel %vm821, %v2690, 0
        %v2710 = vsel %vm821, %v2691, 0
        %v2713 = vsel %vm821, %v2692, 0
        %v2716 = vsel %vm821, %v2693, 0
        %v2719 = vsel %vm821, %v2694, 0
        %v2722 = vsel %vm821, %v2695, 0
        %v2725 = vsel %vm821, %v2696, 0
        %2727 = vmatprep.subr.bf16.mxu0 0
        %2728 = vmatpush1.bf16.msra.mxu0 %v2642
        %2729 = vmatprep.subr.bf16.mxu0 0
        %2730 = vmatpush1.bf16.msra.mxu0 %v2643
        %2731 = vmatprep.subr.bf16.mxu0 0
        %2732 = vmatpush1.bf16.msra.mxu0 %v2644
        %2733 = vmatprep.subr.bf16.mxu0 0
        %2734 = vmatpush1.bf16.msra.mxu0 %v2645
        %2735 = vmatprep.subr.bf16.mxu0 0
        %2736 = vmatpush1.bf16.msra.mxu0 %v2646
        %2737 = vmatprep.subr.bf16.mxu0 0
        %2738 = vmatpush1.bf16.msra.mxu0 0
        %2739 = vmatprep.subr.bf16.mxu0 0
        %2740 = vmatpush1.bf16.msra.mxu0 0
        %2741 = vmatprep.subr.bf16.mxu0 0
        %2742 = vmatpush1.bf16.msra.mxu0 0
        %2743 = vmatprep.subr.bf16.mxu0 0
        %2744 = vmatpush1.bf16.msra.mxu0 0
        %2745 = vmatprep.subr.bf16.mxu0 0
        %2746 = vmatpush1.bf16.msra.mxu0 0
        %2747 = vmatprep.subr.bf16.mxu0 0
        %2748 = vmatpush1.bf16.msra.mxu0 0
        %2749 = vmatprep.subr.bf16.mxu0 0
        %2750 = vmatpush1.bf16.msra.mxu0 0
        %2751 = vmatprep.subr.bf16.mxu0 0
        %2752 = vmatpush1.bf16.msra.mxu0 0
        %2753 = vmatprep.subr.bf16.mxu0 0
        %2754 = vmatpush1.bf16.msra.mxu0 0
        %2755 = vmatprep.subr.bf16.mxu0 0
        %2756 = vmatpush1.bf16.msra.mxu0 0
        %2757 = vmatprep.subr.bf16.mxu0 0
        %2758 = vmatpush1.bf16.msra.mxu0 0
        %2759 = vmatprep.mubr.bf16.mxu0 0
        %2760 = vmatmul.mubr.bf16.gmra.mrb[0].mxu0 %v2698
        %v2761 = vpop.f32.mrb[0].mxu0
        %v2762 = vadd.f32 0.0, %v2761
        %v2763 = vpop.f32.mrb[0].mxu0
        %v2764 = vpop.f32.mrb[0].mxu0
        %v2765 = vadd.f32 0.0, %v2764
        %v2766 = vpop.f32.mrb[0].mxu0
        %2767 = vmatprep.mubr.bf16.mxu0 0
        %2768 = vmatmul.mubr.bf16.gmra.mrb[0].mxu0 %v2701
        %v2769 = vpop.f32.mrb[0].mxu0
        %v2770 = vadd.f32 0.0, %v2769
        %v2771 = vpop.f32.mrb[0].mxu0
        %v2772 = vpop.f32.mrb[0].mxu0
        %v2773 = vadd.f32 0.0, %v2772
        %v2774 = vpop.f32.mrb[0].mxu0
        %2775 = vmatprep.mubr.bf16.mxu0 0
        %2776 = vmatmul.mubr.bf16.gmra.mrb[0].mxu0 %v2704
        %v2777 = vpop.f32.mrb[0].mxu0
        %v2778 = vadd.f32 0.0, %v2777
        %v2779 = vpop.f32.mrb[0].mxu0
        %v2780 = vpop.f32.mrb[0].mxu0
        %v2781 = vadd.f32 0.0, %v2780
        %v2782 = vpop.f32.mrb[0].mxu0
        %2783 = vmatprep.mubr.bf16.mxu0 0
        %2784 = vmatmul.mubr.bf16.gmra.mrb[0].mxu0 %v2707
        %v2785 = vpop.f32.mrb[0].mxu0
        %v2786 = vadd.f32 0.0, %v2785
        %v2787 = vpop.f32.mrb[0].mxu0
        %v2788 = vpop.f32.mrb[0].mxu0
        %v2789 = vadd.f32 0.0, %v2788
        %v2790 = vpop.f32.mrb[0].mxu0
        %2791 = vmatprep.mubr.bf16.mxu0 0
        %2792 = vmatmul.mubr.bf16.gmra.mrb[0].mxu0 %v2710
        %v2793 = vpop.f32.mrb[0].mxu0
        %v2794 = vadd.f32 0.0, %v2793
        %v2795 = vpop.f32.mrb[0].mxu0
        %v2796 = vpop.f32.mrb[0].mxu0
        %v2797 = vadd.f32 0.0, %v2796
        %v2798 = vpop.f32.mrb[0].mxu0
        %2799 = vmatprep.mubr.bf16.mxu0 0
        %2800 = vmatmul.mubr.bf16.gmra.mrb[0].mxu0 %v2713
        %v2801 = vpop.f32.mrb[0].mxu0
        %v2802 = vadd.f32 0.0, %v2801
        %v2803 = vpop.f32.mrb[0].mxu0
        %v2804 = vpop.f32.mrb[0].mxu0
        %v2805 = vadd.f32 0.0, %v2804
        %v2806 = vpop.f32.mrb[0].mxu0
        %2807 = vmatprep.mubr.bf16.mxu0 0
        %2808 = vmatmul.mubr.bf16.gmra.mrb[0].mxu0 %v2716
        %v2809 = vpop.f32.mrb[0].mxu0
        %v2810 = vadd.f32 0.0, %v2809
        %v2811 = vpop.f32.mrb[0].mxu0
        %v2812 = vpop.f32.mrb[0].mxu0
        %v2813 = vadd.f32 0.0, %v2812
        %v2814 = vpop.f32.mrb[0].mxu0
        %2815 = vmatprep.mubr.bf16.mxu0 0
        %2816 = vmatmul.mubr.bf16.gmra.mrb[0].mxu0 %v2719
        %v2817 = vpop.f32.mrb[0].mxu0
        %v2818 = vadd.f32 0.0, %v2817
        %v2819 = vpop.f32.mrb[0].mxu0
        %v2820 = vpop.f32.mrb[0].mxu0
        %v2821 = vadd.f32 0.0, %v2820
        %v2822 = vpop.f32.mrb[0].mxu0
        %2823 = vmatprep.mubr.bf16.mxu0 0
        %2824 = vmatmul.mubr.bf16.gmra.mrb[0].mxu0 %v2722
        %v2825 = vpop.f32.mrb[0].mxu0
        %v2826 = vadd.f32 0.0, %v2825
        %v2827 = vpop.f32.mrb[0].mxu0
        %v2828 = vpop.f32.mrb[0].mxu0
        %v2829 = vadd.f32 0.0, %v2828
        %v2830 = vpop.f32.mrb[0].mxu0
        %2831 = vmatprep.mubr.bf16.mxu0 0
        %2832 = vmatmul.mubr.bf16.gmra.mrb[0].mxu0 %v2725
        %v2833 = vpop.f32.mrb[0].mxu0
        %v2834 = vadd.f32 0.0, %v2833
        %v2835 = vpop.f32.mrb[0].mxu0
        %v2836 = vpop.f32.mrb[0].mxu0
        %v2837 = vadd.f32 0.0, %v2836
        %v2838 = vpop.f32.mrb[0].mxu0
        %2839 = vdwg.mxu0
        %2840 = vrot.lane.b32.xlu0 %v2762, 4
        %v2841 = vpop.permute.xlu0 %2840
        %2842 = vrot.lane.b32.xlu0 %v2765, 4
        %v2843 = vpop.permute.xlu0 %2842
        %2844 = vrot.lane.b32.xlu0 %v2770, 4
        %v2845 = vpop.permute.xlu0 %2844
        %2846 = vrot.lane.b32.xlu0 %v2773, 4
        %v2847 = vpop.permute.xlu0 %2846
        %2848 = vrot.lane.b32.xlu0 %v2778, 4
        %v2849 = vpop.permute.xlu0 %2848
        %2850 = vrot.lane.b32.xlu0 %v2781, 4
        %v2851 = vpop.permute.xlu0 %2850
        %2852 = vrot.lane.b32.xlu0 %v2786, 4
        %v2853 = vpop.permute.xlu0 %2852
        %2854 = vrot.lane.b32.xlu0 %v2789, 4
        %v2855 = vpop.permute.xlu0 %2854
        %2856 = vrot.lane.b32.xlu0 %v2794, 4
        %v2857 = vpop.permute.xlu0 %2856
        %2858 = vrot.lane.b32.xlu0 %v2797, 4
        %v2859 = vpop.permute.xlu0 %2858
        %v2860 = vsel %vm2620, %v2841, 0.0
        %v2861 = vsel %vm2620, %v2843, 0.0
        %v2862 = vsel %vm2620, %v2845, 0.0
        %v2863 = vsel %vm2620, %v2847, 0.0
        %v2864 = vsel %vm2620, %v2849, 0.0
        %v2865 = vsel %vm2620, %v2851, 0.0
        %v2866 = vsel %vm2620, %v2853, 0.0
        %v2867 = vsel %vm2620, %v2855, 0.0
        %v2868 = vsel %vm2620, %v2857, 0.0
        %v2869 = vsel %vm2620, %v2859, 0.0
        %v2870 = vadd.f32 %v2860, %v2802
        %v2871 = vadd.f32 %v2861, %v2805
        %v2872 = vadd.f32 %v2862, %v2810
        %v2873 = vadd.f32 %v2863, %v2813
        %v2874 = vadd.f32 %v2864, %v2818
        %v2875 = vadd.f32 %v2865, %v2821
        %v2876 = vadd.f32 %v2866, %v2826
        %v2877 = vadd.f32 %v2867, %v2829
        %v2878 = vadd.f32 %v2868, %v2834
        %v2879 = vadd.f32 %v2869, %v2837
        %s2880 = scalar_lea.vmem %s8, 160
        %v2881 = vld [vmem:[%s2880] sm:$0xff]
        %v2882 = vld [vmem:[%s2880 + $0x8] sm:$0xff]
        %v2883 = vld [vmem:[%s2880 + $0x10] sm:$0xff]
        %v2884 = vld [vmem:[%s2880 + $0x18] sm:$0xff]
        %v2885 = vld [vmem:[%s2880 + $0x20] sm:$0xff]
        %v2886 = vld [vmem:[%s2880 + $0x28] sm:$0xff]
        %v2887 = vld [vmem:[%s2880 + $0x30] sm:$0xff]
        %v2888 = vld [vmem:[%s2880 + $0x38] sm:$0xff]
        %v2889 = vld [vmem:[%s2880 + $0x40] sm:$0xff]
        %v2890 = vld [vmem:[%s2880 + $0x48] sm:$0xff]
        %2892 = vset.pattern.permute.xlu0 0
        %2893 = vperm.xlu0 %2892, %v2881
        %v2894 = vpop.permute.xlu0 %2893
        %2897 = vset.pattern.permute.xlu0 0
        %2898 = vperm.xlu0 %2897, %v2882
        %v2899 = vpop.permute.xlu0 %2898
        %2902 = vset.pattern.permute.xlu0 0
        %2903 = vperm.xlu0 %2902, %v2883
        %v2904 = vpop.permute.xlu0 %2903
        %2907 = vset.pattern.permute.xlu0 0
        %2908 = vperm.xlu0 %2907, %v2884
        %v2909 = vpop.permute.xlu0 %2908
        %2912 = vset.pattern.permute.xlu0 0
        %2913 = vperm.xlu0 %2912, %v2885
        %v2914 = vpop.permute.xlu0 %2913
        %2917 = vset.pattern.permute.xlu0 0
        %2918 = vperm.xlu0 %2917, %v2886
        %v2919 = vpop.permute.xlu0 %2918
        %2922 = vset.pattern.permute.xlu0 0
        %2923 = vperm.xlu0 %2922, %v2887
        %v2924 = vpop.permute.xlu0 %2923
        %2927 = vset.pattern.permute.xlu0 0
        %2928 = vperm.xlu0 %2927, %v2888
        %v2929 = vpop.permute.xlu0 %2928
        %2932 = vset.pattern.permute.xlu0 0
        %2933 = vperm.xlu0 %2932, %v2889
        %v2934 = vpop.permute.xlu0 %2933
        %2937 = vset.pattern.permute.xlu0 0
        %2938 = vperm.xlu0 %2937, %v2890
        %v2939 = vpop.permute.xlu0 %2938
        %v2941 = vadd.f32 %v2870, %v2894
        %v2942 = vadd.f32 %v2871, %v2899
        %v2943 = vadd.f32 %v2872, %v2904
        %v2944 = vadd.f32 %v2873, %v2909
        %v2945 = vadd.f32 %v2874, %v2914
        %v2946 = vadd.f32 %v2875, %v2919
        %v2947 = vadd.f32 %v2876, %v2924
        %v2948 = vadd.f32 %v2877, %v2929
        %v2949 = vadd.f32 %v2878, %v2934
        %v2950 = vadd.f32 %v2879, %v2939
        %v2951 = vmax.f32 %v2941, 0.0
        %v2952 = vmax.f32 %v2942, 0.0
        %v2953 = vmax.f32 %v2943, 0.0
        %v2954 = vmax.f32 %v2944, 0.0
        %v2955 = vmax.f32 %v2945, 0.0
        %v2956 = vmax.f32 %v2946, 0.0
        %v2957 = vmax.f32 %v2947, 0.0
        %v2958 = vmax.f32 %v2948, 0.0
        %v2959 = vmax.f32 %v2949, 0.0
        %v2960 = vmax.f32 %v2950, 0.0
        %s2961 = scalar_lea.vmem %s9, 160
        %v2962 = vld [vmem:[%s2961] sm:$0xf]
        %v2963 = vld [vmem:[%s2961 + $0x4] sm:$0xf]
        %v2964 = vld [vmem:[%s2961 + $0x8] sm:$0xf]
        %v2965 = vld [vmem:[%s2961 + $0xc] sm:$0xf]
        %v2966 = vld [vmem:[%s2961 + $0x10] sm:$0xf]
        %v2967 = vld [vmem:[%s2961 + $0x14] sm:$0xf]
        %v2968 = vld [vmem:[%s2961 + $0x18] sm:$0xf]
        %v2969 = vld [vmem:[%s2961 + $0x1c] sm:$0xf]
        %v2970 = vld [vmem:[%s2961 + $0x20] sm:$0xf]
        %v2971 = vld [vmem:[%s2961 + $0x24] sm:$0xf]
        %v2972 = vld [vmem:[%s2961 + $0x28] sm:$0xf]
        %v2973 = vld [vmem:[%s2961 + $0x2c] sm:$0xf]
        %v2974 = vld [vmem:[%s2961 + $0x30] sm:$0xf]
        %v2975 = vld [vmem:[%s2961 + $0x34] sm:$0xf]
        %v2976 = vld [vmem:[%s2961 + $0x38] sm:$0xf]
        %v2977 = vld [vmem:[%s2961 + $0x3c] sm:$0xf]
        %v2978 = vld [vmem:[%s2961 + $0x40] sm:$0xf]
        %v2979 = vld [vmem:[%s2961 + $0x44] sm:$0xf]
        %v2980 = vld [vmem:[%s2961 + $0x48] sm:$0xf]
        %v2981 = vld [vmem:[%s2961 + $0x4c] sm:$0xf]
        %v2982 = vpack.c.bf16 %v2952, %v2951
        %v2983 = vpack.c.bf16 %v2954, %v2953
        %v2984 = vpack.c.bf16 %v2956, %v2955
        %v2985 = vpack.c.bf16 %v2958, %v2957
        %v2986 = vpack.c.bf16 %v2960, %v2959
        %v3007 = vunpack.c.l.b16 %v2962
        %v3008 = vunpack.c.l.b16 %v2963
        %v3009 = vunpack.c.l.b16 %v2964
        %v3010 = vunpack.c.l.b16 %v2965
        %v3011 = vunpack.c.l.b16 %v2966
        %v3012 = vunpack.c.l.b16 %v2967
        %v3013 = vunpack.c.l.b16 %v2968
        %v3014 = vunpack.c.l.b16 %v2969
        %v3015 = vunpack.c.l.b16 %v2970
        %v3016 = vunpack.c.l.b16 %v2971
        %v3017 = vunpack.c.l.b16 %v2972
        %v3018 = vunpack.c.l.b16 %v2973
        %v3019 = vunpack.c.l.b16 %v2974
        %v3020 = vunpack.c.l.b16 %v2975
        %v3021 = vunpack.c.l.b16 %v2976
        %v3022 = vunpack.c.l.b16 %v2977
        %v3023 = vunpack.c.l.b16 %v2978
        %v3024 = vunpack.c.l.b16 %v2979
        %v3025 = vunpack.c.l.b16 %v2980
        %v3026 = vunpack.c.l.b16 %v2981
        %v3027 = vpack.c.b16 %v3008, %v3007
        %v3028 = vpack.c.b16 %v3010, %v3009
        %v3029 = vpack.c.b16 %v3012, %v3011
        %v3030 = vpack.c.b16 %v3014, %v3013
        %v3031 = vpack.c.b16 %v3016, %v3015
        %v3032 = vpack.c.b16 %v3018, %v3017
        %v3033 = vpack.c.b16 %v3020, %v3019
        %v3034 = vpack.c.b16 %v3022, %v3021
        %v3035 = vpack.c.b16 %v3024, %v3023
        %v3036 = vpack.c.b16 %v3026, %v3025
        %v3038 = vsel %vm821, %v3027, 0
        %v3041 = vsel %vm821, %v3028, 0
        %v3044 = vsel %vm821, %v3029, 0
        %v3047 = vsel %vm821, %v3030, 0
        %v3050 = vsel %vm821, %v3031, 0
        %v3053 = vsel %vm821, %v3032, 0
        %v3056 = vsel %vm821, %v3033, 0
        %v3059 = vsel %vm821, %v3034, 0
        %v3062 = vsel %vm821, %v3035, 0
        %v3065 = vsel %vm821, %v3036, 0
        %3067 = vmatprep.subr.bf16.mxu0 0
        %3068 = vmatpush1.bf16.msra.mxu0 %v2982
        %3069 = vmatprep.subr.bf16.mxu0 0
        %3070 = vmatpush1.bf16.msra.mxu0 %v2983
        %3071 = vmatprep.subr.bf16.mxu0 0
        %3072 = vmatpush1.bf16.msra.mxu0 %v2984
        %3073 = vmatprep.subr.bf16.mxu0 0
        %3074 = vmatpush1.bf16.msra.mxu0 %v2985
        %3075 = vmatprep.subr.bf16.mxu0 0
        %3076 = vmatpush1.bf16.msra.mxu0 %v2986
        %3077 = vmatprep.subr.bf16.mxu0 0
        %3078 = vmatpush1.bf16.msra.mxu0 0
        %3079 = vmatprep.subr.bf16.mxu0 0
        %3080 = vmatpush1.bf16.msra.mxu0 0
        %3081 = vmatprep.subr.bf16.mxu0 0
        %3082 = vmatpush1.bf16.msra.mxu0 0
        %3083 = vmatprep.subr.bf16.mxu0 0
        %3084 = vmatpush1.bf16.msra.mxu0 0
        %3085 = vmatprep.subr.bf16.mxu0 0
        %3086 = vmatpush1.bf16.msra.mxu0 0
        %3087 = vmatprep.subr.bf16.mxu0 0
        %3088 = vmatpush1.bf16.msra.mxu0 0
        %3089 = vmatprep.subr.bf16.mxu0 0
        %3090 = vmatpush1.bf16.msra.mxu0 0
        %3091 = vmatprep.subr.bf16.mxu0 0
        %3092 = vmatpush1.bf16.msra.mxu0 0
        %3093 = vmatprep.subr.bf16.mxu0 0
        %3094 = vmatpush1.bf16.msra.mxu0 0
        %3095 = vmatprep.subr.bf16.mxu0 0
        %3096 = vmatpush1.bf16.msra.mxu0 0
        %3097 = vmatprep.subr.bf16.mxu0 0
        %3098 = vmatpush1.bf16.msra.mxu0 0
        %3099 = vmatprep.mubr.bf16.mxu0 0
        %3100 = vmatmul.mubr.bf16.gmra.mrb[0].mxu0 %v3038
        %v3101 = vpop.f32.mrb[0].mxu0
        %v3102 = vadd.f32 0.0, %v3101
        %v3103 = vpop.f32.mrb[0].mxu0
        %v3104 = vpop.f32.mrb[0].mxu0
        %v3105 = vadd.f32 0.0, %v3104
        %v3106 = vpop.f32.mrb[0].mxu0
        %3107 = vmatprep.mubr.bf16.mxu0 0
        %3108 = vmatmul.mubr.bf16.gmra.mrb[0].mxu0 %v3041
        %v3109 = vpop.f32.mrb[0].mxu0
        %v3110 = vadd.f32 0.0, %v3109
        %v3111 = vpop.f32.mrb[0].mxu0
        %v3112 = vpop.f32.mrb[0].mxu0
        %v3113 = vadd.f32 0.0, %v3112
        %v3114 = vpop.f32.mrb[0].mxu0
        %3115 = vmatprep.mubr.bf16.mxu0 0
        %3116 = vmatmul.mubr.bf16.gmra.mrb[0].mxu0 %v3044
        %v3117 = vpop.f32.mrb[0].mxu0
        %v3118 = vadd.f32 0.0, %v3117
        %v3119 = vpop.f32.mrb[0].mxu0
        %v3120 = vpop.f32.mrb[0].mxu0
        %v3121 = vadd.f32 0.0, %v3120
        %v3122 = vpop.f32.mrb[0].mxu0
        %3123 = vmatprep.mubr.bf16.mxu0 0
        %3124 = vmatmul.mubr.bf16.gmra.mrb[0].mxu0 %v3047
        %v3125 = vpop.f32.mrb[0].mxu0
        %v3126 = vadd.f32 0.0, %v3125
        %v3127 = vpop.f32.mrb[0].mxu0
        %v3128 = vpop.f32.mrb[0].mxu0
        %v3129 = vadd.f32 0.0, %v3128
        %v3130 = vpop.f32.mrb[0].mxu0
        %3131 = vmatprep.mubr.bf16.mxu0 0
        %3132 = vmatmul.mubr.bf16.gmra.mrb[0].mxu0 %v3050
        %v3133 = vpop.f32.mrb[0].mxu0
        %v3134 = vadd.f32 0.0, %v3133
        %v3135 = vpop.f32.mrb[0].mxu0
        %v3136 = vpop.f32.mrb[0].mxu0
        %v3137 = vadd.f32 0.0, %v3136
        %v3138 = vpop.f32.mrb[0].mxu0
        %3139 = vmatprep.mubr.bf16.mxu0 0
        %3140 = vmatmul.mubr.bf16.gmra.mrb[0].mxu0 %v3053
        %v3141 = vpop.f32.mrb[0].mxu0
        %v3142 = vadd.f32 0.0, %v3141
        %v3143 = vpop.f32.mrb[0].mxu0
        %v3144 = vpop.f32.mrb[0].mxu0
        %v3145 = vadd.f32 0.0, %v3144
        %v3146 = vpop.f32.mrb[0].mxu0
        %3147 = vmatprep.mubr.bf16.mxu0 0
        %3148 = vmatmul.mubr.bf16.gmra.mrb[0].mxu0 %v3056
        %v3149 = vpop.f32.mrb[0].mxu0
        %v3150 = vadd.f32 0.0, %v3149
        %v3151 = vpop.f32.mrb[0].mxu0
        %v3152 = vpop.f32.mrb[0].mxu0
        %v3153 = vadd.f32 0.0, %v3152
        %v3154 = vpop.f32.mrb[0].mxu0
        %3155 = vmatprep.mubr.bf16.mxu0 0
        %3156 = vmatmul.mubr.bf16.gmra.mrb[0].mxu0 %v3059
        %v3157 = vpop.f32.mrb[0].mxu0
        %v3158 = vadd.f32 0.0, %v3157
        %v3159 = vpop.f32.mrb[0].mxu0
        %v3160 = vpop.f32.mrb[0].mxu0
        %v3161 = vadd.f32 0.0, %v3160
        %v3162 = vpop.f32.mrb[0].mxu0
        %3163 = vmatprep.mubr.bf16.mxu0 0
        %3164 = vmatmul.mubr.bf16.gmra.mrb[0].mxu0 %v3062
        %v3165 = vpop.f32.mrb[0].mxu0
        %v3166 = vadd.f32 0.0, %v3165
        %v3167 = vpop.f32.mrb[0].mxu0
        %v3168 = vpop.f32.mrb[0].mxu0
        %v3169 = vadd.f32 0.0, %v3168
        %v3170 = vpop.f32.mrb[0].mxu0
        %3171 = vmatprep.mubr.bf16.mxu0 0
        %3172 = vmatmul.mubr.bf16.gmra.mrb[0].mxu0 %v3065
        %v3173 = vpop.f32.mrb[0].mxu0
        %v3174 = vadd.f32 0.0, %v3173
        %v3175 = vpop.f32.mrb[0].mxu0
        %v3176 = vpop.f32.mrb[0].mxu0
        %v3177 = vadd.f32 0.0, %v3176
        %v3178 = vpop.f32.mrb[0].mxu0
        %3179 = vdwg.mxu0
        %3180 = vrot.lane.b32.xlu0 %v3102, 4
        %v3181 = vpop.permute.xlu0 %3180
        %3182 = vrot.lane.b32.xlu0 %v3105, 4
        %v3183 = vpop.permute.xlu0 %3182
        %3184 = vrot.lane.b32.xlu0 %v3110, 4
        %v3185 = vpop.permute.xlu0 %3184
        %3186 = vrot.lane.b32.xlu0 %v3113, 4
        %v3187 = vpop.permute.xlu0 %3186
        %3188 = vrot.lane.b32.xlu0 %v3118, 4
        %v3189 = vpop.permute.xlu0 %3188
        %3190 = vrot.lane.b32.xlu0 %v3121, 4
        %v3191 = vpop.permute.xlu0 %3190
        %3192 = vrot.lane.b32.xlu0 %v3126, 4
        %v3193 = vpop.permute.xlu0 %3192
        %3194 = vrot.lane.b32.xlu0 %v3129, 4
        %v3195 = vpop.permute.xlu0 %3194
        %3196 = vrot.lane.b32.xlu0 %v3134, 4
        %v3197 = vpop.permute.xlu0 %3196
        %3198 = vrot.lane.b32.xlu0 %v3137, 4
        %v3199 = vpop.permute.xlu0 %3198
        %v3200 = vsel %vm2620, %v3181, 0.0
        %v3201 = vsel %vm2620, %v3183, 0.0
        %v3202 = vsel %vm2620, %v3185, 0.0
        %v3203 = vsel %vm2620, %v3187, 0.0
        %v3204 = vsel %vm2620, %v3189, 0.0
        %v3205 = vsel %vm2620, %v3191, 0.0
        %v3206 = vsel %vm2620, %v3193, 0.0
        %v3207 = vsel %vm2620, %v3195, 0.0
        %v3208 = vsel %vm2620, %v3197, 0.0
        %v3209 = vsel %vm2620, %v3199, 0.0
        %v3210 = vadd.f32 %v3200, %v3142
        %v3211 = vadd.f32 %v3201, %v3145
        %v3212 = vadd.f32 %v3202, %v3150
        %v3213 = vadd.f32 %v3203, %v3153
        %v3214 = vadd.f32 %v3204, %v3158
        %v3215 = vadd.f32 %v3205, %v3161
        %v3216 = vadd.f32 %v3206, %v3166
        %v3217 = vadd.f32 %v3207, %v3169
        %v3218 = vadd.f32 %v3208, %v3174
        %v3219 = vadd.f32 %v3209, %v3177
        %s3220 = scalar_lea.vmem %s10, 160
        %v3221 = vld [vmem:[%s3220] sm:$0xff]
        %v3222 = vld [vmem:[%s3220 + $0x8] sm:$0xff]
        %v3223 = vld [vmem:[%s3220 + $0x10] sm:$0xff]
        %v3224 = vld [vmem:[%s3220 + $0x18] sm:$0xff]
        %v3225 = vld [vmem:[%s3220 + $0x20] sm:$0xff]
        %v3226 = vld [vmem:[%s3220 + $0x28] sm:$0xff]
        %v3227 = vld [vmem:[%s3220 + $0x30] sm:$0xff]
        %v3228 = vld [vmem:[%s3220 + $0x38] sm:$0xff]
        %v3229 = vld [vmem:[%s3220 + $0x40] sm:$0xff]
        %v3230 = vld [vmem:[%s3220 + $0x48] sm:$0xff]
        %3232 = vset.pattern.permute.xlu0 0
        %3233 = vperm.xlu0 %3232, %v3221
        %v3234 = vpop.permute.xlu0 %3233
        %3237 = vset.pattern.permute.xlu0 0
        %3238 = vperm.xlu0 %3237, %v3222
        %v3239 = vpop.permute.xlu0 %3238
        %3242 = vset.pattern.permute.xlu0 0
        %3243 = vperm.xlu0 %3242, %v3223
        %v3244 = vpop.permute.xlu0 %3243
        %3247 = vset.pattern.permute.xlu0 0
        %3248 = vperm.xlu0 %3247, %v3224
        %v3249 = vpop.permute.xlu0 %3248
        %3252 = vset.pattern.permute.xlu0 0
        %3253 = vperm.xlu0 %3252, %v3225
        %v3254 = vpop.permute.xlu0 %3253
        %3257 = vset.pattern.permute.xlu0 0
        %3258 = vperm.xlu0 %3257, %v3226
        %v3259 = vpop.permute.xlu0 %3258
        %3262 = vset.pattern.permute.xlu0 0
        %3263 = vperm.xlu0 %3262, %v3227
        %v3264 = vpop.permute.xlu0 %3263
        %3267 = vset.pattern.permute.xlu0 0
        %3268 = vperm.xlu0 %3267, %v3228
        %v3269 = vpop.permute.xlu0 %3268
        %3272 = vset.pattern.permute.xlu0 0
        %3273 = vperm.xlu0 %3272, %v3229
        %v3274 = vpop.permute.xlu0 %3273
        %3277 = vset.pattern.permute.xlu0 0
        %3278 = vperm.xlu0 %3277, %v3230
        %v3279 = vpop.permute.xlu0 %3278
        %v3281 = vadd.f32 %v3210, %v3234
        %v3282 = vadd.f32 %v3211, %v3239
        %v3283 = vadd.f32 %v3212, %v3244
        %v3284 = vadd.f32 %v3213, %v3249
        %v3285 = vadd.f32 %v3214, %v3254
        %v3286 = vadd.f32 %v3215, %v3259
        %v3287 = vadd.f32 %v3216, %v3264
        %v3288 = vadd.f32 %v3217, %v3269
        %v3289 = vadd.f32 %v3218, %v3274
        %v3290 = vadd.f32 %v3219, %v3279
        %v3291 = vmax.f32 %v3281, 0.0
        %v3292 = vmax.f32 %v3282, 0.0
        %v3293 = vmax.f32 %v3283, 0.0
        %v3294 = vmax.f32 %v3284, 0.0
        %v3295 = vmax.f32 %v3285, 0.0
        %v3296 = vmax.f32 %v3286, 0.0
        %v3297 = vmax.f32 %v3287, 0.0
        %v3298 = vmax.f32 %v3288, 0.0
        %v3299 = vmax.f32 %v3289, 0.0
        %v3300 = vmax.f32 %v3290, 0.0
        %v3301 = vadd.f32 %v2590, %v3291
        %v3302 = vadd.f32 %v2591, %v3292
        %v3303 = vadd.f32 %v2592, %v3293
        %v3304 = vadd.f32 %v2593, %v3294
        %v3305 = vadd.f32 %v2594, %v3295
        %v3306 = vadd.f32 %v2595, %v3296
        %v3307 = vadd.f32 %v2596, %v3297
        %v3308 = vadd.f32 %v2597, %v3298
        %v3309 = vadd.f32 %v2598, %v3299
        %v3310 = vadd.f32 %v2599, %v3300
        %v3311 = vadd.f32 %v3291, %v2610
        %v3312 = vadd.f32 %v3292, %v2611
        %v3313 = vadd.f32 %v3293, %v2612
        %v3314 = vadd.f32 %v3294, %v2613
        %v3315 = vadd.f32 %v3295, %v2614
        %v3316 = vadd.f32 %v3296, %v2615
        %v3317 = vadd.f32 %v3297, %v2616
        %v3318 = vadd.f32 %v3298, %v2617
        %v3319 = vadd.f32 %v3299, %v2618
        %v3320 = vadd.f32 %v3300, %v2619
        %v3321 = vmax.f32 %v3311, 0.0
        %v3322 = vmax.f32 %v3312, 0.0
        %v3323 = vmax.f32 %v3313, 0.0
        %v3324 = vmax.f32 %v3314, 0.0
        %v3325 = vmax.f32 %v3315, 0.0
        %v3326 = vmax.f32 %v3316, 0.0
        %v3327 = vmax.f32 %v3317, 0.0
        %v3328 = vmax.f32 %v3318, 0.0
        %v3329 = vmax.f32 %v3319, 0.0
        %v3330 = vmax.f32 %v3320, 0.0
        %vm3331 = vcmp.ge.s32.totalorder %v1201, 8
        %s3332 = scalar_lea.vmem %s7, 240
        %v3333 = vld [vmem:[%s3332] sm:$0xf]
        %v3334 = vld [vmem:[%s3332 + $0x4] sm:$0xf]
        %v3335 = vld [vmem:[%s3332 + $0x8] sm:$0xf]
        %v3336 = vld [vmem:[%s3332 + $0xc] sm:$0xf]
        %v3337 = vld [vmem:[%s3332 + $0x10] sm:$0xf]
        %v3338 = vld [vmem:[%s3332 + $0x14] sm:$0xf]
        %v3339 = vld [vmem:[%s3332 + $0x18] sm:$0xf]
        %v3340 = vld [vmem:[%s3332 + $0x1c] sm:$0xf]
        %v3341 = vld [vmem:[%s3332 + $0x20] sm:$0xf]
        %v3342 = vld [vmem:[%s3332 + $0x24] sm:$0xf]
        %v3343 = vld [vmem:[%s3332 + $0x28] sm:$0xf]
        %v3344 = vld [vmem:[%s3332 + $0x2c] sm:$0xf]
        %v3345 = vld [vmem:[%s3332 + $0x30] sm:$0xf]
        %v3346 = vld [vmem:[%s3332 + $0x34] sm:$0xf]
        %v3347 = vld [vmem:[%s3332 + $0x38] sm:$0xf]
        %v3348 = vld [vmem:[%s3332 + $0x3c] sm:$0xf]
        %v3349 = vld [vmem:[%s3332 + $0x40] sm:$0xf]
        %v3350 = vld [vmem:[%s3332 + $0x44] sm:$0xf]
        %v3351 = vld [vmem:[%s3332 + $0x48] sm:$0xf]
        %v3352 = vld [vmem:[%s3332 + $0x4c] sm:$0xf]
        %v3353 = vpack.c.bf16 %v3322, %v3321
        %v3354 = vpack.c.bf16 %v3324, %v3323
        %v3355 = vpack.c.bf16 %v3326, %v3325
        %v3356 = vpack.c.bf16 %v3328, %v3327
        %v3357 = vpack.c.bf16 %v3330, %v3329
        %v3378 = vunpack.c.l.b16 %v3333
        %v3379 = vunpack.c.l.b16 %v3334
        %v3380 = vunpack.c.l.b16 %v3335
        %v3381 = vunpack.c.l.b16 %v3336
        %v3382 = vunpack.c.l.b16 %v3337
        %v3383 = vunpack.c.l.b16 %v3338
        %v3384 = vunpack.c.l.b16 %v3339
        %v3385 = vunpack.c.l.b16 %v3340
        %v3386 = vunpack.c.l.b16 %v3341
        %v3387 = vunpack.c.l.b16 %v3342
        %v3388 = vunpack.c.l.b16 %v3343
        %v3389 = vunpack.c.l.b16 %v3344
        %v3390 = vunpack.c.l.b16 %v3345
        %v3391 = vunpack.c.l.b16 %v3346
        %v3392 = vunpack.c.l.b16 %v3347
        %v3393 = vunpack.c.l.b16 %v3348
        %v3394 = vunpack.c.l.b16 %v3349
        %v3395 = vunpack.c.l.b16 %v3350
        %v3396 = vunpack.c.l.b16 %v3351
        %v3397 = vunpack.c.l.b16 %v3352
        %v3398 = vpack.c.b16 %v3379, %v3378
        %v3399 = vpack.c.b16 %v3381, %v3380
        %v3400 = vpack.c.b16 %v3383, %v3382
        %v3401 = vpack.c.b16 %v3385, %v3384
        %v3402 = vpack.c.b16 %v3387, %v3386
        %v3403 = vpack.c.b16 %v3389, %v3388
        %v3404 = vpack.c.b16 %v3391, %v3390
        %v3405 = vpack.c.b16 %v3393, %v3392
        %v3406 = vpack.c.b16 %v3395, %v3394
        %v3407 = vpack.c.b16 %v3397, %v3396
        %v3409 = vsel %vm821, %v3398, 0
        %v3412 = vsel %vm821, %v3399, 0
        %v3415 = vsel %vm821, %v3400, 0
        %v3418 = vsel %vm821, %v3401, 0
        %v3421 = vsel %vm821, %v3402, 0
        %v3424 = vsel %vm821, %v3403, 0
        %v3427 = vsel %vm821, %v3404, 0
        %v3430 = vsel %vm821, %v3405, 0
        %v3433 = vsel %vm821, %v3406, 0
        %v3436 = vsel %vm821, %v3407, 0
        %3438 = vmatprep.subr.bf16.mxu0 0
        %3439 = vmatpush1.bf16.msra.mxu0 %v3353
        %3440 = vmatprep.subr.bf16.mxu0 0
        %3441 = vmatpush1.bf16.msra.mxu0 %v3354
        %3442 = vmatprep.subr.bf16.mxu0 0
        %3443 = vmatpush1.bf16.msra.mxu0 %v3355
        %3444 = vmatprep.subr.bf16.mxu0 0
        %3445 = vmatpush1.bf16.msra.mxu0 %v3356
        %3446 = vmatprep.subr.bf16.mxu0 0
        %3447 = vmatpush1.bf16.msra.mxu0 %v3357
        %3448 = vmatprep.subr.bf16.mxu0 0
        %3449 = vmatpush1.bf16.msra.mxu0 0
        %3450 = vmatprep.subr.bf16.mxu0 0
        %3451 = vmatpush1.bf16.msra.mxu0 0
        %3452 = vmatprep.subr.bf16.mxu0 0
        %3453 = vmatpush1.bf16.msra.mxu0 0
        %3454 = vmatprep.subr.bf16.mxu0 0
        %3455 = vmatpush1.bf16.msra.mxu0 0
        %3456 = vmatprep.subr.bf16.mxu0 0
        %3457 = vmatpush1.bf16.msra.mxu0 0
        %3458 = vmatprep.subr.bf16.mxu0 0
        %3459 = vmatpush1.bf16.msra.mxu0 0
        %3460 = vmatprep.subr.bf16.mxu0 0
        %3461 = vmatpush1.bf16.msra.mxu0 0
        %3462 = vmatprep.subr.bf16.mxu0 0
        %3463 = vmatpush1.bf16.msra.mxu0 0
        %3464 = vmatprep.subr.bf16.mxu0 0
        %3465 = vmatpush1.bf16.msra.mxu0 0
        %3466 = vmatprep.subr.bf16.mxu0 0
        %3467 = vmatpush1.bf16.msra.mxu0 0
        %3468 = vmatprep.subr.bf16.mxu0 0
        %3469 = vmatpush1.bf16.msra.mxu0 0
        %3470 = vmatprep.mubr.bf16.mxu0 0
        %3471 = vmatmul.mubr.bf16.gmra.mrb[0].mxu0 %v3409
        %v3472 = vpop.f32.mrb[0].mxu0
        %v3473 = vadd.f32 0.0, %v3472
        %v3474 = vpop.f32.mrb[0].mxu0
        %v3475 = vpop.f32.mrb[0].mxu0
        %v3476 = vadd.f32 0.0, %v3475
        %v3477 = vpop.f32.mrb[0].mxu0
        %3478 = vmatprep.mubr.bf16.mxu0 0
        %3479 = vmatmul.mubr.bf16.gmra.mrb[0].mxu0 %v3412
        %v3480 = vpop.f32.mrb[0].mxu0
        %v3481 = vadd.f32 0.0, %v3480
        %v3482 = vpop.f32.mrb[0].mxu0
        %v3483 = vpop.f32.mrb[0].mxu0
        %v3484 = vadd.f32 0.0, %v3483
        %v3485 = vpop.f32.mrb[0].mxu0
        %3486 = vmatprep.mubr.bf16.mxu0 0
        %3487 = vmatmul.mubr.bf16.gmra.mrb[0].mxu0 %v3415
        %v3488 = vpop.f32.mrb[0].mxu0
        %v3489 = vadd.f32 0.0, %v3488
        %v3490 = vpop.f32.mrb[0].mxu0
        %v3491 = vpop.f32.mrb[0].mxu0
        %v3492 = vadd.f32 0.0, %v3491
        %v3493 = vpop.f32.mrb[0].mxu0
        %3494 = vmatprep.mubr.bf16.mxu0 0
        %3495 = vmatmul.mubr.bf16.gmra.mrb[0].mxu0 %v3418
        %v3496 = vpop.f32.mrb[0].mxu0
        %v3497 = vadd.f32 0.0, %v3496
        %v3498 = vpop.f32.mrb[0].mxu0
        %v3499 = vpop.f32.mrb[0].mxu0
        %v3500 = vadd.f32 0.0, %v3499
        %v3501 = vpop.f32.mrb[0].mxu0
        %3502 = vmatprep.mubr.bf16.mxu0 0
        %3503 = vmatmul.mubr.bf16.gmra.mrb[0].mxu0 %v3421
        %v3504 = vpop.f32.mrb[0].mxu0
        %v3505 = vadd.f32 0.0, %v3504
        %v3506 = vpop.f32.mrb[0].mxu0
        %v3507 = vpop.f32.mrb[0].mxu0
        %v3508 = vadd.f32 0.0, %v3507
        %v3509 = vpop.f32.mrb[0].mxu0
        %3510 = vmatprep.mubr.bf16.mxu0 0
        %3511 = vmatmul.mubr.bf16.gmra.mrb[0].mxu0 %v3424
        %v3512 = vpop.f32.mrb[0].mxu0
        %v3513 = vadd.f32 0.0, %v3512
        %v3514 = vpop.f32.mrb[0].mxu0
        %v3515 = vpop.f32.mrb[0].mxu0
        %v3516 = vadd.f32 0.0, %v3515
        %v3517 = vpop.f32.mrb[0].mxu0
        %3518 = vmatprep.mubr.bf16.mxu0 0
        %3519 = vmatmul.mubr.bf16.gmra.mrb[0].mxu0 %v3427
        %v3520 = vpop.f32.mrb[0].mxu0
        %v3521 = vadd.f32 0.0, %v3520
        %v3522 = vpop.f32.mrb[0].mxu0
        %v3523 = vpop.f32.mrb[0].mxu0
        %v3524 = vadd.f32 0.0, %v3523
        %v3525 = vpop.f32.mrb[0].mxu0
        %3526 = vmatprep.mubr.bf16.mxu0 0
        %3527 = vmatmul.mubr.bf16.gmra.mrb[0].mxu0 %v3430
        %v3528 = vpop.f32.mrb[0].mxu0
        %v3529 = vadd.f32 0.0, %v3528
        %v3530 = vpop.f32.mrb[0].mxu0
        %v3531 = vpop.f32.mrb[0].mxu0
        %v3532 = vadd.f32 0.0, %v3531
        %v3533 = vpop.f32.mrb[0].mxu0
        %3534 = vmatprep.mubr.bf16.mxu0 0
        %3535 = vmatmul.mubr.bf16.gmra.mrb[0].mxu0 %v3433
        %v3536 = vpop.f32.mrb[0].mxu0
        %v3537 = vadd.f32 0.0, %v3536
        %v3538 = vpop.f32.mrb[0].mxu0
        %v3539 = vpop.f32.mrb[0].mxu0
        %v3540 = vadd.f32 0.0, %v3539
        %v3541 = vpop.f32.mrb[0].mxu0
        %3542 = vmatprep.mubr.bf16.mxu0 0
        %3543 = vmatmul.mubr.bf16.gmra.mrb[0].mxu0 %v3436
        %v3544 = vpop.f32.mrb[0].mxu0
        %v3545 = vadd.f32 0.0, %v3544
        %v3546 = vpop.f32.mrb[0].mxu0
        %v3547 = vpop.f32.mrb[0].mxu0
        %v3548 = vadd.f32 0.0, %v3547
        %v3549 = vpop.f32.mrb[0].mxu0
        %3550 = vdwg.mxu0
        %3551 = vrot.lane.b32.xlu0 %v3473, 8
        %v3552 = vpop.permute.xlu0 %3551
        %3553 = vrot.lane.b32.xlu0 %v3476, 8
        %v3554 = vpop.permute.xlu0 %3553
        %3555 = vrot.lane.b32.xlu0 %v3481, 8
        %v3556 = vpop.permute.xlu0 %3555
        %3557 = vrot.lane.b32.xlu0 %v3484, 8
        %v3558 = vpop.permute.xlu0 %3557
        %3559 = vrot.lane.b32.xlu0 %v3489, 8
        %v3560 = vpop.permute.xlu0 %3559
        %3561 = vrot.lane.b32.xlu0 %v3492, 8
        %v3562 = vpop.permute.xlu0 %3561
        %3563 = vrot.lane.b32.xlu0 %v3497, 8
        %v3564 = vpop.permute.xlu0 %3563
        %3565 = vrot.lane.b32.xlu0 %v3500, 8
        %v3566 = vpop.permute.xlu0 %3565
        %3567 = vrot.lane.b32.xlu0 %v3505, 8
        %v3568 = vpop.permute.xlu0 %3567
        %3569 = vrot.lane.b32.xlu0 %v3508, 8
        %v3570 = vpop.permute.xlu0 %3569
        %v3571 = vsel %vm3331, %v3552, 0.0
        %v3572 = vsel %vm3331, %v3554, 0.0
        %v3573 = vsel %vm3331, %v3556, 0.0
        %v3574 = vsel %vm3331, %v3558, 0.0
        %v3575 = vsel %vm3331, %v3560, 0.0
        %v3576 = vsel %vm3331, %v3562, 0.0
        %v3577 = vsel %vm3331, %v3564, 0.0
        %v3578 = vsel %vm3331, %v3566, 0.0
        %v3579 = vsel %vm3331, %v3568, 0.0
        %v3580 = vsel %vm3331, %v3570, 0.0
        %v3581 = vadd.f32 %v3571, %v3513
        %v3582 = vadd.f32 %v3572, %v3516
        %v3583 = vadd.f32 %v3573, %v3521
        %v3584 = vadd.f32 %v3574, %v3524
        %v3585 = vadd.f32 %v3575, %v3529
        %v3586 = vadd.f32 %v3576, %v3532
        %v3587 = vadd.f32 %v3577, %v3537
        %v3588 = vadd.f32 %v3578, %v3540
        %v3589 = vadd.f32 %v3579, %v3545
        %v3590 = vadd.f32 %v3580, %v3548
        %s3591 = scalar_lea.vmem %s8, 240
        %v3592 = vld [vmem:[%s3591] sm:$0xff]
        %v3593 = vld [vmem:[%s3591 + $0x8] sm:$0xff]
        %v3594 = vld [vmem:[%s3591 + $0x10] sm:$0xff]
        %v3595 = vld [vmem:[%s3591 + $0x18] sm:$0xff]
        %v3596 = vld [vmem:[%s3591 + $0x20] sm:$0xff]
        %v3597 = vld [vmem:[%s3591 + $0x28] sm:$0xff]
        %v3598 = vld [vmem:[%s3591 + $0x30] sm:$0xff]
        %v3599 = vld [vmem:[%s3591 + $0x38] sm:$0xff]
        %v3600 = vld [vmem:[%s3591 + $0x40] sm:$0xff]
        %v3601 = vld [vmem:[%s3591 + $0x48] sm:$0xff]
        %3603 = vset.pattern.permute.xlu0 0
        %3604 = vperm.xlu0 %3603, %v3592
        %v3605 = vpop.permute.xlu0 %3604
        %3608 = vset.pattern.permute.xlu0 0
        %3609 = vperm.xlu0 %3608, %v3593
        %v3610 = vpop.permute.xlu0 %3609
        %3613 = vset.pattern.permute.xlu0 0
        %3614 = vperm.xlu0 %3613, %v3594
        %v3615 = vpop.permute.xlu0 %3614
        %3618 = vset.pattern.permute.xlu0 0
        %3619 = vperm.xlu0 %3618, %v3595
        %v3620 = vpop.permute.xlu0 %3619
        %3623 = vset.pattern.permute.xlu0 0
        %3624 = vperm.xlu0 %3623, %v3596
        %v3625 = vpop.permute.xlu0 %3624
        %3628 = vset.pattern.permute.xlu0 0
        %3629 = vperm.xlu0 %3628, %v3597
        %v3630 = vpop.permute.xlu0 %3629
        %3633 = vset.pattern.permute.xlu0 0
        %3634 = vperm.xlu0 %3633, %v3598
        %v3635 = vpop.permute.xlu0 %3634
        %3638 = vset.pattern.permute.xlu0 0
        %3639 = vperm.xlu0 %3638, %v3599
        %v3640 = vpop.permute.xlu0 %3639
        %3643 = vset.pattern.permute.xlu0 0
        %3644 = vperm.xlu0 %3643, %v3600
        %v3645 = vpop.permute.xlu0 %3644
        %3648 = vset.pattern.permute.xlu0 0
        %3649 = vperm.xlu0 %3648, %v3601
        %v3650 = vpop.permute.xlu0 %3649
        %v3652 = vadd.f32 %v3581, %v3605
        %v3653 = vadd.f32 %v3582, %v3610
        %v3654 = vadd.f32 %v3583, %v3615
        %v3655 = vadd.f32 %v3584, %v3620
        %v3656 = vadd.f32 %v3585, %v3625
        %v3657 = vadd.f32 %v3586, %v3630
        %v3658 = vadd.f32 %v3587, %v3635
        %v3659 = vadd.f32 %v3588, %v3640
        %v3660 = vadd.f32 %v3589, %v3645
        %v3661 = vadd.f32 %v3590, %v3650
        %v3662 = vmax.f32 %v3652, 0.0
        %v3663 = vmax.f32 %v3653, 0.0
        %v3664 = vmax.f32 %v3654, 0.0
        %v3665 = vmax.f32 %v3655, 0.0
        %v3666 = vmax.f32 %v3656, 0.0
        %v3667 = vmax.f32 %v3657, 0.0
        %v3668 = vmax.f32 %v3658, 0.0
        %v3669 = vmax.f32 %v3659, 0.0
        %v3670 = vmax.f32 %v3660, 0.0
        %v3671 = vmax.f32 %v3661, 0.0
        %s3672 = scalar_lea.vmem %s9, 240
        %v3673 = vld [vmem:[%s3672] sm:$0xf]
        %v3674 = vld [vmem:[%s3672 + $0x4] sm:$0xf]
        %v3675 = vld [vmem:[%s3672 + $0x8] sm:$0xf]
        %v3676 = vld [vmem:[%s3672 + $0xc] sm:$0xf]
        %v3677 = vld [vmem:[%s3672 + $0x10] sm:$0xf]
        %v3678 = vld [vmem:[%s3672 + $0x14] sm:$0xf]
        %v3679 = vld [vmem:[%s3672 + $0x18] sm:$0xf]
        %v3680 = vld [vmem:[%s3672 + $0x1c] sm:$0xf]
        %v3681 = vld [vmem:[%s3672 + $0x20] sm:$0xf]
        %v3682 = vld [vmem:[%s3672 + $0x24] sm:$0xf]
        %v3683 = vld [vmem:[%s3672 + $0x28] sm:$0xf]
        %v3684 = vld [vmem:[%s3672 + $0x2c] sm:$0xf]
        %v3685 = vld [vmem:[%s3672 + $0x30] sm:$0xf]
        %v3686 = vld [vmem:[%s3672 + $0x34] sm:$0xf]
        %v3687 = vld [vmem:[%s3672 + $0x38] sm:$0xf]
        %v3688 = vld [vmem:[%s3672 + $0x3c] sm:$0xf]
        %v3689 = vld [vmem:[%s3672 + $0x40] sm:$0xf]
        %v3690 = vld [vmem:[%s3672 + $0x44] sm:$0xf]
        %v3691 = vld [vmem:[%s3672 + $0x48] sm:$0xf]
        %v3692 = vld [vmem:[%s3672 + $0x4c] sm:$0xf]
        %v3693 = vpack.c.bf16 %v3663, %v3662
        %v3694 = vpack.c.bf16 %v3665, %v3664
        %v3695 = vpack.c.bf16 %v3667, %v3666
        %v3696 = vpack.c.bf16 %v3669, %v3668
        %v3697 = vpack.c.bf16 %v3671, %v3670
        %v3718 = vunpack.c.l.b16 %v3673
        %v3719 = vunpack.c.l.b16 %v3674
        %v3720 = vunpack.c.l.b16 %v3675
        %v3721 = vunpack.c.l.b16 %v3676
        %v3722 = vunpack.c.l.b16 %v3677
        %v3723 = vunpack.c.l.b16 %v3678
        %v3724 = vunpack.c.l.b16 %v3679
        %v3725 = vunpack.c.l.b16 %v3680
        %v3726 = vunpack.c.l.b16 %v3681
        %v3727 = vunpack.c.l.b16 %v3682
        %v3728 = vunpack.c.l.b16 %v3683
        %v3729 = vunpack.c.l.b16 %v3684
        %v3730 = vunpack.c.l.b16 %v3685
        %v3731 = vunpack.c.l.b16 %v3686
        %v3732 = vunpack.c.l.b16 %v3687
        %v3733 = vunpack.c.l.b16 %v3688
        %v3734 = vunpack.c.l.b16 %v3689
        %v3735 = vunpack.c.l.b16 %v3690
        %v3736 = vunpack.c.l.b16 %v3691
        %v3737 = vunpack.c.l.b16 %v3692
        %v3738 = vpack.c.b16 %v3719, %v3718
        %v3739 = vpack.c.b16 %v3721, %v3720
        %v3740 = vpack.c.b16 %v3723, %v3722
        %v3741 = vpack.c.b16 %v3725, %v3724
        %v3742 = vpack.c.b16 %v3727, %v3726
        %v3743 = vpack.c.b16 %v3729, %v3728
        %v3744 = vpack.c.b16 %v3731, %v3730
        %v3745 = vpack.c.b16 %v3733, %v3732
        %v3746 = vpack.c.b16 %v3735, %v3734
        %v3747 = vpack.c.b16 %v3737, %v3736
        %v3749 = vsel %vm821, %v3738, 0
        %v3752 = vsel %vm821, %v3739, 0
        %v3755 = vsel %vm821, %v3740, 0
        %v3758 = vsel %vm821, %v3741, 0
        %v3761 = vsel %vm821, %v3742, 0
        %v3764 = vsel %vm821, %v3743, 0
        %v3767 = vsel %vm821, %v3744, 0
        %v3770 = vsel %vm821, %v3745, 0
        %v3773 = vsel %vm821, %v3746, 0
        %v3776 = vsel %vm821, %v3747, 0
        %3778 = vmatprep.subr.bf16.mxu0 0
        %3779 = vmatpush1.bf16.msra.mxu0 %v3693
        %3780 = vmatprep.subr.bf16.mxu0 0
        %3781 = vmatpush1.bf16.msra.mxu0 %v3694
        %3782 = vmatprep.subr.bf16.mxu0 0
        %3783 = vmatpush1.bf16.msra.mxu0 %v3695
        %3784 = vmatprep.subr.bf16.mxu0 0
        %3785 = vmatpush1.bf16.msra.mxu0 %v3696
        %3786 = vmatprep.subr.bf16.mxu0 0
        %3787 = vmatpush1.bf16.msra.mxu0 %v3697
        %3788 = vmatprep.subr.bf16.mxu0 0
        %3789 = vmatpush1.bf16.msra.mxu0 0
        %3790 = vmatprep.subr.bf16.mxu0 0
        %3791 = vmatpush1.bf16.msra.mxu0 0
        %3792 = vmatprep.subr.bf16.mxu0 0
        %3793 = vmatpush1.bf16.msra.mxu0 0
        %3794 = vmatprep.subr.bf16.mxu0 0
        %3795 = vmatpush1.bf16.msra.mxu0 0
        %3796 = vmatprep.subr.bf16.mxu0 0
        %3797 = vmatpush1.bf16.msra.mxu0 0
        %3798 = vmatprep.subr.bf16.mxu0 0
        %3799 = vmatpush1.bf16.msra.mxu0 0
        %3800 = vmatprep.subr.bf16.mxu0 0
        %3801 = vmatpush1.bf16.msra.mxu0 0
        %3802 = vmatprep.subr.bf16.mxu0 0
        %3803 = vmatpush1.bf16.msra.mxu0 0
        %3804 = vmatprep.subr.bf16.mxu0 0
        %3805 = vmatpush1.bf16.msra.mxu0 0
        %3806 = vmatprep.subr.bf16.mxu0 0
        %3807 = vmatpush1.bf16.msra.mxu0 0
        %3808 = vmatprep.subr.bf16.mxu0 0
        %3809 = vmatpush1.bf16.msra.mxu0 0
        %3810 = vmatprep.mubr.bf16.mxu0 0
        %3811 = vmatmul.mubr.bf16.gmra.mrb[0].mxu0 %v3749
        %v3812 = vpop.f32.mrb[0].mxu0
        %v3813 = vadd.f32 0.0, %v3812
        %v3814 = vpop.f32.mrb[0].mxu0
        %v3815 = vpop.f32.mrb[0].mxu0
        %v3816 = vadd.f32 0.0, %v3815
        %v3817 = vpop.f32.mrb[0].mxu0
        %3818 = vmatprep.mubr.bf16.mxu0 0
        %3819 = vmatmul.mubr.bf16.gmra.mrb[0].mxu0 %v3752
        %v3820 = vpop.f32.mrb[0].mxu0
        %v3821 = vadd.f32 0.0, %v3820
        %v3822 = vpop.f32.mrb[0].mxu0
        %v3823 = vpop.f32.mrb[0].mxu0
        %v3824 = vadd.f32 0.0, %v3823
        %v3825 = vpop.f32.mrb[0].mxu0
        %3826 = vmatprep.mubr.bf16.mxu0 0
        %3827 = vmatmul.mubr.bf16.gmra.mrb[0].mxu0 %v3755
        %v3828 = vpop.f32.mrb[0].mxu0
        %v3829 = vadd.f32 0.0, %v3828
        %v3830 = vpop.f32.mrb[0].mxu0
        %v3831 = vpop.f32.mrb[0].mxu0
        %v3832 = vadd.f32 0.0, %v3831
        %v3833 = vpop.f32.mrb[0].mxu0
        %3834 = vmatprep.mubr.bf16.mxu0 0
        %3835 = vmatmul.mubr.bf16.gmra.mrb[0].mxu0 %v3758
        %v3836 = vpop.f32.mrb[0].mxu0
        %v3837 = vadd.f32 0.0, %v3836
        %v3838 = vpop.f32.mrb[0].mxu0
        %v3839 = vpop.f32.mrb[0].mxu0
        %v3840 = vadd.f32 0.0, %v3839
        %v3841 = vpop.f32.mrb[0].mxu0
        %3842 = vmatprep.mubr.bf16.mxu0 0
        %3843 = vmatmul.mubr.bf16.gmra.mrb[0].mxu0 %v3761
        %v3844 = vpop.f32.mrb[0].mxu0
        %v3845 = vadd.f32 0.0, %v3844
        %v3846 = vpop.f32.mrb[0].mxu0
        %v3847 = vpop.f32.mrb[0].mxu0
        %v3848 = vadd.f32 0.0, %v3847
        %v3849 = vpop.f32.mrb[0].mxu0
        %3850 = vmatprep.mubr.bf16.mxu0 0
        %3851 = vmatmul.mubr.bf16.gmra.mrb[0].mxu0 %v3764
        %v3852 = vpop.f32.mrb[0].mxu0
        %v3853 = vadd.f32 0.0, %v3852
        %v3854 = vpop.f32.mrb[0].mxu0
        %v3855 = vpop.f32.mrb[0].mxu0
        %v3856 = vadd.f32 0.0, %v3855
        %v3857 = vpop.f32.mrb[0].mxu0
        %3858 = vmatprep.mubr.bf16.mxu0 0
        %3859 = vmatmul.mubr.bf16.gmra.mrb[0].mxu0 %v3767
        %v3860 = vpop.f32.mrb[0].mxu0
        %v3861 = vadd.f32 0.0, %v3860
        %v3862 = vpop.f32.mrb[0].mxu0
        %v3863 = vpop.f32.mrb[0].mxu0
        %v3864 = vadd.f32 0.0, %v3863
        %v3865 = vpop.f32.mrb[0].mxu0
        %3866 = vmatprep.mubr.bf16.mxu0 0
        %3867 = vmatmul.mubr.bf16.gmra.mrb[0].mxu0 %v3770
        %v3868 = vpop.f32.mrb[0].mxu0
        %v3869 = vadd.f32 0.0, %v3868
        %v3870 = vpop.f32.mrb[0].mxu0
        %v3871 = vpop.f32.mrb[0].mxu0
        %v3872 = vadd.f32 0.0, %v3871
        %v3873 = vpop.f32.mrb[0].mxu0
        %3874 = vmatprep.mubr.bf16.mxu0 0
        %3875 = vmatmul.mubr.bf16.gmra.mrb[0].mxu0 %v3773
        %v3876 = vpop.f32.mrb[0].mxu0
        %v3877 = vadd.f32 0.0, %v3876
        %v3878 = vpop.f32.mrb[0].mxu0
        %v3879 = vpop.f32.mrb[0].mxu0
        %v3880 = vadd.f32 0.0, %v3879
        %v3881 = vpop.f32.mrb[0].mxu0
        %3882 = vmatprep.mubr.bf16.mxu0 0
        %3883 = vmatmul.mubr.bf16.gmra.mrb[0].mxu0 %v3776
        %v3884 = vpop.f32.mrb[0].mxu0
        %v3885 = vadd.f32 0.0, %v3884
        %v3886 = vpop.f32.mrb[0].mxu0
        %v3887 = vpop.f32.mrb[0].mxu0
        %v3888 = vadd.f32 0.0, %v3887
        %v3889 = vpop.f32.mrb[0].mxu0
        %3890 = vdwg.mxu0
        %3891 = vrot.lane.b32.xlu0 %v3813, 8
        %v3892 = vpop.permute.xlu0 %3891
        %3893 = vrot.lane.b32.xlu0 %v3816, 8
        %v3894 = vpop.permute.xlu0 %3893
        %3895 = vrot.lane.b32.xlu0 %v3821, 8
        %v3896 = vpop.permute.xlu0 %3895
        %3897 = vrot.lane.b32.xlu0 %v3824, 8
        %v3898 = vpop.permute.xlu0 %3897
        %3899 = vrot.lane.b32.xlu0 %v3829, 8
        %v3900 = vpop.permute.xlu0 %3899
        %3901 = vrot.lane.b32.xlu0 %v3832, 8
        %v3902 = vpop.permute.xlu0 %3901
        %3903 = vrot.lane.b32.xlu0 %v3837, 8
        %v3904 = vpop.permute.xlu0 %3903
        %3905 = vrot.lane.b32.xlu0 %v3840, 8
        %v3906 = vpop.permute.xlu0 %3905
        %3907 = vrot.lane.b32.xlu0 %v3845, 8
        %v3908 = vpop.permute.xlu0 %3907
        %3909 = vrot.lane.b32.xlu0 %v3848, 8
        %v3910 = vpop.permute.xlu0 %3909
        %v3911 = vsel %vm3331, %v3892, 0.0
        %v3912 = vsel %vm3331, %v3894, 0.0
        %v3913 = vsel %vm3331, %v3896, 0.0
        %v3914 = vsel %vm3331, %v3898, 0.0
        %v3915 = vsel %vm3331, %v3900, 0.0
        %v3916 = vsel %vm3331, %v3902, 0.0
        %v3917 = vsel %vm3331, %v3904, 0.0
        %v3918 = vsel %vm3331, %v3906, 0.0
        %v3919 = vsel %vm3331, %v3908, 0.0
        %v3920 = vsel %vm3331, %v3910, 0.0
        %v3921 = vadd.f32 %v3911, %v3853
        %v3922 = vadd.f32 %v3912, %v3856
        %v3923 = vadd.f32 %v3913, %v3861
        %v3924 = vadd.f32 %v3914, %v3864
        %v3925 = vadd.f32 %v3915, %v3869
        %v3926 = vadd.f32 %v3916, %v3872
        %v3927 = vadd.f32 %v3917, %v3877
        %v3928 = vadd.f32 %v3918, %v3880
        %v3929 = vadd.f32 %v3919, %v3885
        %v3930 = vadd.f32 %v3920, %v3888
        %s3931 = scalar_lea.vmem %s10, 240
        %v3932 = vld [vmem:[%s3931] sm:$0xff]
        %v3933 = vld [vmem:[%s3931 + $0x8] sm:$0xff]
        %v3934 = vld [vmem:[%s3931 + $0x10] sm:$0xff]
        %v3935 = vld [vmem:[%s3931 + $0x18] sm:$0xff]
        %v3936 = vld [vmem:[%s3931 + $0x20] sm:$0xff]
        %v3937 = vld [vmem:[%s3931 + $0x28] sm:$0xff]
        %v3938 = vld [vmem:[%s3931 + $0x30] sm:$0xff]
        %v3939 = vld [vmem:[%s3931 + $0x38] sm:$0xff]
        %v3940 = vld [vmem:[%s3931 + $0x40] sm:$0xff]
        %v3941 = vld [vmem:[%s3931 + $0x48] sm:$0xff]
        %3943 = vset.pattern.permute.xlu0 0
        %3944 = vperm.xlu0 %3943, %v3932
        %v3945 = vpop.permute.xlu0 %3944
        %3948 = vset.pattern.permute.xlu0 0
        %3949 = vperm.xlu0 %3948, %v3933
        %v3950 = vpop.permute.xlu0 %3949
        %3953 = vset.pattern.permute.xlu0 0
        %3954 = vperm.xlu0 %3953, %v3934
        %v3955 = vpop.permute.xlu0 %3954
        %3958 = vset.pattern.permute.xlu0 0
        %3959 = vperm.xlu0 %3958, %v3935
        %v3960 = vpop.permute.xlu0 %3959
        %3963 = vset.pattern.permute.xlu0 0
        %3964 = vperm.xlu0 %3963, %v3936
        %v3965 = vpop.permute.xlu0 %3964
        %3968 = vset.pattern.permute.xlu0 0
        %3969 = vperm.xlu0 %3968, %v3937
        %v3970 = vpop.permute.xlu0 %3969
        %3973 = vset.pattern.permute.xlu0 0
        %3974 = vperm.xlu0 %3973, %v3938
        %v3975 = vpop.permute.xlu0 %3974
        %3978 = vset.pattern.permute.xlu0 0
        %3979 = vperm.xlu0 %3978, %v3939
        %v3980 = vpop.permute.xlu0 %3979
        %3983 = vset.pattern.permute.xlu0 0
        %3984 = vperm.xlu0 %3983, %v3940
        %v3985 = vpop.permute.xlu0 %3984
        %3988 = vset.pattern.permute.xlu0 0
        %3989 = vperm.xlu0 %3988, %v3941
        %v3990 = vpop.permute.xlu0 %3989
        %v3992 = vadd.f32 %v3921, %v3945
        %v3993 = vadd.f32 %v3922, %v3950
        %v3994 = vadd.f32 %v3923, %v3955
        %v3995 = vadd.f32 %v3924, %v3960
        %v3996 = vadd.f32 %v3925, %v3965
        %v3997 = vadd.f32 %v3926, %v3970
        %v3998 = vadd.f32 %v3927, %v3975
        %v3999 = vadd.f32 %v3928, %v3980
        %v4000 = vadd.f32 %v3929, %v3985
        %v4001 = vadd.f32 %v3930, %v3990
        %v4002 = vmax.f32 %v3992, 0.0
        %v4003 = vmax.f32 %v3993, 0.0
        %v4004 = vmax.f32 %v3994, 0.0
        %v4005 = vmax.f32 %v3995, 0.0
        %v4006 = vmax.f32 %v3996, 0.0
        %v4007 = vmax.f32 %v3997, 0.0
        %v4008 = vmax.f32 %v3998, 0.0
        %v4009 = vmax.f32 %v3999, 0.0
        %v4010 = vmax.f32 %v4000, 0.0
        %v4011 = vmax.f32 %v4001, 0.0
        %v4012 = vadd.f32 %v3301, %v4002
        %v4013 = vadd.f32 %v3302, %v4003
        %v4014 = vadd.f32 %v3303, %v4004
        %v4015 = vadd.f32 %v3304, %v4005
        %v4016 = vadd.f32 %v3305, %v4006
        %v4017 = vadd.f32 %v3306, %v4007
        %v4018 = vadd.f32 %v3307, %v4008
        %v4019 = vadd.f32 %v3308, %v4009
        %v4020 = vadd.f32 %v3309, %v4010
        %v4021 = vadd.f32 %v3310, %v4011
        %v4022 = vadd.f32 %v4002, %v3321
        %v4023 = vadd.f32 %v4003, %v3322
        %v4024 = vadd.f32 %v4004, %v3323
        %v4025 = vadd.f32 %v4005, %v3324
        %v4026 = vadd.f32 %v4006, %v3325
        %v4027 = vadd.f32 %v4007, %v3326
        %v4028 = vadd.f32 %v4008, %v3327
        %v4029 = vadd.f32 %v4009, %v3328
        %v4030 = vadd.f32 %v4010, %v3329
        %v4031 = vadd.f32 %v4011, %v3330
        %v4032 = vmax.f32 %v4022, 0.0
        %v4033 = vmax.f32 %v4023, 0.0
        %v4034 = vmax.f32 %v4024, 0.0
        %v4035 = vmax.f32 %v4025, 0.0
        %v4036 = vmax.f32 %v4026, 0.0
        %v4037 = vmax.f32 %v4027, 0.0
        %v4038 = vmax.f32 %v4028, 0.0
        %v4039 = vmax.f32 %v4029, 0.0
        %v4040 = vmax.f32 %v4030, 0.0
        %v4041 = vmax.f32 %v4031, 0.0
        %vm4042 = vcmp.ge.s32.totalorder %v1201, 16
        %s4043 = scalar_lea.vmem %s7, 320
        %v4044 = vld [vmem:[%s4043] sm:$0xf]
        %v4045 = vld [vmem:[%s4043 + $0x4] sm:$0xf]
        %v4046 = vld [vmem:[%s4043 + $0x8] sm:$0xf]
        %v4047 = vld [vmem:[%s4043 + $0xc] sm:$0xf]
        %v4048 = vld [vmem:[%s4043 + $0x10] sm:$0xf]
        %v4049 = vld [vmem:[%s4043 + $0x14] sm:$0xf]
        %v4050 = vld [vmem:[%s4043 + $0x18] sm:$0xf]
        %v4051 = vld [vmem:[%s4043 + $0x1c] sm:$0xf]
        %v4052 = vld [vmem:[%s4043 + $0x20] sm:$0xf]
        %v4053 = vld [vmem:[%s4043 + $0x24] sm:$0xf]
        %v4054 = vld [vmem:[%s4043 + $0x28] sm:$0xf]
        %v4055 = vld [vmem:[%s4043 + $0x2c] sm:$0xf]
        %v4056 = vld [vmem:[%s4043 + $0x30] sm:$0xf]
        %v4057 = vld [vmem:[%s4043 + $0x34] sm:$0xf]
        %v4058 = vld [vmem:[%s4043 + $0x38] sm:$0xf]
        %v4059 = vld [vmem:[%s4043 + $0x3c] sm:$0xf]
        %v4060 = vld [vmem:[%s4043 + $0x40] sm:$0xf]
        %v4061 = vld [vmem:[%s4043 + $0x44] sm:$0xf]
        %v4062 = vld [vmem:[%s4043 + $0x48] sm:$0xf]
        %v4063 = vld [vmem:[%s4043 + $0x4c] sm:$0xf]
        %v4064 = vpack.c.bf16 %v4033, %v4032
        %v4065 = vpack.c.bf16 %v4035, %v4034
        %v4066 = vpack.c.bf16 %v4037, %v4036
        %v4067 = vpack.c.bf16 %v4039, %v4038
        %v4068 = vpack.c.bf16 %v4041, %v4040
        %v4089 = vunpack.c.l.b16 %v4044
        %v4090 = vunpack.c.l.b16 %v4045
        %v4091 = vunpack.c.l.b16 %v4046
        %v4092 = vunpack.c.l.b16 %v4047
        %v4093 = vunpack.c.l.b16 %v4048
        %v4094 = vunpack.c.l.b16 %v4049
        %v4095 = vunpack.c.l.b16 %v4050
        %v4096 = vunpack.c.l.b16 %v4051
        %v4097 = vunpack.c.l.b16 %v4052
        %v4098 = vunpack.c.l.b16 %v4053
        %v4099 = vunpack.c.l.b16 %v4054
        %v4100 = vunpack.c.l.b16 %v4055
        %v4101 = vunpack.c.l.b16 %v4056
        %v4102 = vunpack.c.l.b16 %v4057
        %v4103 = vunpack.c.l.b16 %v4058
        %v4104 = vunpack.c.l.b16 %v4059
        %v4105 = vunpack.c.l.b16 %v4060
        %v4106 = vunpack.c.l.b16 %v4061
        %v4107 = vunpack.c.l.b16 %v4062
        %v4108 = vunpack.c.l.b16 %v4063
        %v4109 = vpack.c.b16 %v4090, %v4089
        %v4110 = vpack.c.b16 %v4092, %v4091
        %v4111 = vpack.c.b16 %v4094, %v4093
        %v4112 = vpack.c.b16 %v4096, %v4095
        %v4113 = vpack.c.b16 %v4098, %v4097
        %v4114 = vpack.c.b16 %v4100, %v4099
        %v4115 = vpack.c.b16 %v4102, %v4101
        %v4116 = vpack.c.b16 %v4104, %v4103
        %v4117 = vpack.c.b16 %v4106, %v4105
        %v4118 = vpack.c.b16 %v4108, %v4107
        %v4120 = vsel %vm821, %v4109, 0
        %v4123 = vsel %vm821, %v4110, 0
        %v4126 = vsel %vm821, %v4111, 0
        %v4129 = vsel %vm821, %v4112, 0
        %v4132 = vsel %vm821, %v4113, 0
        %v4135 = vsel %vm821, %v4114, 0
        %v4138 = vsel %vm821, %v4115, 0
        %v4141 = vsel %vm821, %v4116, 0
        %v4144 = vsel %vm821, %v4117, 0
        %v4147 = vsel %vm821, %v4118, 0
        %4149 = vmatprep.subr.bf16.mxu0 0
        %4150 = vmatpush1.bf16.msra.mxu0 %v4064
        %4151 = vmatprep.subr.bf16.mxu0 0
        %4152 = vmatpush1.bf16.msra.mxu0 %v4065
        %4153 = vmatprep.subr.bf16.mxu0 0
        %4154 = vmatpush1.bf16.msra.mxu0 %v4066
        %4155 = vmatprep.subr.bf16.mxu0 0
        %4156 = vmatpush1.bf16.msra.mxu0 %v4067
        %4157 = vmatprep.subr.bf16.mxu0 0
        %4158 = vmatpush1.bf16.msra.mxu0 %v4068
        %4159 = vmatprep.subr.bf16.mxu0 0
        %4160 = vmatpush1.bf16.msra.mxu0 0
        %4161 = vmatprep.subr.bf16.mxu0 0
        %4162 = vmatpush1.bf16.msra.mxu0 0
        %4163 = vmatprep.subr.bf16.mxu0 0
        %4164 = vmatpush1.bf16.msra.mxu0 0
        %4165 = vmatprep.subr.bf16.mxu0 0
        %4166 = vmatpush1.bf16.msra.mxu0 0
        %4167 = vmatprep.subr.bf16.mxu0 0
        %4168 = vmatpush1.bf16.msra.mxu0 0
        %4169 = vmatprep.subr.bf16.mxu0 0
        %4170 = vmatpush1.bf16.msra.mxu0 0
        %4171 = vmatprep.subr.bf16.mxu0 0
        %4172 = vmatpush1.bf16.msra.mxu0 0
        %4173 = vmatprep.subr.bf16.mxu0 0
        %4174 = vmatpush1.bf16.msra.mxu0 0
        %4175 = vmatprep.subr.bf16.mxu0 0
        %4176 = vmatpush1.bf16.msra.mxu0 0
        %4177 = vmatprep.subr.bf16.mxu0 0
        %4178 = vmatpush1.bf16.msra.mxu0 0
        %4179 = vmatprep.subr.bf16.mxu0 0
        %4180 = vmatpush1.bf16.msra.mxu0 0
        %4181 = vmatprep.mubr.bf16.mxu0 0
        %4182 = vmatmul.mubr.bf16.gmra.mrb[0].mxu0 %v4120
        %v4183 = vpop.f32.mrb[0].mxu0
        %v4184 = vadd.f32 0.0, %v4183
        %v4185 = vpop.f32.mrb[0].mxu0
        %v4186 = vpop.f32.mrb[0].mxu0
        %v4187 = vadd.f32 0.0, %v4186
        %v4188 = vpop.f32.mrb[0].mxu0
        %4189 = vmatprep.mubr.bf16.mxu0 0
        %4190 = vmatmul.mubr.bf16.gmra.mrb[0].mxu0 %v4123
        %v4191 = vpop.f32.mrb[0].mxu0
        %v4192 = vadd.f32 0.0, %v4191
        %v4193 = vpop.f32.mrb[0].mxu0
        %v4194 = vpop.f32.mrb[0].mxu0
        %v4195 = vadd.f32 0.0, %v4194
        %v4196 = vpop.f32.mrb[0].mxu0
        %4197 = vmatprep.mubr.bf16.mxu0 0
        %4198 = vmatmul.mubr.bf16.gmra.mrb[0].mxu0 %v4126
        %v4199 = vpop.f32.mrb[0].mxu0
        %v4200 = vadd.f32 0.0, %v4199
        %v4201 = vpop.f32.mrb[0].mxu0
        %v4202 = vpop.f32.mrb[0].mxu0
        %v4203 = vadd.f32 0.0, %v4202
        %v4204 = vpop.f32.mrb[0].mxu0
        %4205 = vmatprep.mubr.bf16.mxu0 0
        %4206 = vmatmul.mubr.bf16.gmra.mrb[0].mxu0 %v4129
        %v4207 = vpop.f32.mrb[0].mxu0
        %v4208 = vadd.f32 0.0, %v4207
        %v4209 = vpop.f32.mrb[0].mxu0
        %v4210 = vpop.f32.mrb[0].mxu0
        %v4211 = vadd.f32 0.0, %v4210
        %v4212 = vpop.f32.mrb[0].mxu0
        %4213 = vmatprep.mubr.bf16.mxu0 0
        %4214 = vmatmul.mubr.bf16.gmra.mrb[0].mxu0 %v4132
        %v4215 = vpop.f32.mrb[0].mxu0
        %v4216 = vadd.f32 0.0, %v4215
        %v4217 = vpop.f32.mrb[0].mxu0
        %v4218 = vpop.f32.mrb[0].mxu0
        %v4219 = vadd.f32 0.0, %v4218
        %v4220 = vpop.f32.mrb[0].mxu0
        %4221 = vmatprep.mubr.bf16.mxu0 0
        %4222 = vmatmul.mubr.bf16.gmra.mrb[0].mxu0 %v4135
        %v4223 = vpop.f32.mrb[0].mxu0
        %v4224 = vadd.f32 0.0, %v4223
        %v4225 = vpop.f32.mrb[0].mxu0
        %v4226 = vpop.f32.mrb[0].mxu0
        %v4227 = vadd.f32 0.0, %v4226
        %v4228 = vpop.f32.mrb[0].mxu0
        %4229 = vmatprep.mubr.bf16.mxu0 0
        %4230 = vmatmul.mubr.bf16.gmra.mrb[0].mxu0 %v4138
        %v4231 = vpop.f32.mrb[0].mxu0
        %v4232 = vadd.f32 0.0, %v4231
        %v4233 = vpop.f32.mrb[0].mxu0
        %v4234 = vpop.f32.mrb[0].mxu0
        %v4235 = vadd.f32 0.0, %v4234
        %v4236 = vpop.f32.mrb[0].mxu0
        %4237 = vmatprep.mubr.bf16.mxu0 0
        %4238 = vmatmul.mubr.bf16.gmra.mrb[0].mxu0 %v4141
        %v4239 = vpop.f32.mrb[0].mxu0
        %v4240 = vadd.f32 0.0, %v4239
        %v4241 = vpop.f32.mrb[0].mxu0
        %v4242 = vpop.f32.mrb[0].mxu0
        %v4243 = vadd.f32 0.0, %v4242
        %v4244 = vpop.f32.mrb[0].mxu0
        %4245 = vmatprep.mubr.bf16.mxu0 0
        %4246 = vmatmul.mubr.bf16.gmra.mrb[0].mxu0 %v4144
        %v4247 = vpop.f32.mrb[0].mxu0
        %v4248 = vadd.f32 0.0, %v4247
        %v4249 = vpop.f32.mrb[0].mxu0
        %v4250 = vpop.f32.mrb[0].mxu0
        %v4251 = vadd.f32 0.0, %v4250
        %v4252 = vpop.f32.mrb[0].mxu0
        %4253 = vmatprep.mubr.bf16.mxu0 0
        %4254 = vmatmul.mubr.bf16.gmra.mrb[0].mxu0 %v4147
        %v4255 = vpop.f32.mrb[0].mxu0
        %v4256 = vadd.f32 0.0, %v4255
        %v4257 = vpop.f32.mrb[0].mxu0
        %v4258 = vpop.f32.mrb[0].mxu0
        %v4259 = vadd.f32 0.0, %v4258
        %v4260 = vpop.f32.mrb[0].mxu0
        %4261 = vdwg.mxu0
        %4262 = vrot.lane.b32.xlu0 %v4184, 16
        %v4263 = vpop.permute.xlu0 %4262
        %4264 = vrot.lane.b32.xlu0 %v4187, 16
        %v4265 = vpop.permute.xlu0 %4264
        %4266 = vrot.lane.b32.xlu0 %v4192, 16
        %v4267 = vpop.permute.xlu0 %4266
        %4268 = vrot.lane.b32.xlu0 %v4195, 16
        %v4269 = vpop.permute.xlu0 %4268
        %4270 = vrot.lane.b32.xlu0 %v4200, 16
        %v4271 = vpop.permute.xlu0 %4270
        %4272 = vrot.lane.b32.xlu0 %v4203, 16
        %v4273 = vpop.permute.xlu0 %4272
        %4274 = vrot.lane.b32.xlu0 %v4208, 16
        %v4275 = vpop.permute.xlu0 %4274
        %4276 = vrot.lane.b32.xlu0 %v4211, 16
        %v4277 = vpop.permute.xlu0 %4276
        %4278 = vrot.lane.b32.xlu0 %v4216, 16
        %v4279 = vpop.permute.xlu0 %4278
        %4280 = vrot.lane.b32.xlu0 %v4219, 16
        %v4281 = vpop.permute.xlu0 %4280
        %v4282 = vsel %vm4042, %v4263, 0.0
        %v4283 = vsel %vm4042, %v4265, 0.0
        %v4284 = vsel %vm4042, %v4267, 0.0
        %v4285 = vsel %vm4042, %v4269, 0.0
        %v4286 = vsel %vm4042, %v4271, 0.0
        %v4287 = vsel %vm4042, %v4273, 0.0
        %v4288 = vsel %vm4042, %v4275, 0.0
        %v4289 = vsel %vm4042, %v4277, 0.0
        %v4290 = vsel %vm4042, %v4279, 0.0
        %v4291 = vsel %vm4042, %v4281, 0.0
        %v4292 = vadd.f32 %v4282, %v4224
        %v4293 = vadd.f32 %v4283, %v4227
        %v4294 = vadd.f32 %v4284, %v4232
        %v4295 = vadd.f32 %v4285, %v4235
        %v4296 = vadd.f32 %v4286, %v4240
        %v4297 = vadd.f32 %v4287, %v4243
        %v4298 = vadd.f32 %v4288, %v4248
        %v4299 = vadd.f32 %v4289, %v4251
        %v4300 = vadd.f32 %v4290, %v4256
        %v4301 = vadd.f32 %v4291, %v4259
        %s4302 = scalar_lea.vmem %s8, 320
        %v4303 = vld [vmem:[%s4302] sm:$0xff]
        %v4304 = vld [vmem:[%s4302 + $0x8] sm:$0xff]
        %v4305 = vld [vmem:[%s4302 + $0x10] sm:$0xff]
        %v4306 = vld [vmem:[%s4302 + $0x18] sm:$0xff]
        %v4307 = vld [vmem:[%s4302 + $0x20] sm:$0xff]
        %v4308 = vld [vmem:[%s4302 + $0x28] sm:$0xff]
        %v4309 = vld [vmem:[%s4302 + $0x30] sm:$0xff]
        %v4310 = vld [vmem:[%s4302 + $0x38] sm:$0xff]
        %v4311 = vld [vmem:[%s4302 + $0x40] sm:$0xff]
        %v4312 = vld [vmem:[%s4302 + $0x48] sm:$0xff]
        %4314 = vset.pattern.permute.xlu0 0
        %4315 = vperm.xlu0 %4314, %v4303
        %v4316 = vpop.permute.xlu0 %4315
        %4319 = vset.pattern.permute.xlu0 0
        %4320 = vperm.xlu0 %4319, %v4304
        %v4321 = vpop.permute.xlu0 %4320
        %4324 = vset.pattern.permute.xlu0 0
        %4325 = vperm.xlu0 %4324, %v4305
        %v4326 = vpop.permute.xlu0 %4325
        %4329 = vset.pattern.permute.xlu0 0
        %4330 = vperm.xlu0 %4329, %v4306
        %v4331 = vpop.permute.xlu0 %4330
        %4334 = vset.pattern.permute.xlu0 0
        %4335 = vperm.xlu0 %4334, %v4307
        %v4336 = vpop.permute.xlu0 %4335
        %4339 = vset.pattern.permute.xlu0 0
        %4340 = vperm.xlu0 %4339, %v4308
        %v4341 = vpop.permute.xlu0 %4340
        %4344 = vset.pattern.permute.xlu0 0
        %4345 = vperm.xlu0 %4344, %v4309
        %v4346 = vpop.permute.xlu0 %4345
        %4349 = vset.pattern.permute.xlu0 0
        %4350 = vperm.xlu0 %4349, %v4310
        %v4351 = vpop.permute.xlu0 %4350
        %4354 = vset.pattern.permute.xlu0 0
        %4355 = vperm.xlu0 %4354, %v4311
        %v4356 = vpop.permute.xlu0 %4355
        %4359 = vset.pattern.permute.xlu0 0
        %4360 = vperm.xlu0 %4359, %v4312
        %v4361 = vpop.permute.xlu0 %4360
        %v4363 = vadd.f32 %v4292, %v4316
        %v4364 = vadd.f32 %v4293, %v4321
        %v4365 = vadd.f32 %v4294, %v4326
        %v4366 = vadd.f32 %v4295, %v4331
        %v4367 = vadd.f32 %v4296, %v4336
        %v4368 = vadd.f32 %v4297, %v4341
        %v4369 = vadd.f32 %v4298, %v4346
        %v4370 = vadd.f32 %v4299, %v4351
        %v4371 = vadd.f32 %v4300, %v4356
        %v4372 = vadd.f32 %v4301, %v4361
        %v4373 = vmax.f32 %v4363, 0.0
        %v4374 = vmax.f32 %v4364, 0.0
        %v4375 = vmax.f32 %v4365, 0.0
        %v4376 = vmax.f32 %v4366, 0.0
        %v4377 = vmax.f32 %v4367, 0.0
        %v4378 = vmax.f32 %v4368, 0.0
        %v4379 = vmax.f32 %v4369, 0.0
        %v4380 = vmax.f32 %v4370, 0.0
        %v4381 = vmax.f32 %v4371, 0.0
        %v4382 = vmax.f32 %v4372, 0.0
        %s4383 = scalar_lea.vmem %s9, 320
        %v4384 = vld [vmem:[%s4383] sm:$0xf]
        %v4385 = vld [vmem:[%s4383 + $0x4] sm:$0xf]
        %v4386 = vld [vmem:[%s4383 + $0x8] sm:$0xf]
        %v4387 = vld [vmem:[%s4383 + $0xc] sm:$0xf]
        %v4388 = vld [vmem:[%s4383 + $0x10] sm:$0xf]
        %v4389 = vld [vmem:[%s4383 + $0x14] sm:$0xf]
        %v4390 = vld [vmem:[%s4383 + $0x18] sm:$0xf]
        %v4391 = vld [vmem:[%s4383 + $0x1c] sm:$0xf]
        %v4392 = vld [vmem:[%s4383 + $0x20] sm:$0xf]
        %v4393 = vld [vmem:[%s4383 + $0x24] sm:$0xf]
        %v4394 = vld [vmem:[%s4383 + $0x28] sm:$0xf]
        %v4395 = vld [vmem:[%s4383 + $0x2c] sm:$0xf]
        %v4396 = vld [vmem:[%s4383 + $0x30] sm:$0xf]
        %v4397 = vld [vmem:[%s4383 + $0x34] sm:$0xf]
        %v4398 = vld [vmem:[%s4383 + $0x38] sm:$0xf]
        %v4399 = vld [vmem:[%s4383 + $0x3c] sm:$0xf]
        %v4400 = vld [vmem:[%s4383 + $0x40] sm:$0xf]
        %v4401 = vld [vmem:[%s4383 + $0x44] sm:$0xf]
        %v4402 = vld [vmem:[%s4383 + $0x48] sm:$0xf]
        %v4403 = vld [vmem:[%s4383 + $0x4c] sm:$0xf]
        %v4404 = vpack.c.bf16 %v4374, %v4373
        %v4405 = vpack.c.bf16 %v4376, %v4375
        %v4406 = vpack.c.bf16 %v4378, %v4377
        %v4407 = vpack.c.bf16 %v4380, %v4379
        %v4408 = vpack.c.bf16 %v4382, %v4381
        %v4429 = vunpack.c.l.b16 %v4384
        %v4430 = vunpack.c.l.b16 %v4385
        %v4431 = vunpack.c.l.b16 %v4386
        %v4432 = vunpack.c.l.b16 %v4387
        %v4433 = vunpack.c.l.b16 %v4388
        %v4434 = vunpack.c.l.b16 %v4389
        %v4435 = vunpack.c.l.b16 %v4390
        %v4436 = vunpack.c.l.b16 %v4391
        %v4437 = vunpack.c.l.b16 %v4392
        %v4438 = vunpack.c.l.b16 %v4393
        %v4439 = vunpack.c.l.b16 %v4394
        %v4440 = vunpack.c.l.b16 %v4395
        %v4441 = vunpack.c.l.b16 %v4396
        %v4442 = vunpack.c.l.b16 %v4397
        %v4443 = vunpack.c.l.b16 %v4398
        %v4444 = vunpack.c.l.b16 %v4399
        %v4445 = vunpack.c.l.b16 %v4400
        %v4446 = vunpack.c.l.b16 %v4401
        %v4447 = vunpack.c.l.b16 %v4402
        %v4448 = vunpack.c.l.b16 %v4403
        %v4449 = vpack.c.b16 %v4430, %v4429
        %v4450 = vpack.c.b16 %v4432, %v4431
        %v4451 = vpack.c.b16 %v4434, %v4433
        %v4452 = vpack.c.b16 %v4436, %v4435
        %v4453 = vpack.c.b16 %v4438, %v4437
        %v4454 = vpack.c.b16 %v4440, %v4439
        %v4455 = vpack.c.b16 %v4442, %v4441
        %v4456 = vpack.c.b16 %v4444, %v4443
        %v4457 = vpack.c.b16 %v4446, %v4445
        %v4458 = vpack.c.b16 %v4448, %v4447
        %v4460 = vsel %vm821, %v4449, 0
        %v4463 = vsel %vm821, %v4450, 0
        %v4466 = vsel %vm821, %v4451, 0
        %v4469 = vsel %vm821, %v4452, 0
        %v4472 = vsel %vm821, %v4453, 0
        %v4475 = vsel %vm821, %v4454, 0
        %v4478 = vsel %vm821, %v4455, 0
        %v4481 = vsel %vm821, %v4456, 0
        %v4484 = vsel %vm821, %v4457, 0
        %v4487 = vsel %vm821, %v4458, 0
        %4489 = vmatprep.subr.bf16.mxu0 0
        %4490 = vmatpush1.bf16.msra.mxu0 %v4404
        %4491 = vmatprep.subr.bf16.mxu0 0
        %4492 = vmatpush1.bf16.msra.mxu0 %v4405
        %4493 = vmatprep.subr.bf16.mxu0 0
        %4494 = vmatpush1.bf16.msra.mxu0 %v4406
        %4495 = vmatprep.subr.bf16.mxu0 0
        %4496 = vmatpush1.bf16.msra.mxu0 %v4407
        %4497 = vmatprep.subr.bf16.mxu0 0
        %4498 = vmatpush1.bf16.msra.mxu0 %v4408
        %4499 = vmatprep.subr.bf16.mxu0 0
        %4500 = vmatpush1.bf16.msra.mxu0 0
        %4501 = vmatprep.subr.bf16.mxu0 0
        %4502 = vmatpush1.bf16.msra.mxu0 0
        %4503 = vmatprep.subr.bf16.mxu0 0
        %4504 = vmatpush1.bf16.msra.mxu0 0
        %4505 = vmatprep.subr.bf16.mxu0 0
        %4506 = vmatpush1.bf16.msra.mxu0 0
        %4507 = vmatprep.subr.bf16.mxu0 0
        %4508 = vmatpush1.bf16.msra.mxu0 0
        %4509 = vmatprep.subr.bf16.mxu0 0
        %4510 = vmatpush1.bf16.msra.mxu0 0
        %4511 = vmatprep.subr.bf16.mxu0 0
        %4512 = vmatpush1.bf16.msra.mxu0 0
        %4513 = vmatprep.subr.bf16.mxu0 0
        %4514 = vmatpush1.bf16.msra.mxu0 0
        %4515 = vmatprep.subr.bf16.mxu0 0
        %4516 = vmatpush1.bf16.msra.mxu0 0
        %4517 = vmatprep.subr.bf16.mxu0 0
        %4518 = vmatpush1.bf16.msra.mxu0 0
        %4519 = vmatprep.subr.bf16.mxu0 0
        %4520 = vmatpush1.bf16.msra.mxu0 0
        %4521 = vmatprep.mubr.bf16.mxu0 0
        %4522 = vmatmul.mubr.bf16.gmra.mrb[0].mxu0 %v4460
        %v4523 = vpop.f32.mrb[0].mxu0
        %v4524 = vadd.f32 0.0, %v4523
        %v4525 = vpop.f32.mrb[0].mxu0
        %v4526 = vpop.f32.mrb[0].mxu0
        %v4527 = vadd.f32 0.0, %v4526
        %v4528 = vpop.f32.mrb[0].mxu0
        %4529 = vmatprep.mubr.bf16.mxu0 0
        %4530 = vmatmul.mubr.bf16.gmra.mrb[0].mxu0 %v4463
        %v4531 = vpop.f32.mrb[0].mxu0
        %v4532 = vadd.f32 0.0, %v4531
        %v4533 = vpop.f32.mrb[0].mxu0
        %v4534 = vpop.f32.mrb[0].mxu0
        %v4535 = vadd.f32 0.0, %v4534
        %v4536 = vpop.f32.mrb[0].mxu0
        %4537 = vmatprep.mubr.bf16.mxu0 0
        %4538 = vmatmul.mubr.bf16.gmra.mrb[0].mxu0 %v4466
        %v4539 = vpop.f32.mrb[0].mxu0
        %v4540 = vadd.f32 0.0, %v4539
        %v4541 = vpop.f32.mrb[0].mxu0
        %v4542 = vpop.f32.mrb[0].mxu0
        %v4543 = vadd.f32 0.0, %v4542
        %v4544 = vpop.f32.mrb[0].mxu0
        %4545 = vmatprep.mubr.bf16.mxu0 0
        %4546 = vmatmul.mubr.bf16.gmra.mrb[0].mxu0 %v4469
        %v4547 = vpop.f32.mrb[0].mxu0
        %v4548 = vadd.f32 0.0, %v4547
        %v4549 = vpop.f32.mrb[0].mxu0
        %v4550 = vpop.f32.mrb[0].mxu0
        %v4551 = vadd.f32 0.0, %v4550
        %v4552 = vpop.f32.mrb[0].mxu0
        %4553 = vmatprep.mubr.bf16.mxu0 0
        %4554 = vmatmul.mubr.bf16.gmra.mrb[0].mxu0 %v4472
        %v4555 = vpop.f32.mrb[0].mxu0
        %v4556 = vadd.f32 0.0, %v4555
        %v4557 = vpop.f32.mrb[0].mxu0
        %v4558 = vpop.f32.mrb[0].mxu0
        %v4559 = vadd.f32 0.0, %v4558
        %v4560 = vpop.f32.mrb[0].mxu0
        %4561 = vmatprep.mubr.bf16.mxu0 0
        %4562 = vmatmul.mubr.bf16.gmra.mrb[0].mxu0 %v4475
        %v4563 = vpop.f32.mrb[0].mxu0
        %v4564 = vadd.f32 0.0, %v4563
        %v4565 = vpop.f32.mrb[0].mxu0
        %v4566 = vpop.f32.mrb[0].mxu0
        %v4567 = vadd.f32 0.0, %v4566
        %v4568 = vpop.f32.mrb[0].mxu0
        %4569 = vmatprep.mubr.bf16.mxu0 0
        %4570 = vmatmul.mubr.bf16.gmra.mrb[0].mxu0 %v4478
        %v4571 = vpop.f32.mrb[0].mxu0
        %v4572 = vadd.f32 0.0, %v4571
        %v4573 = vpop.f32.mrb[0].mxu0
        %v4574 = vpop.f32.mrb[0].mxu0
        %v4575 = vadd.f32 0.0, %v4574
        %v4576 = vpop.f32.mrb[0].mxu0
        %4577 = vmatprep.mubr.bf16.mxu0 0
        %4578 = vmatmul.mubr.bf16.gmra.mrb[0].mxu0 %v4481
        %v4579 = vpop.f32.mrb[0].mxu0
        %v4580 = vadd.f32 0.0, %v4579
        %v4581 = vpop.f32.mrb[0].mxu0
        %v4582 = vpop.f32.mrb[0].mxu0
        %v4583 = vadd.f32 0.0, %v4582
        %v4584 = vpop.f32.mrb[0].mxu0
        %4585 = vmatprep.mubr.bf16.mxu0 0
        %4586 = vmatmul.mubr.bf16.gmra.mrb[0].mxu0 %v4484
        %v4587 = vpop.f32.mrb[0].mxu0
        %v4588 = vadd.f32 0.0, %v4587
        %v4589 = vpop.f32.mrb[0].mxu0
        %v4590 = vpop.f32.mrb[0].mxu0
        %v4591 = vadd.f32 0.0, %v4590
        %v4592 = vpop.f32.mrb[0].mxu0
        %4593 = vmatprep.mubr.bf16.mxu0 0
        %4594 = vmatmul.mubr.bf16.gmra.mrb[0].mxu0 %v4487
        %v4595 = vpop.f32.mrb[0].mxu0
        %v4596 = vadd.f32 0.0, %v4595
        %v4597 = vpop.f32.mrb[0].mxu0
        %v4598 = vpop.f32.mrb[0].mxu0
        %v4599 = vadd.f32 0.0, %v4598
        %v4600 = vpop.f32.mrb[0].mxu0
        %4601 = vdwg.mxu0
        %4602 = vrot.lane.b32.xlu0 %v4524, 16
        %v4603 = vpop.permute.xlu0 %4602
        %4604 = vrot.lane.b32.xlu0 %v4527, 16
        %v4605 = vpop.permute.xlu0 %4604
        %4606 = vrot.lane.b32.xlu0 %v4532, 16
        %v4607 = vpop.permute.xlu0 %4606
        %4608 = vrot.lane.b32.xlu0 %v4535, 16
        %v4609 = vpop.permute.xlu0 %4608
        %4610 = vrot.lane.b32.xlu0 %v4540, 16
        %v4611 = vpop.permute.xlu0 %4610
        %4612 = vrot.lane.b32.xlu0 %v4543, 16
        %v4613 = vpop.permute.xlu0 %4612
        %4614 = vrot.lane.b32.xlu0 %v4548, 16
        %v4615 = vpop.permute.xlu0 %4614
        %4616 = vrot.lane.b32.xlu0 %v4551, 16
        %v4617 = vpop.permute.xlu0 %4616
        %4618 = vrot.lane.b32.xlu0 %v4556, 16
        %v4619 = vpop.permute.xlu0 %4618
        %4620 = vrot.lane.b32.xlu0 %v4559, 16
        %v4621 = vpop.permute.xlu0 %4620
        %v4622 = vsel %vm4042, %v4603, 0.0
        %v4623 = vsel %vm4042, %v4605, 0.0
        %v4624 = vsel %vm4042, %v4607, 0.0
        %v4625 = vsel %vm4042, %v4609, 0.0
        %v4626 = vsel %vm4042, %v4611, 0.0
        %v4627 = vsel %vm4042, %v4613, 0.0
        %v4628 = vsel %vm4042, %v4615, 0.0
        %v4629 = vsel %vm4042, %v4617, 0.0
        %v4630 = vsel %vm4042, %v4619, 0.0
        %v4631 = vsel %vm4042, %v4621, 0.0
        %v4632 = vadd.f32 %v4622, %v4564
        %v4633 = vadd.f32 %v4623, %v4567
        %v4634 = vadd.f32 %v4624, %v4572
        %v4635 = vadd.f32 %v4625, %v4575
        %v4636 = vadd.f32 %v4626, %v4580
        %v4637 = vadd.f32 %v4627, %v4583
        %v4638 = vadd.f32 %v4628, %v4588
        %v4639 = vadd.f32 %v4629, %v4591
        %v4640 = vadd.f32 %v4630, %v4596
        %v4641 = vadd.f32 %v4631, %v4599
        %s4642 = scalar_lea.vmem %s10, 320
        %v4643 = vld [vmem:[%s4642] sm:$0xff]
        %v4644 = vld [vmem:[%s4642 + $0x8] sm:$0xff]
        %v4645 = vld [vmem:[%s4642 + $0x10] sm:$0xff]
        %v4646 = vld [vmem:[%s4642 + $0x18] sm:$0xff]
        %v4647 = vld [vmem:[%s4642 + $0x20] sm:$0xff]
        %v4648 = vld [vmem:[%s4642 + $0x28] sm:$0xff]
        %v4649 = vld [vmem:[%s4642 + $0x30] sm:$0xff]
        %v4650 = vld [vmem:[%s4642 + $0x38] sm:$0xff]
        %v4651 = vld [vmem:[%s4642 + $0x40] sm:$0xff]
        %v4652 = vld [vmem:[%s4642 + $0x48] sm:$0xff]
        %4654 = vset.pattern.permute.xlu0 0
        %4655 = vperm.xlu0 %4654, %v4643
        %v4656 = vpop.permute.xlu0 %4655
        %4659 = vset.pattern.permute.xlu0 0
        %4660 = vperm.xlu0 %4659, %v4644
        %v4661 = vpop.permute.xlu0 %4660
        %4664 = vset.pattern.permute.xlu0 0
        %4665 = vperm.xlu0 %4664, %v4645
        %v4666 = vpop.permute.xlu0 %4665
        %4669 = vset.pattern.permute.xlu0 0
        %4670 = vperm.xlu0 %4669, %v4646
        %v4671 = vpop.permute.xlu0 %4670
        %4674 = vset.pattern.permute.xlu0 0
        %4675 = vperm.xlu0 %4674, %v4647
        %v4676 = vpop.permute.xlu0 %4675
        %4679 = vset.pattern.permute.xlu0 0
        %4680 = vperm.xlu0 %4679, %v4648
        %v4681 = vpop.permute.xlu0 %4680
        %4684 = vset.pattern.permute.xlu0 0
        %4685 = vperm.xlu0 %4684, %v4649
        %v4686 = vpop.permute.xlu0 %4685
        %4689 = vset.pattern.permute.xlu0 0
        %4690 = vperm.xlu0 %4689, %v4650
        %v4691 = vpop.permute.xlu0 %4690
        %4694 = vset.pattern.permute.xlu0 0
        %4695 = vperm.xlu0 %4694, %v4651
        %v4696 = vpop.permute.xlu0 %4695
        %4699 = vset.pattern.permute.xlu0 0
        %4700 = vperm.xlu0 %4699, %v4652
        %v4701 = vpop.permute.xlu0 %4700
        %v4703 = vadd.f32 %v4632, %v4656
        %v4704 = vadd.f32 %v4633, %v4661
        %v4705 = vadd.f32 %v4634, %v4666
        %v4706 = vadd.f32 %v4635, %v4671
        %v4707 = vadd.f32 %v4636, %v4676
        %v4708 = vadd.f32 %v4637, %v4681
        %v4709 = vadd.f32 %v4638, %v4686
        %v4710 = vadd.f32 %v4639, %v4691
        %v4711 = vadd.f32 %v4640, %v4696
        %v4712 = vadd.f32 %v4641, %v4701
        %v4713 = vmax.f32 %v4703, 0.0
        %v4714 = vmax.f32 %v4704, 0.0
        %v4715 = vmax.f32 %v4705, 0.0
        %v4716 = vmax.f32 %v4706, 0.0
        %v4717 = vmax.f32 %v4707, 0.0
        %v4718 = vmax.f32 %v4708, 0.0
        %v4719 = vmax.f32 %v4709, 0.0
        %v4720 = vmax.f32 %v4710, 0.0
        %v4721 = vmax.f32 %v4711, 0.0
        %v4722 = vmax.f32 %v4712, 0.0
        %v4723 = vadd.f32 %v4012, %v4713
        %v4724 = vadd.f32 %v4013, %v4714
        %v4725 = vadd.f32 %v4014, %v4715
        %v4726 = vadd.f32 %v4015, %v4716
        %v4727 = vadd.f32 %v4016, %v4717
        %v4728 = vadd.f32 %v4017, %v4718
        %v4729 = vadd.f32 %v4018, %v4719
        %v4730 = vadd.f32 %v4019, %v4720
        %v4731 = vadd.f32 %v4020, %v4721
        %v4732 = vadd.f32 %v4021, %v4722
        %v4733 = vadd.f32 %v4713, %v4032
        %v4734 = vadd.f32 %v4714, %v4033
        %v4735 = vadd.f32 %v4715, %v4034
        %v4736 = vadd.f32 %v4716, %v4035
        %v4737 = vadd.f32 %v4717, %v4036
        %v4738 = vadd.f32 %v4718, %v4037
        %v4739 = vadd.f32 %v4719, %v4038
        %v4740 = vadd.f32 %v4720, %v4039
        %v4741 = vadd.f32 %v4721, %v4040
        %v4742 = vadd.f32 %v4722, %v4041
        %v4743 = vmax.f32 %v4733, 0.0
        %v4744 = vmax.f32 %v4734, 0.0
        %v4745 = vmax.f32 %v4735, 0.0
        %v4746 = vmax.f32 %v4736, 0.0
        %v4747 = vmax.f32 %v4737, 0.0
        %v4748 = vmax.f32 %v4738, 0.0
        %v4749 = vmax.f32 %v4739, 0.0
        %v4750 = vmax.f32 %v4740, 0.0
        %v4751 = vmax.f32 %v4741, 0.0
        %v4752 = vmax.f32 %v4742, 0.0
        %vm4753 = vcmp.ge.s32.totalorder %v1201, 32
        %s4754 = scalar_lea.vmem %s7, 400
        %v4755 = vld [vmem:[%s4754] sm:$0xf]
        %v4756 = vld [vmem:[%s4754 + $0x4] sm:$0xf]
        %v4757 = vld [vmem:[%s4754 + $0x8] sm:$0xf]
        %v4758 = vld [vmem:[%s4754 + $0xc] sm:$0xf]
        %v4759 = vld [vmem:[%s4754 + $0x10] sm:$0xf]
        %v4760 = vld [vmem:[%s4754 + $0x14] sm:$0xf]
        %v4761 = vld [vmem:[%s4754 + $0x18] sm:$0xf]
        %v4762 = vld [vmem:[%s4754 + $0x1c] sm:$0xf]
        %v4763 = vld [vmem:[%s4754 + $0x20] sm:$0xf]
        %v4764 = vld [vmem:[%s4754 + $0x24] sm:$0xf]
        %v4765 = vld [vmem:[%s4754 + $0x28] sm:$0xf]
        %v4766 = vld [vmem:[%s4754 + $0x2c] sm:$0xf]
        %v4767 = vld [vmem:[%s4754 + $0x30] sm:$0xf]
        %v4768 = vld [vmem:[%s4754 + $0x34] sm:$0xf]
        %v4769 = vld [vmem:[%s4754 + $0x38] sm:$0xf]
        %v4770 = vld [vmem:[%s4754 + $0x3c] sm:$0xf]
        %v4771 = vld [vmem:[%s4754 + $0x40] sm:$0xf]
        %v4772 = vld [vmem:[%s4754 + $0x44] sm:$0xf]
        %v4773 = vld [vmem:[%s4754 + $0x48] sm:$0xf]
        %v4774 = vld [vmem:[%s4754 + $0x4c] sm:$0xf]
        %v4775 = vpack.c.bf16 %v4744, %v4743
        %v4776 = vpack.c.bf16 %v4746, %v4745
        %v4777 = vpack.c.bf16 %v4748, %v4747
        %v4778 = vpack.c.bf16 %v4750, %v4749
        %v4779 = vpack.c.bf16 %v4752, %v4751
        %v4800 = vunpack.c.l.b16 %v4755
        %v4801 = vunpack.c.l.b16 %v4756
        %v4802 = vunpack.c.l.b16 %v4757
        %v4803 = vunpack.c.l.b16 %v4758
        %v4804 = vunpack.c.l.b16 %v4759
        %v4805 = vunpack.c.l.b16 %v4760
        %v4806 = vunpack.c.l.b16 %v4761
        %v4807 = vunpack.c.l.b16 %v4762
        %v4808 = vunpack.c.l.b16 %v4763
        %v4809 = vunpack.c.l.b16 %v4764
        %v4810 = vunpack.c.l.b16 %v4765
        %v4811 = vunpack.c.l.b16 %v4766
        %v4812 = vunpack.c.l.b16 %v4767
        %v4813 = vunpack.c.l.b16 %v4768
        %v4814 = vunpack.c.l.b16 %v4769
        %v4815 = vunpack.c.l.b16 %v4770
        %v4816 = vunpack.c.l.b16 %v4771
        %v4817 = vunpack.c.l.b16 %v4772
        %v4818 = vunpack.c.l.b16 %v4773
        %v4819 = vunpack.c.l.b16 %v4774
        %v4820 = vpack.c.b16 %v4801, %v4800
        %v4821 = vpack.c.b16 %v4803, %v4802
        %v4822 = vpack.c.b16 %v4805, %v4804
        %v4823 = vpack.c.b16 %v4807, %v4806
        %v4824 = vpack.c.b16 %v4809, %v4808
        %v4825 = vpack.c.b16 %v4811, %v4810
        %v4826 = vpack.c.b16 %v4813, %v4812
        %v4827 = vpack.c.b16 %v4815, %v4814
        %v4828 = vpack.c.b16 %v4817, %v4816
        %v4829 = vpack.c.b16 %v4819, %v4818
        %v4831 = vsel %vm821, %v4820, 0
        %v4834 = vsel %vm821, %v4821, 0
        %v4837 = vsel %vm821, %v4822, 0
        %v4840 = vsel %vm821, %v4823, 0
        %v4843 = vsel %vm821, %v4824, 0
        %v4846 = vsel %vm821, %v4825, 0
        %v4849 = vsel %vm821, %v4826, 0
        %v4852 = vsel %vm821, %v4827, 0
        %v4855 = vsel %vm821, %v4828, 0
        %v4858 = vsel %vm821, %v4829, 0
        %4860 = vmatprep.subr.bf16.mxu0 0
        %4861 = vmatpush1.bf16.msra.mxu0 %v4775
        %4862 = vmatprep.subr.bf16.mxu0 0
        %4863 = vmatpush1.bf16.msra.mxu0 %v4776
        %4864 = vmatprep.subr.bf16.mxu0 0
        %4865 = vmatpush1.bf16.msra.mxu0 %v4777
        %4866 = vmatprep.subr.bf16.mxu0 0
        %4867 = vmatpush1.bf16.msra.mxu0 %v4778
        %4868 = vmatprep.subr.bf16.mxu0 0
        %4869 = vmatpush1.bf16.msra.mxu0 %v4779
        %4870 = vmatprep.subr.bf16.mxu0 0
        %4871 = vmatpush1.bf16.msra.mxu0 0
        %4872 = vmatprep.subr.bf16.mxu0 0
        %4873 = vmatpush1.bf16.msra.mxu0 0
        %4874 = vmatprep.subr.bf16.mxu0 0
        %4875 = vmatpush1.bf16.msra.mxu0 0
        %4876 = vmatprep.subr.bf16.mxu0 0
        %4877 = vmatpush1.bf16.msra.mxu0 0
        %4878 = vmatprep.subr.bf16.mxu0 0
        %4879 = vmatpush1.bf16.msra.mxu0 0
        %4880 = vmatprep.subr.bf16.mxu0 0
        %4881 = vmatpush1.bf16.msra.mxu0 0
        %4882 = vmatprep.subr.bf16.mxu0 0
        %4883 = vmatpush1.bf16.msra.mxu0 0
        %4884 = vmatprep.subr.bf16.mxu0 0
        %4885 = vmatpush1.bf16.msra.mxu0 0
        %4886 = vmatprep.subr.bf16.mxu0 0
        %4887 = vmatpush1.bf16.msra.mxu0 0
        %4888 = vmatprep.subr.bf16.mxu0 0
        %4889 = vmatpush1.bf16.msra.mxu0 0
        %4890 = vmatprep.subr.bf16.mxu0 0
        %4891 = vmatpush1.bf16.msra.mxu0 0
        %4892 = vmatprep.mubr.bf16.mxu0 0
        %4893 = vmatmul.mubr.bf16.gmra.mrb[0].mxu0 %v4831
        %v4894 = vpop.f32.mrb[0].mxu0
        %v4895 = vadd.f32 0.0, %v4894
        %v4896 = vpop.f32.mrb[0].mxu0
        %v4897 = vpop.f32.mrb[0].mxu0
        %v4898 = vadd.f32 0.0, %v4897
        %v4899 = vpop.f32.mrb[0].mxu0
        %4900 = vmatprep.mubr.bf16.mxu0 0
        %4901 = vmatmul.mubr.bf16.gmra.mrb[0].mxu0 %v4834
        %v4902 = vpop.f32.mrb[0].mxu0
        %v4903 = vadd.f32 0.0, %v4902
        %v4904 = vpop.f32.mrb[0].mxu0
        %v4905 = vpop.f32.mrb[0].mxu0
        %v4906 = vadd.f32 0.0, %v4905
        %v4907 = vpop.f32.mrb[0].mxu0
        %4908 = vmatprep.mubr.bf16.mxu0 0
        %4909 = vmatmul.mubr.bf16.gmra.mrb[0].mxu0 %v4837
        %v4910 = vpop.f32.mrb[0].mxu0
        %v4911 = vadd.f32 0.0, %v4910
        %v4912 = vpop.f32.mrb[0].mxu0
        %v4913 = vpop.f32.mrb[0].mxu0
        %v4914 = vadd.f32 0.0, %v4913
        %v4915 = vpop.f32.mrb[0].mxu0
        %4916 = vmatprep.mubr.bf16.mxu0 0
        %4917 = vmatmul.mubr.bf16.gmra.mrb[0].mxu0 %v4840
        %v4918 = vpop.f32.mrb[0].mxu0
        %v4919 = vadd.f32 0.0, %v4918
        %v4920 = vpop.f32.mrb[0].mxu0
        %v4921 = vpop.f32.mrb[0].mxu0
        %v4922 = vadd.f32 0.0, %v4921
        %v4923 = vpop.f32.mrb[0].mxu0
        %4924 = vmatprep.mubr.bf16.mxu0 0
        %4925 = vmatmul.mubr.bf16.gmra.mrb[0].mxu0 %v4843
        %v4926 = vpop.f32.mrb[0].mxu0
        %v4927 = vadd.f32 0.0, %v4926
        %v4928 = vpop.f32.mrb[0].mxu0
        %v4929 = vpop.f32.mrb[0].mxu0
        %v4930 = vadd.f32 0.0, %v4929
        %v4931 = vpop.f32.mrb[0].mxu0
        %4932 = vmatprep.mubr.bf16.mxu0 0
        %4933 = vmatmul.mubr.bf16.gmra.mrb[0].mxu0 %v4846
        %v4934 = vpop.f32.mrb[0].mxu0
        %v4935 = vadd.f32 0.0, %v4934
        %v4936 = vpop.f32.mrb[0].mxu0
        %v4937 = vpop.f32.mrb[0].mxu0
        %v4938 = vadd.f32 0.0, %v4937
        %v4939 = vpop.f32.mrb[0].mxu0
        %4940 = vmatprep.mubr.bf16.mxu0 0
        %4941 = vmatmul.mubr.bf16.gmra.mrb[0].mxu0 %v4849
        %v4942 = vpop.f32.mrb[0].mxu0
        %v4943 = vadd.f32 0.0, %v4942
        %v4944 = vpop.f32.mrb[0].mxu0
        %v4945 = vpop.f32.mrb[0].mxu0
        %v4946 = vadd.f32 0.0, %v4945
        %v4947 = vpop.f32.mrb[0].mxu0
        %4948 = vmatprep.mubr.bf16.mxu0 0
        %4949 = vmatmul.mubr.bf16.gmra.mrb[0].mxu0 %v4852
        %v4950 = vpop.f32.mrb[0].mxu0
        %v4951 = vadd.f32 0.0, %v4950
        %v4952 = vpop.f32.mrb[0].mxu0
        %v4953 = vpop.f32.mrb[0].mxu0
        %v4954 = vadd.f32 0.0, %v4953
        %v4955 = vpop.f32.mrb[0].mxu0
        %4956 = vmatprep.mubr.bf16.mxu0 0
        %4957 = vmatmul.mubr.bf16.gmra.mrb[0].mxu0 %v4855
        %v4958 = vpop.f32.mrb[0].mxu0
        %v4959 = vadd.f32 0.0, %v4958
        %v4960 = vpop.f32.mrb[0].mxu0
        %v4961 = vpop.f32.mrb[0].mxu0
        %v4962 = vadd.f32 0.0, %v4961
        %v4963 = vpop.f32.mrb[0].mxu0
        %4964 = vmatprep.mubr.bf16.mxu0 0
        %4965 = vmatmul.mubr.bf16.gmra.mrb[0].mxu0 %v4858
        %v4966 = vpop.f32.mrb[0].mxu0
        %v4967 = vadd.f32 0.0, %v4966
        %v4968 = vpop.f32.mrb[0].mxu0
        %v4969 = vpop.f32.mrb[0].mxu0
        %v4970 = vadd.f32 0.0, %v4969
        %v4971 = vpop.f32.mrb[0].mxu0
        %4972 = vdwg.mxu0
        %4973 = vrot.lane.b32.xlu0 %v4895, 32
        %v4974 = vpop.permute.xlu0 %4973
        %4975 = vrot.lane.b32.xlu0 %v4898, 32
        %v4976 = vpop.permute.xlu0 %4975
        %4977 = vrot.lane.b32.xlu0 %v4903, 32
        %v4978 = vpop.permute.xlu0 %4977
        %4979 = vrot.lane.b32.xlu0 %v4906, 32
        %v4980 = vpop.permute.xlu0 %4979
        %4981 = vrot.lane.b32.xlu0 %v4911, 32
        %v4982 = vpop.permute.xlu0 %4981
        %4983 = vrot.lane.b32.xlu0 %v4914, 32
        %v4984 = vpop.permute.xlu0 %4983
        %4985 = vrot.lane.b32.xlu0 %v4919, 32
        %v4986 = vpop.permute.xlu0 %4985
        %4987 = vrot.lane.b32.xlu0 %v4922, 32
        %v4988 = vpop.permute.xlu0 %4987
        %4989 = vrot.lane.b32.xlu0 %v4927, 32
        %v4990 = vpop.permute.xlu0 %4989
        %4991 = vrot.lane.b32.xlu0 %v4930, 32
        %v4992 = vpop.permute.xlu0 %4991
        %v4993 = vsel %vm4753, %v4974, 0.0
        %v4994 = vsel %vm4753, %v4976, 0.0
        %v4995 = vsel %vm4753, %v4978, 0.0
        %v4996 = vsel %vm4753, %v4980, 0.0
        %v4997 = vsel %vm4753, %v4982, 0.0
        %v4998 = vsel %vm4753, %v4984, 0.0
        %v4999 = vsel %vm4753, %v4986, 0.0
        %v5000 = vsel %vm4753, %v4988, 0.0
        %v5001 = vsel %vm4753, %v4990, 0.0
        %v5002 = vsel %vm4753, %v4992, 0.0
        %v5003 = vadd.f32 %v4993, %v4935
        %v5004 = vadd.f32 %v4994, %v4938
        %v5005 = vadd.f32 %v4995, %v4943
        %v5006 = vadd.f32 %v4996, %v4946
        %v5007 = vadd.f32 %v4997, %v4951
        %v5008 = vadd.f32 %v4998, %v4954
        %v5009 = vadd.f32 %v4999, %v4959
        %v5010 = vadd.f32 %v5000, %v4962
        %v5011 = vadd.f32 %v5001, %v4967
        %v5012 = vadd.f32 %v5002, %v4970
        %s5013 = scalar_lea.vmem %s8, 400
        %v5014 = vld [vmem:[%s5013] sm:$0xff]
        %v5015 = vld [vmem:[%s5013 + $0x8] sm:$0xff]
        %v5016 = vld [vmem:[%s5013 + $0x10] sm:$0xff]
        %v5017 = vld [vmem:[%s5013 + $0x18] sm:$0xff]
        %v5018 = vld [vmem:[%s5013 + $0x20] sm:$0xff]
        %v5019 = vld [vmem:[%s5013 + $0x28] sm:$0xff]
        %v5020 = vld [vmem:[%s5013 + $0x30] sm:$0xff]
        %v5021 = vld [vmem:[%s5013 + $0x38] sm:$0xff]
        %v5022 = vld [vmem:[%s5013 + $0x40] sm:$0xff]
        %v5023 = vld [vmem:[%s5013 + $0x48] sm:$0xff]
        %5025 = vset.pattern.permute.xlu0 0
        %5026 = vperm.xlu0 %5025, %v5014
        %v5027 = vpop.permute.xlu0 %5026
        %5030 = vset.pattern.permute.xlu0 0
        %5031 = vperm.xlu0 %5030, %v5015
        %v5032 = vpop.permute.xlu0 %5031
        %5035 = vset.pattern.permute.xlu0 0
        %5036 = vperm.xlu0 %5035, %v5016
        %v5037 = vpop.permute.xlu0 %5036
        %5040 = vset.pattern.permute.xlu0 0
        %5041 = vperm.xlu0 %5040, %v5017
        %v5042 = vpop.permute.xlu0 %5041
        %5045 = vset.pattern.permute.xlu0 0
        %5046 = vperm.xlu0 %5045, %v5018
        %v5047 = vpop.permute.xlu0 %5046
        %5050 = vset.pattern.permute.xlu0 0
        %5051 = vperm.xlu0 %5050, %v5019
        %v5052 = vpop.permute.xlu0 %5051
        %5055 = vset.pattern.permute.xlu0 0
        %5056 = vperm.xlu0 %5055, %v5020
        %v5057 = vpop.permute.xlu0 %5056
        %5060 = vset.pattern.permute.xlu0 0
        %5061 = vperm.xlu0 %5060, %v5021
        %v5062 = vpop.permute.xlu0 %5061
        %5065 = vset.pattern.permute.xlu0 0
        %5066 = vperm.xlu0 %5065, %v5022
        %v5067 = vpop.permute.xlu0 %5066
        %5070 = vset.pattern.permute.xlu0 0
        %5071 = vperm.xlu0 %5070, %v5023
        %v5072 = vpop.permute.xlu0 %5071
        %v5074 = vadd.f32 %v5003, %v5027
        %v5075 = vadd.f32 %v5004, %v5032
        %v5076 = vadd.f32 %v5005, %v5037
        %v5077 = vadd.f32 %v5006, %v5042
        %v5078 = vadd.f32 %v5007, %v5047
        %v5079 = vadd.f32 %v5008, %v5052
        %v5080 = vadd.f32 %v5009, %v5057
        %v5081 = vadd.f32 %v5010, %v5062
        %v5082 = vadd.f32 %v5011, %v5067
        %v5083 = vadd.f32 %v5012, %v5072
        %v5084 = vmax.f32 %v5074, 0.0
        %v5085 = vmax.f32 %v5075, 0.0
        %v5086 = vmax.f32 %v5076, 0.0
        %v5087 = vmax.f32 %v5077, 0.0
        %v5088 = vmax.f32 %v5078, 0.0
        %v5089 = vmax.f32 %v5079, 0.0
        %v5090 = vmax.f32 %v5080, 0.0
        %v5091 = vmax.f32 %v5081, 0.0
        %v5092 = vmax.f32 %v5082, 0.0
        %v5093 = vmax.f32 %v5083, 0.0
        %s5094 = scalar_lea.vmem %s9, 400
        %v5095 = vld [vmem:[%s5094] sm:$0xf]
        %v5096 = vld [vmem:[%s5094 + $0x4] sm:$0xf]
        %v5097 = vld [vmem:[%s5094 + $0x8] sm:$0xf]
        %v5098 = vld [vmem:[%s5094 + $0xc] sm:$0xf]
        %v5099 = vld [vmem:[%s5094 + $0x10] sm:$0xf]
        %v5100 = vld [vmem:[%s5094 + $0x14] sm:$0xf]
        %v5101 = vld [vmem:[%s5094 + $0x18] sm:$0xf]
        %v5102 = vld [vmem:[%s5094 + $0x1c] sm:$0xf]
        %v5103 = vld [vmem:[%s5094 + $0x20] sm:$0xf]
        %v5104 = vld [vmem:[%s5094 + $0x24] sm:$0xf]
        %v5105 = vld [vmem:[%s5094 + $0x28] sm:$0xf]
        %v5106 = vld [vmem:[%s5094 + $0x2c] sm:$0xf]
        %v5107 = vld [vmem:[%s5094 + $0x30] sm:$0xf]
        %v5108 = vld [vmem:[%s5094 + $0x34] sm:$0xf]
        %v5109 = vld [vmem:[%s5094 + $0x38] sm:$0xf]
        %v5110 = vld [vmem:[%s5094 + $0x3c] sm:$0xf]
        %v5111 = vld [vmem:[%s5094 + $0x40] sm:$0xf]
        %v5112 = vld [vmem:[%s5094 + $0x44] sm:$0xf]
        %v5113 = vld [vmem:[%s5094 + $0x48] sm:$0xf]
        %v5114 = vld [vmem:[%s5094 + $0x4c] sm:$0xf]
        %v5115 = vpack.c.bf16 %v5085, %v5084
        %v5116 = vpack.c.bf16 %v5087, %v5086
        %v5117 = vpack.c.bf16 %v5089, %v5088
        %v5118 = vpack.c.bf16 %v5091, %v5090
        %v5119 = vpack.c.bf16 %v5093, %v5092
        %v5140 = vunpack.c.l.b16 %v5095
        %v5141 = vunpack.c.l.b16 %v5096
        %v5142 = vunpack.c.l.b16 %v5097
        %v5143 = vunpack.c.l.b16 %v5098
        %v5144 = vunpack.c.l.b16 %v5099
        %v5145 = vunpack.c.l.b16 %v5100
        %v5146 = vunpack.c.l.b16 %v5101
        %v5147 = vunpack.c.l.b16 %v5102
        %v5148 = vunpack.c.l.b16 %v5103
        %v5149 = vunpack.c.l.b16 %v5104
        %v5150 = vunpack.c.l.b16 %v5105
        %v5151 = vunpack.c.l.b16 %v5106
        %v5152 = vunpack.c.l.b16 %v5107
        %v5153 = vunpack.c.l.b16 %v5108
        %v5154 = vunpack.c.l.b16 %v5109
        %v5155 = vunpack.c.l.b16 %v5110
        %v5156 = vunpack.c.l.b16 %v5111
        %v5157 = vunpack.c.l.b16 %v5112
        %v5158 = vunpack.c.l.b16 %v5113
        %v5159 = vunpack.c.l.b16 %v5114
        %v5160 = vpack.c.b16 %v5141, %v5140
        %v5161 = vpack.c.b16 %v5143, %v5142
        %v5162 = vpack.c.b16 %v5145, %v5144
        %v5163 = vpack.c.b16 %v5147, %v5146
        %v5164 = vpack.c.b16 %v5149, %v5148
        %v5165 = vpack.c.b16 %v5151, %v5150
        %v5166 = vpack.c.b16 %v5153, %v5152
        %v5167 = vpack.c.b16 %v5155, %v5154
        %v5168 = vpack.c.b16 %v5157, %v5156
        %v5169 = vpack.c.b16 %v5159, %v5158
        %v5171 = vsel %vm821, %v5160, 0
        %v5174 = vsel %vm821, %v5161, 0
        %v5177 = vsel %vm821, %v5162, 0
        %v5180 = vsel %vm821, %v5163, 0
        %v5183 = vsel %vm821, %v5164, 0
        %v5186 = vsel %vm821, %v5165, 0
        %v5189 = vsel %vm821, %v5166, 0
        %v5192 = vsel %vm821, %v5167, 0
        %v5195 = vsel %vm821, %v5168, 0
        %v5198 = vsel %vm821, %v5169, 0
        %5200 = vmatprep.subr.bf16.mxu0 0
        %5201 = vmatpush1.bf16.msra.mxu0 %v5115
        %5202 = vmatprep.subr.bf16.mxu0 0
        %5203 = vmatpush1.bf16.msra.mxu0 %v5116
        %5204 = vmatprep.subr.bf16.mxu0 0
        %5205 = vmatpush1.bf16.msra.mxu0 %v5117
        %5206 = vmatprep.subr.bf16.mxu0 0
        %5207 = vmatpush1.bf16.msra.mxu0 %v5118
        %5208 = vmatprep.subr.bf16.mxu0 0
        %5209 = vmatpush1.bf16.msra.mxu0 %v5119
        %5210 = vmatprep.subr.bf16.mxu0 0
        %5211 = vmatpush1.bf16.msra.mxu0 0
        %5212 = vmatprep.subr.bf16.mxu0 0
        %5213 = vmatpush1.bf16.msra.mxu0 0
        %5214 = vmatprep.subr.bf16.mxu0 0
        %5215 = vmatpush1.bf16.msra.mxu0 0
        %5216 = vmatprep.subr.bf16.mxu0 0
        %5217 = vmatpush1.bf16.msra.mxu0 0
        %5218 = vmatprep.subr.bf16.mxu0 0
        %5219 = vmatpush1.bf16.msra.mxu0 0
        %5220 = vmatprep.subr.bf16.mxu0 0
        %5221 = vmatpush1.bf16.msra.mxu0 0
        %5222 = vmatprep.subr.bf16.mxu0 0
        %5223 = vmatpush1.bf16.msra.mxu0 0
        %5224 = vmatprep.subr.bf16.mxu0 0
        %5225 = vmatpush1.bf16.msra.mxu0 0
        %5226 = vmatprep.subr.bf16.mxu0 0
        %5227 = vmatpush1.bf16.msra.mxu0 0
        %5228 = vmatprep.subr.bf16.mxu0 0
        %5229 = vmatpush1.bf16.msra.mxu0 0
        %5230 = vmatprep.subr.bf16.mxu0 0
        %5231 = vmatpush1.bf16.msra.mxu0 0
        %5232 = vmatprep.mubr.bf16.mxu0 0
        %5233 = vmatmul.mubr.bf16.gmra.mrb[0].mxu0 %v5171
        %v5234 = vpop.f32.mrb[0].mxu0
        %v5235 = vadd.f32 0.0, %v5234
        %v5236 = vpop.f32.mrb[0].mxu0
        %v5237 = vpop.f32.mrb[0].mxu0
        %v5238 = vadd.f32 0.0, %v5237
        %v5239 = vpop.f32.mrb[0].mxu0
        %5240 = vmatprep.mubr.bf16.mxu0 0
        %5241 = vmatmul.mubr.bf16.gmra.mrb[0].mxu0 %v5174
        %v5242 = vpop.f32.mrb[0].mxu0
        %v5243 = vadd.f32 0.0, %v5242
        %v5244 = vpop.f32.mrb[0].mxu0
        %v5245 = vpop.f32.mrb[0].mxu0
        %v5246 = vadd.f32 0.0, %v5245
        %v5247 = vpop.f32.mrb[0].mxu0
        %5248 = vmatprep.mubr.bf16.mxu0 0
        %5249 = vmatmul.mubr.bf16.gmra.mrb[0].mxu0 %v5177
        %v5250 = vpop.f32.mrb[0].mxu0
        %v5251 = vadd.f32 0.0, %v5250
        %v5252 = vpop.f32.mrb[0].mxu0
        %v5253 = vpop.f32.mrb[0].mxu0
        %v5254 = vadd.f32 0.0, %v5253
        %v5255 = vpop.f32.mrb[0].mxu0
        %5256 = vmatprep.mubr.bf16.mxu0 0
        %5257 = vmatmul.mubr.bf16.gmra.mrb[0].mxu0 %v5180
        %v5258 = vpop.f32.mrb[0].mxu0
        %v5259 = vadd.f32 0.0, %v5258
        %v5260 = vpop.f32.mrb[0].mxu0
        %v5261 = vpop.f32.mrb[0].mxu0
        %v5262 = vadd.f32 0.0, %v5261
        %v5263 = vpop.f32.mrb[0].mxu0
        %5264 = vmatprep.mubr.bf16.mxu0 0
        %5265 = vmatmul.mubr.bf16.gmra.mrb[0].mxu0 %v5183
        %v5266 = vpop.f32.mrb[0].mxu0
        %v5267 = vadd.f32 0.0, %v5266
        %v5268 = vpop.f32.mrb[0].mxu0
        %v5269 = vpop.f32.mrb[0].mxu0
        %v5270 = vadd.f32 0.0, %v5269
        %v5271 = vpop.f32.mrb[0].mxu0
        %5272 = vmatprep.mubr.bf16.mxu0 0
        %5273 = vmatmul.mubr.bf16.gmra.mrb[0].mxu0 %v5186
        %v5274 = vpop.f32.mrb[0].mxu0
        %v5275 = vadd.f32 0.0, %v5274
        %v5276 = vpop.f32.mrb[0].mxu0
        %v5277 = vpop.f32.mrb[0].mxu0
        %v5278 = vadd.f32 0.0, %v5277
        %v5279 = vpop.f32.mrb[0].mxu0
        %5280 = vmatprep.mubr.bf16.mxu0 0
        %5281 = vmatmul.mubr.bf16.gmra.mrb[0].mxu0 %v5189
        %v5282 = vpop.f32.mrb[0].mxu0
        %v5283 = vadd.f32 0.0, %v5282
        %v5284 = vpop.f32.mrb[0].mxu0
        %v5285 = vpop.f32.mrb[0].mxu0
        %v5286 = vadd.f32 0.0, %v5285
        %v5287 = vpop.f32.mrb[0].mxu0
        %5288 = vmatprep.mubr.bf16.mxu0 0
        %5289 = vmatmul.mubr.bf16.gmra.mrb[0].mxu0 %v5192
        %v5290 = vpop.f32.mrb[0].mxu0
        %v5291 = vadd.f32 0.0, %v5290
        %v5292 = vpop.f32.mrb[0].mxu0
        %v5293 = vpop.f32.mrb[0].mxu0
        %v5294 = vadd.f32 0.0, %v5293
        %v5295 = vpop.f32.mrb[0].mxu0
        %5296 = vmatprep.mubr.bf16.mxu0 0
        %5297 = vmatmul.mubr.bf16.gmra.mrb[0].mxu0 %v5195
        %v5298 = vpop.f32.mrb[0].mxu0
        %v5299 = vadd.f32 0.0, %v5298
        %v5300 = vpop.f32.mrb[0].mxu0
        %v5301 = vpop.f32.mrb[0].mxu0
        %v5302 = vadd.f32 0.0, %v5301
        %v5303 = vpop.f32.mrb[0].mxu0
        %5304 = vmatprep.mubr.bf16.mxu0 0
        %5305 = vmatmul.mubr.bf16.gmra.mrb[0].mxu0 %v5198
        %v5306 = vpop.f32.mrb[0].mxu0
        %v5307 = vadd.f32 0.0, %v5306
        %v5308 = vpop.f32.mrb[0].mxu0
        %v5309 = vpop.f32.mrb[0].mxu0
        %v5310 = vadd.f32 0.0, %v5309
        %v5311 = vpop.f32.mrb[0].mxu0
        %5312 = vdwg.mxu0
        %5313 = vrot.lane.b32.xlu0 %v5235, 32
        %v5314 = vpop.permute.xlu0 %5313
        %5315 = vrot.lane.b32.xlu0 %v5238, 32
        %v5316 = vpop.permute.xlu0 %5315
        %5317 = vrot.lane.b32.xlu0 %v5243, 32
        %v5318 = vpop.permute.xlu0 %5317
        %5319 = vrot.lane.b32.xlu0 %v5246, 32
        %v5320 = vpop.permute.xlu0 %5319
        %5321 = vrot.lane.b32.xlu0 %v5251, 32
        %v5322 = vpop.permute.xlu0 %5321
        %5323 = vrot.lane.b32.xlu0 %v5254, 32
        %v5324 = vpop.permute.xlu0 %5323
        %5325 = vrot.lane.b32.xlu0 %v5259, 32
        %v5326 = vpop.permute.xlu0 %5325
        %5327 = vrot.lane.b32.xlu0 %v5262, 32
        %v5328 = vpop.permute.xlu0 %5327
        %5329 = vrot.lane.b32.xlu0 %v5267, 32
        %v5330 = vpop.permute.xlu0 %5329
        %5331 = vrot.lane.b32.xlu0 %v5270, 32
        %v5332 = vpop.permute.xlu0 %5331
        %v5333 = vsel %vm4753, %v5314, 0.0
        %v5334 = vsel %vm4753, %v5316, 0.0
        %v5335 = vsel %vm4753, %v5318, 0.0
        %v5336 = vsel %vm4753, %v5320, 0.0
        %v5337 = vsel %vm4753, %v5322, 0.0
        %v5338 = vsel %vm4753, %v5324, 0.0
        %v5339 = vsel %vm4753, %v5326, 0.0
        %v5340 = vsel %vm4753, %v5328, 0.0
        %v5341 = vsel %vm4753, %v5330, 0.0
        %v5342 = vsel %vm4753, %v5332, 0.0
        %v5343 = vadd.f32 %v5333, %v5275
        %v5344 = vadd.f32 %v5334, %v5278
        %v5345 = vadd.f32 %v5335, %v5283
        %v5346 = vadd.f32 %v5336, %v5286
        %v5347 = vadd.f32 %v5337, %v5291
        %v5348 = vadd.f32 %v5338, %v5294
        %v5349 = vadd.f32 %v5339, %v5299
        %v5350 = vadd.f32 %v5340, %v5302
        %v5351 = vadd.f32 %v5341, %v5307
        %v5352 = vadd.f32 %v5342, %v5310
        %s5353 = scalar_lea.vmem %s10, 400
        %v5354 = vld [vmem:[%s5353] sm:$0xff]
        %v5355 = vld [vmem:[%s5353 + $0x8] sm:$0xff]
        %v5356 = vld [vmem:[%s5353 + $0x10] sm:$0xff]
        %v5357 = vld [vmem:[%s5353 + $0x18] sm:$0xff]
        %v5358 = vld [vmem:[%s5353 + $0x20] sm:$0xff]
        %v5359 = vld [vmem:[%s5353 + $0x28] sm:$0xff]
        %v5360 = vld [vmem:[%s5353 + $0x30] sm:$0xff]
        %v5361 = vld [vmem:[%s5353 + $0x38] sm:$0xff]
        %v5362 = vld [vmem:[%s5353 + $0x40] sm:$0xff]
        %v5363 = vld [vmem:[%s5353 + $0x48] sm:$0xff]
        %5365 = vset.pattern.permute.xlu0 0
        %5366 = vperm.xlu0 %5365, %v5354
        %v5367 = vpop.permute.xlu0 %5366
        %5370 = vset.pattern.permute.xlu0 0
        %5371 = vperm.xlu0 %5370, %v5355
        %v5372 = vpop.permute.xlu0 %5371
        %5375 = vset.pattern.permute.xlu0 0
        %5376 = vperm.xlu0 %5375, %v5356
        %v5377 = vpop.permute.xlu0 %5376
        %5380 = vset.pattern.permute.xlu0 0
        %5381 = vperm.xlu0 %5380, %v5357
        %v5382 = vpop.permute.xlu0 %5381
        %5385 = vset.pattern.permute.xlu0 0
        %5386 = vperm.xlu0 %5385, %v5358
        %v5387 = vpop.permute.xlu0 %5386
        %5390 = vset.pattern.permute.xlu0 0
        %5391 = vperm.xlu0 %5390, %v5359
        %v5392 = vpop.permute.xlu0 %5391
        %5395 = vset.pattern.permute.xlu0 0
        %5396 = vperm.xlu0 %5395, %v5360
        %v5397 = vpop.permute.xlu0 %5396
        %5400 = vset.pattern.permute.xlu0 0
        %5401 = vperm.xlu0 %5400, %v5361
        %v5402 = vpop.permute.xlu0 %5401
        %5405 = vset.pattern.permute.xlu0 0
        %5406 = vperm.xlu0 %5405, %v5362
        %v5407 = vpop.permute.xlu0 %5406
        %5410 = vset.pattern.permute.xlu0 0
        %5411 = vperm.xlu0 %5410, %v5363
        %v5412 = vpop.permute.xlu0 %5411
        %v5414 = vadd.f32 %v5343, %v5367
        %v5415 = vadd.f32 %v5344, %v5372
        %v5416 = vadd.f32 %v5345, %v5377
        %v5417 = vadd.f32 %v5346, %v5382
        %v5418 = vadd.f32 %v5347, %v5387
        %v5419 = vadd.f32 %v5348, %v5392
        %v5420 = vadd.f32 %v5349, %v5397
        %v5421 = vadd.f32 %v5350, %v5402
        %v5422 = vadd.f32 %v5351, %v5407
        %v5423 = vadd.f32 %v5352, %v5412
        %v5424 = vmax.f32 %v5414, 0.0
        %v5425 = vmax.f32 %v5415, 0.0
        %v5426 = vmax.f32 %v5416, 0.0
        %v5427 = vmax.f32 %v5417, 0.0
        %v5428 = vmax.f32 %v5418, 0.0
        %v5429 = vmax.f32 %v5419, 0.0
        %v5430 = vmax.f32 %v5420, 0.0
        %v5431 = vmax.f32 %v5421, 0.0
        %v5432 = vmax.f32 %v5422, 0.0
        %v5433 = vmax.f32 %v5423, 0.0
        %v5434 = vadd.f32 %v4723, %v5424
        %v5435 = vadd.f32 %v4724, %v5425
        %v5436 = vadd.f32 %v4725, %v5426
        %v5437 = vadd.f32 %v4726, %v5427
        %v5438 = vadd.f32 %v4727, %v5428
        %v5439 = vadd.f32 %v4728, %v5429
        %v5440 = vadd.f32 %v4729, %v5430
        %v5441 = vadd.f32 %v4730, %v5431
        %v5442 = vadd.f32 %v4731, %v5432
        %v5443 = vadd.f32 %v4732, %v5433
        %v5444 = vadd.f32 %v5424, %v4743
        %v5445 = vadd.f32 %v5425, %v4744
        %v5446 = vadd.f32 %v5426, %v4745
        %v5447 = vadd.f32 %v5427, %v4746
        %v5448 = vadd.f32 %v5428, %v4747
        %v5449 = vadd.f32 %v5429, %v4748
        %v5450 = vadd.f32 %v5430, %v4749
        %v5451 = vadd.f32 %v5431, %v4750
        %v5452 = vadd.f32 %v5432, %v4751
        %v5453 = vadd.f32 %v5433, %v4752
        %v5454 = vmax.f32 %v5444, 0.0
        %v5455 = vmax.f32 %v5445, 0.0
        %v5456 = vmax.f32 %v5446, 0.0
        %v5457 = vmax.f32 %v5447, 0.0
        %v5458 = vmax.f32 %v5448, 0.0
        %v5459 = vmax.f32 %v5449, 0.0
        %v5460 = vmax.f32 %v5450, 0.0
        %v5461 = vmax.f32 %v5451, 0.0
        %v5462 = vmax.f32 %v5452, 0.0
        %v5463 = vmax.f32 %v5453, 0.0
        %v5464 = vadd.f32 %v5454, %v5434
        %v5465 = vadd.f32 %v5455, %v5435
        %v5466 = vadd.f32 %v5456, %v5436
        %v5467 = vadd.f32 %v5457, %v5437
        %v5468 = vadd.f32 %v5458, %v5438
        %v5469 = vadd.f32 %v5459, %v5439
        %v5470 = vadd.f32 %v5460, %v5440
        %v5471 = vadd.f32 %v5461, %v5441
        %v5472 = vadd.f32 %v5462, %v5442
        %v5473 = vadd.f32 %v5463, %v5443
        %v5474 = vpack.c.bf16 %v5465, %v5464
        %v5475 = vpack.c.bf16 %v5467, %v5466
        %v5476 = vpack.c.bf16 %v5469, %v5468
        %v5477 = vpack.c.bf16 %v5471, %v5470
        %v5478 = vpack.c.bf16 %v5473, %v5472
        %v5479 = vld [vmem:[%s11] sm:$0x1]
        %v5480 = vld [vmem:[#allocation2] sm:$0x1]
        %5482 = vset.pattern.permute.xlu0 0
        %5483 = vperm.xlu0 %5482, %v5480
        %v5484 = vpop.permute.xlu0 %5483
        %v5486 = vlaneseq
        %v5487 = vshrl.u32 %v5486, 7
        %v5488 = vsub.s32 0, %v5487
        %v5489 = vrot.slane %v5484, %v5488
        %v5491 = vsel %vm821, %v5479, 0
        %5493 = vmatprep.subr.bf16.mxu0 0
        %5494 = vmatpush1.bf16.msra.mxu0 %v5474
        %5495 = vmatprep.subr.bf16.mxu0 0
        %5496 = vmatpush1.bf16.msra.mxu0 %v5475
        %5497 = vmatprep.subr.bf16.mxu0 0
        %5498 = vmatpush1.bf16.msra.mxu0 %v5476
        %5499 = vmatprep.subr.bf16.mxu0 0
        %5500 = vmatpush1.bf16.msra.mxu0 %v5477
        %5501 = vmatprep.subr.bf16.mxu0 0
        %5502 = vmatpush1.bf16.msra.mxu0 %v5478
        %5503 = vmatprep.subr.bf16.mxu0 0
        %5504 = vmatpush1.bf16.msra.mxu0 0
        %5505 = vmatprep.subr.bf16.mxu0 0
        %5506 = vmatpush1.bf16.msra.mxu0 0
        %5507 = vmatprep.subr.bf16.mxu0 0
        %5508 = vmatpush1.bf16.msra.mxu0 0
        %5509 = vmatprep.subr.bf16.mxu0 0
        %5510 = vmatpush1.bf16.msra.mxu0 0
        %5511 = vmatprep.subr.bf16.mxu0 0
        %5512 = vmatpush1.bf16.msra.mxu0 0
        %5513 = vmatprep.subr.bf16.mxu0 0
        %5514 = vmatpush1.bf16.msra.mxu0 0
        %5515 = vmatprep.subr.bf16.mxu0 0
        %5516 = vmatpush1.bf16.msra.mxu0 0
        %5517 = vmatprep.subr.bf16.mxu0 0
        %5518 = vmatpush1.bf16.msra.mxu0 0
        %5519 = vmatprep.subr.bf16.mxu0 0
        %5520 = vmatpush1.bf16.msra.mxu0 0
        %5521 = vmatprep.subr.bf16.mxu0 0
        %5522 = vmatpush1.bf16.msra.mxu0 0
        %5523 = vmatprep.subr.bf16.mxu0 0
        %5524 = vmatpush1.bf16.msra.mxu0 0
        %5525 = vmatprep.mubr.bf16.mxu0 0
        %5526 = vmatmul.mubr.bf16.gmra.mrb[0].mxu0 %v5491
        %v5527 = vpop.f32.mrb[0].mxu0
        %v5528 = vadd.f32 %v5489, %v5527
        %v5529 = vpop.f32.mrb[0].mxu0
        %v5530 = vpop.f32.mrb[0].mxu0
        %v5531 = vpop.f32.mrb[0].mxu0
        %5532 = vdwg.mxu0
        %5533 = vst [vmem:[%s432] sm:$0x1] %v5528
        %s5534 = sand.u32 %s315, 1
        %s5535 = scalar_lea.sflag [#allocation4], %s5534
        %s5536 = sand.u32 %s315, 1
        %s5537 = scalar_lea.vmem [#allocation3], %s5536
        // Predicated region
        $region73: #{generator_forward.1} parent=71 // pred_check
          %p5538 = pneg %p325
        $region74: #{generator_forward.1} parent=71 // pred_check_branch
          %5540 = sbr.rel (%p5538) target = $region76
        $region75: #{generator_forward.1} parent=71 // pred_region
          %s5542 = ssub.s32 16, 16
          %5543 = vsyncadd %s5535, %s5542
          %s5544 = smul.addr %s29, 16
          %s5545 = scalar_lea.hbm %s13, %s5544
          %s5547 = sshll.u32 %s5537, 4
          %s5548 = int_to_ptr.vmem [resolvable:$true] %s5547
          %5550 = dma.vmem_to_hbm [thread:$0]  %s5548, 16, %s5545, %s5535
        $region76: #{generator_forward.1} parent=71 // pred_fallthru
          _
      $region72: #{generator_forward.1} parent=5 // pred_fallthru
        _
      %p5551 = scmp.le.s32.totalorder 2, %s24
      // Predicated region
      $region77: #{generator_forward.1} parent=5 // pred_check
        %p5552 = pneg %p5551
      $region78: #{generator_forward.1} parent=5 // pred_check_branch
        %5554 = sbr.rel (%p5552) target = $region80
      $region79: #{generator_forward.1} parent=5 // pred_region
        %s5555 = ssub.s32 %s24, 2
        // Predicated region
        $region81: #{generator_forward.1} parent=79 // pred_check
          %p5556 = pneg %p331
        $region82: #{generator_forward.1} parent=79 // pred_check_branch
          %5558 = sbr.rel (%p5556) target = $region84
        $region83: #{generator_forward.1} parent=79 // pred_region
          %s5559 = sand.u32 %s316, 1
          %s5560 = scalar_lea.sflag [#allocation4], %s5559
          %s5561 = sand.u32 %s316, 1
          %s5562 = scalar_lea.vmem [#allocation3], %s5561
          %5563 = dma.done %s5560, 16
        $region84: #{generator_forward.1} parent=79 // pred_fallthru
          _
      $region80: #{generator_forward.1} parent=5 // pred_fallthru
        _
    $region6: #{generator_forward.1} parent=1 // loop_footer
      %s28 = sadd.s32 1, %s24
    $region7: #{generator_forward.1} parent=1 // loop_footer_branch
      %23 = sbr.rel target = $region3
    $region8: #{generator_forward.1} parent=1 // loop_exit
      _
    %5564 = vsyncpa [#allocation4], 1
    %s5565 = scalar_lea.sflag [#allocation4], 1
    %5566 = vsyncpa %s5565, 1

</llo_original>
